<compile_context>
chip_gen: v7x
topology: tpu7x:2x2x1
jax: 0.10.0
libtpu: 0.0.40
codegen_flags: <defaults>
</compile_context>

<pallas_src>
import functools

import jax
import jax.numpy as jnp
import numpy as np
from jax import lax
from jax.experimental import pallas as pl
from jax.experimental.pallas import tpu as pltpu


_HALF_LOG_2PI = 0.9189385332046727
_EPS = 1e-6


# ----------------------------------------------------------------------------
# In-kernel helpers
# ----------------------------------------------------------------------------
def _elu(x):
    # F.elu, alpha = 1
    return jnp.where(x > 0, x, jnp.exp(x) - 1.0)


def _lgamma_pos(x):
    # lgamma(x) for x > 0: push-up by 8, then Stirling series.
    # Shift term folded into 2 logs (two products of 4 factors each, to stay
    # inside f32 range) instead of 8 separate logs -> ~3 EUP pushes per call.
    # TODO(synk): lax.lgamma has no guaranteed Mosaic lowering; this matches
    # torch.lgamma to ~1e-6 relative for the x>0 values used here.
    z = x + 8.0
    p1 = x * (x + 1.0) * (x + 2.0) * (x + 3.0)
    p2 = (x + 4.0) * (x + 5.0) * (x + 6.0) * (x + 7.0)
    shift = jnp.log(p1) + jnp.log(p2)
    inv = 1.0 / z
    inv2 = inv * inv
    series = inv * (1.0 / 12.0 + inv2 * (-1.0 / 360.0
                    + inv2 * (1.0 / 1260.0 + inv2 * (-1.0 / 1680.0))))
    return (z - 0.5) * jnp.log(z) - z + _HALF_LOG_2PI + series - shift


def _masked_row_softmax(logits, temp):
    # torch: (sigmoid(logits)-0.5).to_sparse(); torch.sparse.softmax(./temp, dim=1)
    # == row softmax over entries where logits != 0; all-zero rows stay zero.
    # u is bounded in +-0.5/temp, so no row-max subtraction is needed, and the
    # mask is applied exactly once.
    mask = logits != 0.0
    u = (1.0 / (1.0 + jnp.exp(-logits)) - 0.5) * (1.0 / temp)
    e = jnp.where(mask, jnp.exp(u), 0.0)
    denom = jnp.sum(e, axis=1, keepdims=True)
    inv = pl.reciprocal(jnp.where(denom > 0.0, denom, 1.0), approx=True)
    return e * inv


def _gat_elu_dense(adj, H, F, Wn, *, n_heads, c1, temp):
    # sum_h elu(attn_h @ H_h) @ Wn[h*c1:(h+1)*c1]  ==  Dense(elu(concat_heads(...)))
    # (dense bias is added by the caller)
    acc = None
    for h in range(n_heads):
        f1 = F[:, h:h + 1]                          # (N, 1)
        f2t = F[:, n_heads + h:n_heads + h + 1].T   # (1, N)
        probs = _masked_row_softmax(adj * (f1 + f2t), temp)
        Hh = H[:, h * c1:(h + 1) * c1]
        out_h = jnp.dot(probs.astype(jnp.bfloat16), Hh.astype(jnp.bfloat16),
                        preferred_element_type=jnp.float32)
        contrib = jnp.dot(_elu(out_h), Wn[h * c1:(h + 1) * c1, :],
                          preferred_element_type=jnp.float32)
        acc = contrib if acc is None else acc + contrib
    return acc


# ----------------------------------------------------------------------------
# The single fused forward kernel
# ----------------------------------------------------------------------------
def deconvnet_kernel(
    adj_ref, x_ref, emb_ref, cnt_ref, lib_ref, basis_ref,
    gamma_ref, theta_ref, tconst_ref,
    we_ref, be_ref, ve_ref, w2_ref, b2_ref,
    wdz_ref, wde_ref, bd_ref, vd_ref, wd2_ref, bd2_ref,
    wb_ref, bb_ref, waz_ref, wae_ref, ba_ref,
    o_ref, *, n_heads, c1, temp, coef_fe,
):
    f32 = jnp.float32
    bf16 = jnp.bfloat16
    adj = adj_ref[...]
    x = x_ref[...]
    emb = emb_ref[...]

    # -------- encoder: Z = Dense(elu(GATMultiHead(x, adj)))
    H_enc = (jnp.dot(x.astype(bf16), we_ref[...].astype(bf16),
                     preferred_element_type=f32) + be_ref[...])
    F_enc = jnp.dot(H_enc, ve_ref[...], preferred_element_type=f32)  # (N, 2*n_heads)
    Z = b2_ref[...] + _gat_elu_dense(adj, H_enc, F_enc, w2_ref[...],
                                     n_heads=n_heads, c1=c1, temp=temp)

    # -------- decoder: recon = Dense(elu(GATMultiHead(cat(Z, emb), adj)))
    # cat(Z, emb) @ W == Z @ W[:h2] + emb @ W[h2:]  (weights pre-split, no concat)
    H_dec = (jnp.dot(Z, wdz_ref[...], preferred_element_type=f32)
             + jnp.dot(emb, wde_ref[...], preferred_element_type=f32)
             + bd_ref[...])
    F_dec = jnp.dot(H_dec, vd_ref[...], preferred_element_type=f32)
    recon = bd2_ref[...] + _gat_elu_dense(adj, H_dec, F_dec, wd2_ref[...],
                                          n_heads=n_heads, c1=c1, temp=temp)

    # -------- deconvolutioner: beta = softmax(Dense(elu(Z))); alpha = Dense(elu(cat(Z,emb)))
    eZ = _elu(Z)
    blog = jnp.dot(eZ, wb_ref[...], preferred_element_type=f32) + bb_ref[...]
    bmax = jnp.max(blog, axis=1, keepdims=True)
    bexp = jnp.exp(blog - bmax)
    beta = bexp / jnp.sum(bexp, axis=1, keepdims=True)
    alpha = (jnp.dot(eZ, waz_ref[...], preferred_element_type=f32)
             + jnp.dot(_elu(emb), wae_ref[...], preferred_element_type=f32)
             + ba_ref[...])

    # -------- losses
    diff = x - recon
    features_loss = jnp.mean(jnp.sqrt(jnp.sum(diff * diff, axis=1, keepdims=True)))

    mu = jnp.dot(beta, basis_ref[...], preferred_element_type=f32)   # (N, G)
    log_lam = jnp.log(mu + _EPS) + alpha + gamma_ref[...]
    liblam = lib_ref[...] * jnp.exp(log_lam)
    theta = theta_ref[...]
    cnt = cnt_ref[...]
    # tconst = -lgamma(theta+eps) + theta*log(theta+eps), precomputed outside.
    ll = (_lgamma_pos(cnt + theta + _EPS)
          + tconst_ref[...]
          - (theta + cnt) * jnp.log(theta + liblam + _EPS)
          + cnt * jnp.log(liblam + _EPS))
    decon_loss = -jnp.mean(jnp.sum(ll, axis=1, keepdims=True))

    o_ref[...] = jnp.broadcast_to(decon_loss + coef_fe * features_loss, (1, 1))


# ----------------------------------------------------------------------------
# Python-level glue: parameter init, weight stacking, per-node gathers
# ----------------------------------------------------------------------------
def init_params(key, hidden_dims, n_celltypes, n_slices, n_heads, slice_emb_dim):
    h0, h1, h2 = hidden_dims
    keys = iter(jax.random.split(key, 64))

    def uniform(shape, bound):
        return jax.random.uniform(next(keys), shape, jnp.float32, -bound, bound)

    def gat_head(c_in, c_out):
        wb = float(np.sqrt(6.0 / (c_in + c_out)))
        vb = float(np.sqrt(6.0 / (c_out + 1)))
        return (uniform((c_in, c_out), wb),             # linear.weight (stored transposed)
                jnp.zeros((1, c_out), jnp.float32),     # linear.bias
                uniform((c_out, 1), vb),                # v0
                uniform((c_out, 1), vb))                # v1

    def dense(c_in, c_out, zero_init=False):
        if zero_init:
            w = jnp.zeros((c_in, c_out), jnp.float32)
        else:
            w = uniform((c_in, c_out), float(np.sqrt(6.0 / (c_in + c_out))))
        return (w, jnp.zeros((1, c_out), jnp.float32))

    return {
        "enc1": [gat_head(h0, h1 // n_heads) for _ in range(n_heads)],
        "enc2": dense(h1, h2),
        "dec1": [gat_head(h2 + slice_emb_dim, h1 // n_heads) for _ in range(n_heads)],
        "dec2": dense(h1, h0),
        "alpha": dense(h2 + slice_emb_dim, 1, zero_init=True),
        "beta": dense(h2, n_celltypes, zero_init=True),
        "gamma": jnp.zeros((n_slices, h0), jnp.float32),
        "logtheta": 5.0 * jnp.ones((n_slices, h0), jnp.float32),
        "slice_emb": jax.random.normal(next(keys), (n_slices, slice_emb_dim),
                                       jnp.float32),
    }


def deconvnet_nb_forward(params, adj, node_feats, count_matrix, library_size,
                         slice_label, basis, coef_fe, temp=1.0):
    n_heads = len(params["enc1"])
    c1 = params["enc1"][0][0].shape[1]
    h1 = n_heads * c1
    h2 = params["enc2"][0].shape[1]

    # ---- stack per-head GAT params so each stage is one fused multi-head kernel
    def stack_heads(heads):
        W = jnp.concatenate([w for (w, _, _, _) in heads], axis=1)   # (c_in, h1)
        B = jnp.concatenate([b for (_, b, _, _) in heads], axis=1)   # (1, h1)
        V = jnp.zeros((h1, 2 * n_heads), jnp.float32)                # block-diag v0|v1
        for h, (_, _, v0, v1) in enumerate(heads):
            V = V.at[h * c1:(h + 1) * c1, h].set(v0[:, 0])
            V = V.at[h * c1:(h + 1) * c1, n_heads + h].set(v1[:, 0])
        return W, B, V

    We, Be, Ve = stack_heads(params["enc1"])
    Wd, Bd, Vd = stack_heads(params["dec1"])
    Wd_z, Wd_e = Wd[:h2], Wd[h2:]
    W2, B2 = params["enc2"]
    Wd2, Bd2 = params["dec2"]
    Wb, Bb = params["beta"]
    Wa, Ba = params["alpha"]
    Wa_z, Wa_e = Wa[:h2], Wa[h2:]

    # ---- per-node gathers + theta-only NB terms hoisted out of the kernel
    emb = params["slice_emb"][slice_label]
    gamma_sel = params["gamma"][slice_label]
    theta = jnp.exp(params["logtheta"])                              # (n_slices, G)
    tconst = -lax.lgamma(theta + _EPS) + theta * jnp.log(theta + _EPS)
    theta_sel = theta[slice_label]
    tconst_sel = tconst[slice_label]

    args = [adj, node_feats, emb, count_matrix, library_size, basis,
            gamma_sel, theta_sel, tconst_sel,
            We, Be, Ve, W2, B2,
            Wd_z, Wd_e, Bd, Vd, Wd2, Bd2,
            Wb, Bb, Wa_z, Wa_e, Ba]
    out_shape = jax.ShapeDtypeStruct((1, 1), jnp.float32)
    in_specs = [pl.BlockSpec(a.shape, lambda i, nd=a.ndim: (0,) * nd) for a in args]
    out_specs = pl.BlockSpec(out_shape.shape,
                             lambda i, nd=len(out_shape.shape): (0,) * nd)

    loss = pl.pallas_call(
        functools.partial(deconvnet_kernel, n_heads=n_heads, c1=c1,
                          temp=temp, coef_fe=coef_fe),
        grid=(1,),
        in_specs=in_specs,
        out_specs=out_specs,
        out_shape=out_shape,
        compiler_params=pltpu.CompilerParams(
            dimension_semantics=("arbitrary",),
            vmem_limit_bytes=48 << 20),
    )(*args)
    return loss[0, 0]


# ----------------------------------------------------------------------------
if __name__ == "__main__":
    N = 64
    hidden_dims = [32, 16, 8]      # [n_genes, hidden1, latent]
    n_celltypes = 6
    n_slices = 3
    n_heads = 2
    slice_emb_dim = 4
    coef_fe = 0.1

    key = jax.random.PRNGKey(0)
    k_param, k_adj, k_x, k_cnt, k_lib, k_lab, k_basis = jax.random.split(key, 7)

    params = init_params(k_param, hidden_dims, n_celltypes, n_slices, n_heads,
                         slice_emb_dim)

    adj = (jax.random.uniform(k_adj, (N, N)) < 0.15).astype(jnp.float32)
    adj = jnp.maximum(adj, adj.T)
    adj = jnp.maximum(adj, jnp.eye(N, dtype=jnp.float32))

    node_feats = jax.random.normal(k_x, (N, hidden_dims[0]), jnp.float32)
    count_matrix = jax.random.randint(k_cnt, (N, hidden_dims[0]), 0, 20
                                      ).astype(jnp.float32)
    library_size = jax.random.uniform(k_lib, (N, 1), jnp.float32, 0.5, 2.0)
    slice_label = jax.random.randint(k_lab, (N,), 0, n_slices)
    basis = jax.random.uniform(k_basis, (n_celltypes, hidden_dims[0]), jnp.float32)

    fwd = jax.jit(functools.partial(deconvnet_nb_forward, coef_fe=coef_fe))
    loss = fwd(params, adj, node_feats, count_matrix, library_size,
               slice_label, basis)
    loss = jax.block_until_ready(loss)
    assert bool(jnp.isfinite(loss))
    print("KERNEL_OK")
</pallas_src>

<mosaic_0001>
module attributes {stable_mosaic.version = 11 : i64} {
  func.func @deconvnet_kernel(%arg0: i32, %arg1: memref<64x64xf32, #tpu.memory_space<vmem>>, %arg2: memref<64x32xf32, #tpu.memory_space<vmem>>, %arg3: memref<64x4xf32, #tpu.memory_space<vmem>>, %arg4: memref<64x32xf32, #tpu.memory_space<vmem>>, %arg5: memref<64x1xf32, #tpu.memory_space<vmem>>, %arg6: memref<6x32xf32, #tpu.memory_space<vmem>>, %arg7: memref<64x32xf32, #tpu.memory_space<vmem>>, %arg8: memref<64x32xf32, #tpu.memory_space<vmem>>, %arg9: memref<64x32xf32, #tpu.memory_space<vmem>>, %arg10: memref<32x16xf32, #tpu.memory_space<vmem>>, %arg11: memref<1x16xf32, #tpu.memory_space<vmem>>, %arg12: memref<16x4xf32, #tpu.memory_space<vmem>>, %arg13: memref<16x8xf32, #tpu.memory_space<vmem>>, %arg14: memref<1x8xf32, #tpu.memory_space<vmem>>, %arg15: memref<8x16xf32, #tpu.memory_space<vmem>>, %arg16: memref<4x16xf32, #tpu.memory_space<vmem>>, %arg17: memref<1x16xf32, #tpu.memory_space<vmem>>, %arg18: memref<16x4xf32, #tpu.memory_space<vmem>>, %arg19: memref<16x32xf32, #tpu.memory_space<vmem>>, %arg20: memref<1x32xf32, #tpu.memory_space<vmem>>, %arg21: memref<8x6xf32, #tpu.memory_space<vmem>>, %arg22: memref<1x6xf32, #tpu.memory_space<vmem>>, %arg23: memref<8x1xf32, #tpu.memory_space<vmem>>, %arg24: memref<4x1xf32, #tpu.memory_space<vmem>>, %arg25: memref<1x1xf32, #tpu.memory_space<vmem>>, %arg26: memref<1x1xf32, #tpu.memory_space<vmem>>) attributes {dimension_semantics = [#tpu.dimension_semantics<arbitrary>], iteration_bounds = array<i64: 1>, scalar_prefetch = 0 : i64, scratch_operands = 0 : i64, tpu.core_type = #tpu.core_type<tc>, window_params = [{pipeline_mode = #tpu.pipeline_mode<synchronous>, transform_indices = @transform_0, window_bounds = array<i64: 64, 64>}, {pipeline_mode = #tpu.pipeline_mode<synchronous>, transform_indices = @transform_1, window_bounds = array<i64: 64, 32>}, {pipeline_mode = #tpu.pipeline_mode<synchronous>, transform_indices = @transform_2, window_bounds = array<i64: 64, 4>}, {pipeline_mode = #tpu.pipeline_mode<synchronous>, transform_indices = @transform_3, window_bounds = array<i64: 64, 32>}, {pipeline_mode = #tpu.pipeline_mode<synchronous>, transform_indices = @transform_4, window_bounds = array<i64: 64, 1>}, {pipeline_mode = #tpu.pipeline_mode<synchronous>, transform_indices = @transform_5, window_bounds = array<i64: 6, 32>}, {pipeline_mode = #tpu.pipeline_mode<synchronous>, transform_indices = @transform_6, window_bounds = array<i64: 64, 32>}, {pipeline_mode = #tpu.pipeline_mode<synchronous>, transform_indices = @transform_7, window_bounds = array<i64: 64, 32>}, {pipeline_mode = #tpu.pipeline_mode<synchronous>, transform_indices = @transform_8, window_bounds = array<i64: 64, 32>}, {pipeline_mode = #tpu.pipeline_mode<synchronous>, transform_indices = @transform_9, window_bounds = array<i64: 32, 16>}, {pipeline_mode = #tpu.pipeline_mode<synchronous>, transform_indices = @transform_10, window_bounds = array<i64: 1, 16>}, {pipeline_mode = #tpu.pipeline_mode<synchronous>, transform_indices = @transform_11, window_bounds = array<i64: 16, 4>}, {pipeline_mode = #tpu.pipeline_mode<synchronous>, transform_indices = @transform_12, window_bounds = array<i64: 16, 8>}, {pipeline_mode = #tpu.pipeline_mode<synchronous>, transform_indices = @transform_13, window_bounds = array<i64: 1, 8>}, {pipeline_mode = #tpu.pipeline_mode<synchronous>, transform_indices = @transform_14, window_bounds = array<i64: 8, 16>}, {pipeline_mode = #tpu.pipeline_mode<synchronous>, transform_indices = @transform_15, window_bounds = array<i64: 4, 16>}, {pipeline_mode = #tpu.pipeline_mode<synchronous>, transform_indices = @transform_16, window_bounds = array<i64: 1, 16>}, {pipeline_mode = #tpu.pipeline_mode<synchronous>, transform_indices = @transform_17, window_bounds = array<i64: 16, 4>}, {pipeline_mode = #tpu.pipeline_mode<synchronous>, transform_indices = @transform_18, window_bounds = array<i64: 16, 32>}, {pipeline_mode = #tpu.pipeline_mode<synchronous>, transform_indices = @transform_19, window_bounds = array<i64: 1, 32>}, {pipeline_mode = #tpu.pipeline_mode<synchronous>, transform_indices = @transform_20, window_bounds = array<i64: 8, 6>}, {pipeline_mode = #tpu.pipeline_mode<synchronous>, transform_indices = @transform_21, window_bounds = array<i64: 1, 6>}, {pipeline_mode = #tpu.pipeline_mode<synchronous>, transform_indices = @transform_22, window_bounds = array<i64: 8, 1>}, {pipeline_mode = #tpu.pipeline_mode<synchronous>, transform_indices = @transform_23, window_bounds = array<i64: 4, 1>}, {pipeline_mode = #tpu.pipeline_mode<synchronous>, transform_indices = @transform_24, window_bounds = array<i64: 1, 1>}, {pipeline_mode = #tpu.pipeline_mode<synchronous>, transform_indices = @transform_25, window_bounds = array<i64: 1, 1>}]} {
    %c0 = arith.constant 0 : index
    %c0_0 = arith.constant 0 : index
    %0 = vector.load %arg1[%c0, %c0_0] : memref<64x64xf32, #tpu.memory_space<vmem>>, vector<64x64xf32>
    %c0_1 = arith.constant 0 : index
    %c0_2 = arith.constant 0 : index
    %1 = vector.load %arg2[%c0_1, %c0_2] : memref<64x32xf32, #tpu.memory_space<vmem>>, vector<64x32xf32>
    %c0_3 = arith.constant 0 : index
    %c0_4 = arith.constant 0 : index
    %2 = vector.load %arg3[%c0_3, %c0_4] : memref<64x4xf32, #tpu.memory_space<vmem>>, vector<64x4xf32>
    %3 = arith.truncf %1 : vector<64x32xf32> to vector<64x32xbf16>
    %c0_5 = arith.constant 0 : index
    %c0_6 = arith.constant 0 : index
    %4 = vector.load %arg10[%c0_5, %c0_6] : memref<32x16xf32, #tpu.memory_space<vmem>>, vector<32x16xf32>
    %5 = arith.truncf %4 : vector<32x16xf32> to vector<32x16xbf16>
    %cst = arith.constant dense<0.000000e+00> : vector<64x16xf32>
    %6 = tpu.matmul %3, %5, %cst {dimension_numbers = #tpu.dot_dimension_numbers<[1], [0], [0], [1], [0, 0, 1, 1], [], []>} : vector<64x32xbf16>, vector<32x16xbf16>, vector<64x16xf32> -> vector<64x16xf32>
    %c0_7 = arith.constant 0 : index
    %c0_8 = arith.constant 0 : index
    %7 = vector.load %arg11[%c0_7, %c0_8] : memref<1x16xf32, #tpu.memory_space<vmem>>, vector<1x16xf32>
    %8 = vector.broadcast %7 : vector<1x16xf32> to vector<64x16xf32>
    %9 = arith.addf %6, %8 : vector<64x16xf32>
    %c0_9 = arith.constant 0 : index
    %c0_10 = arith.constant 0 : index
    %10 = vector.load %arg12[%c0_9, %c0_10] : memref<16x4xf32, #tpu.memory_space<vmem>>, vector<16x4xf32>
    %cst_11 = arith.constant dense<0.000000e+00> : vector<64x4xf32>
    %11 = tpu.matmul %9, %10, %cst_11 {dimension_numbers = #tpu.dot_dimension_numbers<[1], [0], [0], [1], [0, 0, 1, 1], [], []>} : vector<64x16xf32>, vector<16x4xf32>, vector<64x4xf32> -> vector<64x4xf32>
    %c0_12 = arith.constant 0 : index
    %c0_13 = arith.constant 0 : index
    %12 = vector.load %arg14[%c0_12, %c0_13] : memref<1x8xf32, #tpu.memory_space<vmem>>, vector<1x8xf32>
    %c0_14 = arith.constant 0 : index
    %c0_15 = arith.constant 0 : index
    %13 = vector.load %arg13[%c0_14, %c0_15] : memref<16x8xf32, #tpu.memory_space<vmem>>, vector<16x8xf32>
    %14 = vector.extract_strided_slice %11 {offsets = [0, 0], sizes = [64, 1], strides = [1, 1]} : vector<64x4xf32> to vector<64x1xf32>
    %15 = vector.extract_strided_slice %11 {offsets = [0, 2], sizes = [64, 1], strides = [1, 1]} : vector<64x4xf32> to vector<64x1xf32>
    %16 = tpu.transpose %15, [1, 0] : vector<64x1xf32> -> vector<1x64xf32>
    %17 = vector.broadcast %14 : vector<64x1xf32> to vector<64x64xf32>
    %18 = vector.broadcast %16 : vector<1x64xf32> to vector<64x64xf32>
    %19 = arith.addf %17, %18 : vector<64x64xf32>
    %20 = arith.mulf %0, %19 : vector<64x64xf32>
    %cst_16 = arith.constant 0.000000e+00 : f32
    %21 = vector.broadcast %cst_16 : f32 to vector<64x64xf32>
    %22 = arith.cmpf one, %20, %21 : vector<64x64xf32>
    %cst_17 = arith.constant 0.000000e+00 : f32
    %23 = vector.broadcast %cst_17 : f32 to vector<64x64xf32>
    %24 = arith.subf %23, %20 : vector<64x64xf32>
    %25 = math.exp %24 : vector<64x64xf32>
    %cst_18 = arith.constant 1.000000e+00 : f32
    %26 = vector.broadcast %cst_18 : f32 to vector<64x64xf32>
    %27 = arith.addf %26, %25 : vector<64x64xf32>
    %cst_19 = arith.constant 1.000000e+00 : f32
    %28 = vector.broadcast %cst_19 : f32 to vector<64x64xf32>
    %29 = arith.divf %28, %27 : vector<64x64xf32>
    %cst_20 = arith.constant 5.000000e-01 : f32
    %30 = vector.broadcast %cst_20 : f32 to vector<64x64xf32>
    %31 = arith.subf %29, %30 : vector<64x64xf32>
    %cst_21 = arith.constant 1.000000e+00 : f32
    %32 = vector.broadcast %cst_21 : f32 to vector<64x64xf32>
    %33 = arith.mulf %31, %32 : vector<64x64xf32>
    %34 = math.exp %33 : vector<64x64xf32>
    %cst_22 = arith.constant 0.000000e+00 : f32
    %35 = vector.broadcast %cst_22 : f32 to vector<64x64xf32>
    %36 = arith.select %22, %34, %35 : vector<64x64xi1>, vector<64x64xf32>
    %cst_23 = arith.constant dense<0.000000e+00> : vector<64xf32>
    %37 = vector.multi_reduction <add>, %36, %cst_23 [1] : vector<64x64xf32> to vector<64xf32>
    %38 = vector.shape_cast %37 : vector<64xf32> to vector<64x1xf32>
    %cst_24 = arith.constant 0.000000e+00 : f32
    %39 = vector.broadcast %cst_24 : f32 to vector<64x1xf32>
    %40 = arith.cmpf ogt, %38, %39 : vector<64x1xf32>
    %cst_25 = arith.constant 1.000000e+00 : f32
    %41 = vector.broadcast %cst_25 : f32 to vector<64x1xf32>
    %42 = arith.select %40, %38, %41 : vector<64x1xi1>, vector<64x1xf32>
    %43 = tpu.reciprocal %42 {approx = true} : vector<64x1xf32> -> vector<64x1xf32>
    %44 = vector.broadcast %43 : vector<64x1xf32> to vector<64x64xf32>
    %45 = arith.mulf %36, %44 : vector<64x64xf32>
    %46 = vector.extract_strided_slice %9 {offsets = [0, 0], sizes = [64, 8], strides = [1, 1]} : vector<64x16xf32> to vector<64x8xf32>
    %47 = arith.truncf %45 : vector<64x64xf32> to vector<64x64xbf16>
    %48 = arith.truncf %46 : vector<64x8xf32> to vector<64x8xbf16>
    %cst_26 = arith.constant dense<0.000000e+00> : vector<64x8xf32>
    %49 = tpu.matmul %47, %48, %cst_26 {dimension_numbers = #tpu.dot_dimension_numbers<[1], [0], [0], [1], [0, 0, 1, 1], [], []>} : vector<64x64xbf16>, vector<64x8xbf16>, vector<64x8xf32> -> vector<64x8xf32>
    %cst_27 = arith.constant 0.000000e+00 : f32
    %50 = vector.broadcast %cst_27 : f32 to vector<64x8xf32>
    %51 = arith.cmpf ogt, %49, %50 : vector<64x8xf32>
    %52 = math.exp %49 : vector<64x8xf32>
    %cst_28 = arith.constant 1.000000e+00 : f32
    %53 = vector.broadcast %cst_28 : f32 to vector<64x8xf32>
    %54 = arith.subf %52, %53 : vector<64x8xf32>
    %55 = arith.select %51, %49, %54 : vector<64x8xi1>, vector<64x8xf32>
    %56 = vector.extract_strided_slice %13 {offsets = [0, 0], sizes = [8, 8], strides = [1, 1]} : vector<16x8xf32> to vector<8x8xf32>
    %cst_29 = arith.constant dense<0.000000e+00> : vector<64x8xf32>
    %57 = tpu.matmul %55, %56, %cst_29 {dimension_numbers = #tpu.dot_dimension_numbers<[1], [0], [0], [1], [0, 0, 1, 1], [], []>} : vector<64x8xf32>, vector<8x8xf32>, vector<64x8xf32> -> vector<64x8xf32>
    %58 = vector.extract_strided_slice %11 {offsets = [0, 1], sizes = [64, 1], strides = [1, 1]} : vector<64x4xf32> to vector<64x1xf32>
    %59 = vector.extract_strided_slice %11 {offsets = [0, 3], sizes = [64, 1], strides = [1, 1]} : vector<64x4xf32> to vector<64x1xf32>
    %60 = tpu.transpose %59, [1, 0] : vector<64x1xf32> -> vector<1x64xf32>
    %61 = vector.broadcast %58 : vector<64x1xf32> to vector<64x64xf32>
    %62 = vector.broadcast %60 : vector<1x64xf32> to vector<64x64xf32>
    %63 = arith.addf %61, %62 : vector<64x64xf32>
    %64 = arith.mulf %0, %63 : vector<64x64xf32>
    %cst_30 = arith.constant 0.000000e+00 : f32
    %65 = vector.broadcast %cst_30 : f32 to vector<64x64xf32>
    %66 = arith.cmpf one, %64, %65 : vector<64x64xf32>
    %cst_31 = arith.constant 0.000000e+00 : f32
    %67 = vector.broadcast %cst_31 : f32 to vector<64x64xf32>
    %68 = arith.subf %67, %64 : vector<64x64xf32>
    %69 = math.exp %68 : vector<64x64xf32>
    %cst_32 = arith.constant 1.000000e+00 : f32
    %70 = vector.broadcast %cst_32 : f32 to vector<64x64xf32>
    %71 = arith.addf %70, %69 : vector<64x64xf32>
    %cst_33 = arith.constant 1.000000e+00 : f32
    %72 = vector.broadcast %cst_33 : f32 to vector<64x64xf32>
    %73 = arith.divf %72, %71 : vector<64x64xf32>
    %cst_34 = arith.constant 5.000000e-01 : f32
    %74 = vector.broadcast %cst_34 : f32 to vector<64x64xf32>
    %75 = arith.subf %73, %74 : vector<64x64xf32>
    %cst_35 = arith.constant 1.000000e+00 : f32
    %76 = vector.broadcast %cst_35 : f32 to vector<64x64xf32>
    %77 = arith.mulf %75, %76 : vector<64x64xf32>
    %78 = math.exp %77 : vector<64x64xf32>
    %cst_36 = arith.constant 0.000000e+00 : f32
    %79 = vector.broadcast %cst_36 : f32 to vector<64x64xf32>
    %80 = arith.select %66, %78, %79 : vector<64x64xi1>, vector<64x64xf32>
    %cst_37 = arith.constant dense<0.000000e+00> : vector<64xf32>
    %81 = vector.multi_reduction <add>, %80, %cst_37 [1] : vector<64x64xf32> to vector<64xf32>
    %82 = vector.shape_cast %81 : vector<64xf32> to vector<64x1xf32>
    %cst_38 = arith.constant 0.000000e+00 : f32
    %83 = vector.broadcast %cst_38 : f32 to vector<64x1xf32>
    %84 = arith.cmpf ogt, %82, %83 : vector<64x1xf32>
    %cst_39 = arith.constant 1.000000e+00 : f32
    %85 = vector.broadcast %cst_39 : f32 to vector<64x1xf32>
    %86 = arith.select %84, %82, %85 : vector<64x1xi1>, vector<64x1xf32>
    %87 = tpu.reciprocal %86 {approx = true} : vector<64x1xf32> -> vector<64x1xf32>
    %88 = vector.broadcast %87 : vector<64x1xf32> to vector<64x64xf32>
    %89 = arith.mulf %80, %88 : vector<64x64xf32>
    %90 = vector.extract_strided_slice %9 {offsets = [0, 8], sizes = [64, 8], strides = [1, 1]} : vector<64x16xf32> to vector<64x8xf32>
    %91 = arith.truncf %89 : vector<64x64xf32> to vector<64x64xbf16>
    %92 = arith.truncf %90 : vector<64x8xf32> to vector<64x8xbf16>
    %cst_40 = arith.constant dense<0.000000e+00> : vector<64x8xf32>
    %93 = tpu.matmul %91, %92, %cst_40 {dimension_numbers = #tpu.dot_dimension_numbers<[1], [0], [0], [1], [0, 0, 1, 1], [], []>} : vector<64x64xbf16>, vector<64x8xbf16>, vector<64x8xf32> -> vector<64x8xf32>
    %cst_41 = arith.constant 0.000000e+00 : f32
    %94 = vector.broadcast %cst_41 : f32 to vector<64x8xf32>
    %95 = arith.cmpf ogt, %93, %94 : vector<64x8xf32>
    %96 = math.exp %93 : vector<64x8xf32>
    %cst_42 = arith.constant 1.000000e+00 : f32
    %97 = vector.broadcast %cst_42 : f32 to vector<64x8xf32>
    %98 = arith.subf %96, %97 : vector<64x8xf32>
    %99 = arith.select %95, %93, %98 : vector<64x8xi1>, vector<64x8xf32>
    %100 = vector.extract_strided_slice %13 {offsets = [8, 0], sizes = [8, 8], strides = [1, 1]} : vector<16x8xf32> to vector<8x8xf32>
    %cst_43 = arith.constant dense<0.000000e+00> : vector<64x8xf32>
    %101 = tpu.matmul %99, %100, %cst_43 {dimension_numbers = #tpu.dot_dimension_numbers<[1], [0], [0], [1], [0, 0, 1, 1], [], []>} : vector<64x8xf32>, vector<8x8xf32>, vector<64x8xf32> -> vector<64x8xf32>
    %102 = arith.addf %57, %101 : vector<64x8xf32>
    %103 = vector.broadcast %12 : vector<1x8xf32> to vector<64x8xf32>
    %104 = arith.addf %103, %102 : vector<64x8xf32>
    %c0_44 = arith.constant 0 : index
    %c0_45 = arith.constant 0 : index
    %105 = vector.load %arg15[%c0_44, %c0_45] : memref<8x16xf32, #tpu.memory_space<vmem>>, vector<8x16xf32>
    %cst_46 = arith.constant dense<0.000000e+00> : vector<64x16xf32>
    %106 = tpu.matmul %104, %105, %cst_46 {dimension_numbers = #tpu.dot_dimension_numbers<[1], [0], [0], [1], [0, 0, 1, 1], [], []>} : vector<64x8xf32>, vector<8x16xf32>, vector<64x16xf32> -> vector<64x16xf32>
    %c0_47 = arith.constant 0 : index
    %c0_48 = arith.constant 0 : index
    %107 = vector.load %arg16[%c0_47, %c0_48] : memref<4x16xf32, #tpu.memory_space<vmem>>, vector<4x16xf32>
    %cst_49 = arith.constant dense<0.000000e+00> : vector<64x16xf32>
    %108 = tpu.matmul %2, %107, %cst_49 {dimension_numbers = #tpu.dot_dimension_numbers<[1], [0], [0], [1], [0, 0, 1, 1], [], []>} : vector<64x4xf32>, vector<4x16xf32>, vector<64x16xf32> -> vector<64x16xf32>
    %109 = arith.addf %106, %108 : vector<64x16xf32>
    %c0_50 = arith.constant 0 : index
    %c0_51 = arith.constant 0 : index
    %110 = vector.load %arg17[%c0_50, %c0_51] : memref<1x16xf32, #tpu.memory_space<vmem>>, vector<1x16xf32>
    %111 = vector.broadcast %110 : vector<1x16xf32> to vector<64x16xf32>
    %112 = arith.addf %109, %111 : vector<64x16xf32>
    %c0_52 = arith.constant 0 : index
    %c0_53 = arith.constant 0 : index
    %113 = vector.load %arg18[%c0_52, %c0_53] : memref<16x4xf32, #tpu.memory_space<vmem>>, vector<16x4xf32>
    %cst_54 = arith.constant dense<0.000000e+00> : vector<64x4xf32>
    %114 = tpu.matmul %112, %113, %cst_54 {dimension_numbers = #tpu.dot_dimension_numbers<[1], [0], [0], [1], [0, 0, 1, 1], [], []>} : vector<64x16xf32>, vector<16x4xf32>, vector<64x4xf32> -> vector<64x4xf32>
    %c0_55 = arith.constant 0 : index
    %c0_56 = arith.constant 0 : index
    %115 = vector.load %arg20[%c0_55, %c0_56] : memref<1x32xf32, #tpu.memory_space<vmem>>, vector<1x32xf32>
    %c0_57 = arith.constant 0 : index
    %c0_58 = arith.constant 0 : index
    %116 = vector.load %arg19[%c0_57, %c0_58] : memref<16x32xf32, #tpu.memory_space<vmem>>, vector<16x32xf32>
    %117 = vector.extract_strided_slice %114 {offsets = [0, 0], sizes = [64, 1], strides = [1, 1]} : vector<64x4xf32> to vector<64x1xf32>
    %118 = vector.extract_strided_slice %114 {offsets = [0, 2], sizes = [64, 1], strides = [1, 1]} : vector<64x4xf32> to vector<64x1xf32>
    %119 = tpu.transpose %118, [1, 0] : vector<64x1xf32> -> vector<1x64xf32>
    %120 = vector.broadcast %117 : vector<64x1xf32> to vector<64x64xf32>
    %121 = vector.broadcast %119 : vector<1x64xf32> to vector<64x64xf32>
    %122 = arith.addf %120, %121 : vector<64x64xf32>
    %123 = arith.mulf %0, %122 : vector<64x64xf32>
    %cst_59 = arith.constant 0.000000e+00 : f32
    %124 = vector.broadcast %cst_59 : f32 to vector<64x64xf32>
    %125 = arith.cmpf one, %123, %124 : vector<64x64xf32>
    %cst_60 = arith.constant 0.000000e+00 : f32
    %126 = vector.broadcast %cst_60 : f32 to vector<64x64xf32>
    %127 = arith.subf %126, %123 : vector<64x64xf32>
    %128 = math.exp %127 : vector<64x64xf32>
    %cst_61 = arith.constant 1.000000e+00 : f32
    %129 = vector.broadcast %cst_61 : f32 to vector<64x64xf32>
    %130 = arith.addf %129, %128 : vector<64x64xf32>
    %cst_62 = arith.constant 1.000000e+00 : f32
    %131 = vector.broadcast %cst_62 : f32 to vector<64x64xf32>
    %132 = arith.divf %131, %130 : vector<64x64xf32>
    %cst_63 = arith.constant 5.000000e-01 : f32
    %133 = vector.broadcast %cst_63 : f32 to vector<64x64xf32>
    %134 = arith.subf %132, %133 : vector<64x64xf32>
    %cst_64 = arith.constant 1.000000e+00 : f32
    %135 = vector.broadcast %cst_64 : f32 to vector<64x64xf32>
    %136 = arith.mulf %134, %135 : vector<64x64xf32>
    %137 = math.exp %136 : vector<64x64xf32>
    %cst_65 = arith.constant 0.000000e+00 : f32
    %138 = vector.broadcast %cst_65 : f32 to vector<64x64xf32>
    %139 = arith.select %125, %137, %138 : vector<64x64xi1>, vector<64x64xf32>
    %cst_66 = arith.constant dense<0.000000e+00> : vector<64xf32>
    %140 = vector.multi_reduction <add>, %139, %cst_66 [1] : vector<64x64xf32> to vector<64xf32>
    %141 = vector.shape_cast %140 : vector<64xf32> to vector<64x1xf32>
    %cst_67 = arith.constant 0.000000e+00 : f32
    %142 = vector.broadcast %cst_67 : f32 to vector<64x1xf32>
    %143 = arith.cmpf ogt, %141, %142 : vector<64x1xf32>
    %cst_68 = arith.constant 1.000000e+00 : f32
    %144 = vector.broadcast %cst_68 : f32 to vector<64x1xf32>
    %145 = arith.select %143, %141, %144 : vector<64x1xi1>, vector<64x1xf32>
    %146 = tpu.reciprocal %145 {approx = true} : vector<64x1xf32> -> vector<64x1xf32>
    %147 = vector.broadcast %146 : vector<64x1xf32> to vector<64x64xf32>
    %148 = arith.mulf %139, %147 : vector<64x64xf32>
    %149 = vector.extract_strided_slice %112 {offsets = [0, 0], sizes = [64, 8], strides = [1, 1]} : vector<64x16xf32> to vector<64x8xf32>
    %150 = arith.truncf %148 : vector<64x64xf32> to vector<64x64xbf16>
    %151 = arith.truncf %149 : vector<64x8xf32> to vector<64x8xbf16>
    %cst_69 = arith.constant dense<0.000000e+00> : vector<64x8xf32>
    %152 = tpu.matmul %150, %151, %cst_69 {dimension_numbers = #tpu.dot_dimension_numbers<[1], [0], [0], [1], [0, 0, 1, 1], [], []>} : vector<64x64xbf16>, vector<64x8xbf16>, vector<64x8xf32> -> vector<64x8xf32>
    %cst_70 = arith.constant 0.000000e+00 : f32
    %153 = vector.broadcast %cst_70 : f32 to vector<64x8xf32>
    %154 = arith.cmpf ogt, %152, %153 : vector<64x8xf32>
    %155 = math.exp %152 : vector<64x8xf32>
    %cst_71 = arith.constant 1.000000e+00 : f32
    %156 = vector.broadcast %cst_71 : f32 to vector<64x8xf32>
    %157 = arith.subf %155, %156 : vector<64x8xf32>
    %158 = arith.select %154, %152, %157 : vector<64x8xi1>, vector<64x8xf32>
    %159 = vector.extract_strided_slice %116 {offsets = [0, 0], sizes = [8, 32], strides = [1, 1]} : vector<16x32xf32> to vector<8x32xf32>
    %cst_72 = arith.constant dense<0.000000e+00> : vector<64x32xf32>
    %160 = tpu.matmul %158, %159, %cst_72 {dimension_numbers = #tpu.dot_dimension_numbers<[1], [0], [0], [1], [0, 0, 1, 1], [], []>} : vector<64x8xf32>, vector<8x32xf32>, vector<64x32xf32> -> vector<64x32xf32>
    %161 = vector.extract_strided_slice %114 {offsets = [0, 1], sizes = [64, 1], strides = [1, 1]} : vector<64x4xf32> to vector<64x1xf32>
    %162 = vector.extract_strided_slice %114 {offsets = [0, 3], sizes = [64, 1], strides = [1, 1]} : vector<64x4xf32> to vector<64x1xf32>
    %163 = tpu.transpose %162, [1, 0] : vector<64x1xf32> -> vector<1x64xf32>
    %164 = vector.broadcast %161 : vector<64x1xf32> to vector<64x64xf32>
    %165 = vector.broadcast %163 : vector<1x64xf32> to vector<64x64xf32>
    %166 = arith.addf %164, %165 : vector<64x64xf32>
    %167 = arith.mulf %0, %166 : vector<64x64xf32>
    %cst_73 = arith.constant 0.000000e+00 : f32
    %168 = vector.broadcast %cst_73 : f32 to vector<64x64xf32>
    %169 = arith.cmpf one, %167, %168 : vector<64x64xf32>
    %cst_74 = arith.constant 0.000000e+00 : f32
    %170 = vector.broadcast %cst_74 : f32 to vector<64x64xf32>
    %171 = arith.subf %170, %167 : vector<64x64xf32>
    %172 = math.exp %171 : vector<64x64xf32>
    %cst_75 = arith.constant 1.000000e+00 : f32
    %173 = vector.broadcast %cst_75 : f32 to vector<64x64xf32>
    %174 = arith.addf %173, %172 : vector<64x64xf32>
    %cst_76 = arith.constant 1.000000e+00 : f32
    %175 = vector.broadcast %cst_76 : f32 to vector<64x64xf32>
    %176 = arith.divf %175, %174 : vector<64x64xf32>
    %cst_77 = arith.constant 5.000000e-01 : f32
    %177 = vector.broadcast %cst_77 : f32 to vector<64x64xf32>
    %178 = arith.subf %176, %177 : vector<64x64xf32>
    %cst_78 = arith.constant 1.000000e+00 : f32
    %179 = vector.broadcast %cst_78 : f32 to vector<64x64xf32>
    %180 = arith.mulf %178, %179 : vector<64x64xf32>
    %181 = math.exp %180 : vector<64x64xf32>
    %cst_79 = arith.constant 0.000000e+00 : f32
    %182 = vector.broadcast %cst_79 : f32 to vector<64x64xf32>
    %183 = arith.select %169, %181, %182 : vector<64x64xi1>, vector<64x64xf32>
    %cst_80 = arith.constant dense<0.000000e+00> : vector<64xf32>
    %184 = vector.multi_reduction <add>, %183, %cst_80 [1] : vector<64x64xf32> to vector<64xf32>
    %185 = vector.shape_cast %184 : vector<64xf32> to vector<64x1xf32>
    %cst_81 = arith.constant 0.000000e+00 : f32
    %186 = vector.broadcast %cst_81 : f32 to vector<64x1xf32>
    %187 = arith.cmpf ogt, %185, %186 : vector<64x1xf32>
    %cst_82 = arith.constant 1.000000e+00 : f32
    %188 = vector.broadcast %cst_82 : f32 to vector<64x1xf32>
    %189 = arith.select %187, %185, %188 : vector<64x1xi1>, vector<64x1xf32>
    %190 = tpu.reciprocal %189 {approx = true} : vector<64x1xf32> -> vector<64x1xf32>
    %191 = vector.broadcast %190 : vector<64x1xf32> to vector<64x64xf32>
    %192 = arith.mulf %183, %191 : vector<64x64xf32>
    %193 = vector.extract_strided_slice %112 {offsets = [0, 8], sizes = [64, 8], strides = [1, 1]} : vector<64x16xf32> to vector<64x8xf32>
    %194 = arith.truncf %192 : vector<64x64xf32> to vector<64x64xbf16>
    %195 = arith.truncf %193 : vector<64x8xf32> to vector<64x8xbf16>
    %cst_83 = arith.constant dense<0.000000e+00> : vector<64x8xf32>
    %196 = tpu.matmul %194, %195, %cst_83 {dimension_numbers = #tpu.dot_dimension_numbers<[1], [0], [0], [1], [0, 0, 1, 1], [], []>} : vector<64x64xbf16>, vector<64x8xbf16>, vector<64x8xf32> -> vector<64x8xf32>
    %cst_84 = arith.constant 0.000000e+00 : f32
    %197 = vector.broadcast %cst_84 : f32 to vector<64x8xf32>
    %198 = arith.cmpf ogt, %196, %197 : vector<64x8xf32>
    %199 = math.exp %196 : vector<64x8xf32>
    %cst_85 = arith.constant 1.000000e+00 : f32
    %200 = vector.broadcast %cst_85 : f32 to vector<64x8xf32>
    %201 = arith.subf %199, %200 : vector<64x8xf32>
    %202 = arith.select %198, %196, %201 : vector<64x8xi1>, vector<64x8xf32>
    %203 = vector.extract_strided_slice %116 {offsets = [8, 0], sizes = [8, 32], strides = [1, 1]} : vector<16x32xf32> to vector<8x32xf32>
    %cst_86 = arith.constant dense<0.000000e+00> : vector<64x32xf32>
    %204 = tpu.matmul %202, %203, %cst_86 {dimension_numbers = #tpu.dot_dimension_numbers<[1], [0], [0], [1], [0, 0, 1, 1], [], []>} : vector<64x8xf32>, vector<8x32xf32>, vector<64x32xf32> -> vector<64x32xf32>
    %205 = arith.addf %160, %204 : vector<64x32xf32>
    %206 = vector.broadcast %115 : vector<1x32xf32> to vector<64x32xf32>
    %207 = arith.addf %206, %205 : vector<64x32xf32>
    %cst_87 = arith.constant 0.000000e+00 : f32
    %208 = vector.broadcast %cst_87 : f32 to vector<64x8xf32>
    %209 = arith.cmpf ogt, %104, %208 : vector<64x8xf32>
    %210 = math.exp %104 : vector<64x8xf32>
    %cst_88 = arith.constant 1.000000e+00 : f32
    %211 = vector.broadcast %cst_88 : f32 to vector<64x8xf32>
    %212 = arith.subf %210, %211 : vector<64x8xf32>
    %213 = arith.select %209, %104, %212 : vector<64x8xi1>, vector<64x8xf32>
    %c0_89 = arith.constant 0 : index
    %c0_90 = arith.constant 0 : index
    %214 = vector.load %arg21[%c0_89, %c0_90] : memref<8x6xf32, #tpu.memory_space<vmem>>, vector<8x6xf32>
    %cst_91 = arith.constant dense<0.000000e+00> : vector<64x6xf32>
    %215 = tpu.matmul %213, %214, %cst_91 {dimension_numbers = #tpu.dot_dimension_numbers<[1], [0], [0], [1], [0, 0, 1, 1], [], []>} : vector<64x8xf32>, vector<8x6xf32>, vector<64x6xf32> -> vector<64x6xf32>
    %c0_92 = arith.constant 0 : index
    %c0_93 = arith.constant 0 : index
    %216 = vector.load %arg22[%c0_92, %c0_93] : memref<1x6xf32, #tpu.memory_space<vmem>>, vector<1x6xf32>
    %217 = vector.broadcast %216 : vector<1x6xf32> to vector<64x6xf32>
    %218 = arith.addf %215, %217 : vector<64x6xf32>
    %cst_94 = arith.constant dense<0xFF800000> : vector<64xf32>
    %219 = vector.multi_reduction <maximumf>, %218, %cst_94 [1] : vector<64x6xf32> to vector<64xf32>
    %220 = vector.shape_cast %219 : vector<64xf32> to vector<64x1xf32>
    %221 = vector.broadcast %220 : vector<64x1xf32> to vector<64x6xf32>
    %222 = arith.subf %218, %221 : vector<64x6xf32>
    %223 = math.exp %222 : vector<64x6xf32>
    %cst_95 = arith.constant dense<0.000000e+00> : vector<64xf32>
    %224 = vector.multi_reduction <add>, %223, %cst_95 [1] : vector<64x6xf32> to vector<64xf32>
    %225 = vector.shape_cast %224 : vector<64xf32> to vector<64x1xf32>
    %226 = vector.broadcast %225 : vector<64x1xf32> to vector<64x6xf32>
    %227 = arith.divf %223, %226 : vector<64x6xf32>
    %c0_96 = arith.constant 0 : index
    %c0_97 = arith.constant 0 : index
    %228 = vector.load %arg23[%c0_96, %c0_97] : memref<8x1xf32, #tpu.memory_space<vmem>>, vector<8x1xf32>
    %cst_98 = arith.constant dense<0.000000e+00> : vector<64x1xf32>
    %229 = tpu.matmul %213, %228, %cst_98 {dimension_numbers = #tpu.dot_dimension_numbers<[1], [0], [0], [1], [0, 0, 1, 1], [], []>} : vector<64x8xf32>, vector<8x1xf32>, vector<64x1xf32> -> vector<64x1xf32>
    %cst_99 = arith.constant 0.000000e+00 : f32
    %230 = vector.broadcast %cst_99 : f32 to vector<64x4xf32>
    %231 = arith.cmpf ogt, %2, %230 : vector<64x4xf32>
    %232 = math.exp %2 : vector<64x4xf32>
    %cst_100 = arith.constant 1.000000e+00 : f32
    %233 = vector.broadcast %cst_100 : f32 to vector<64x4xf32>
    %234 = arith.subf %232, %233 : vector<64x4xf32>
    %235 = arith.select %231, %2, %234 : vector<64x4xi1>, vector<64x4xf32>
    %c0_101 = arith.constant 0 : index
    %c0_102 = arith.constant 0 : index
    %236 = vector.load %arg24[%c0_101, %c0_102] : memref<4x1xf32, #tpu.memory_space<vmem>>, vector<4x1xf32>
    %cst_103 = arith.constant dense<0.000000e+00> : vector<64x1xf32>
    %237 = tpu.matmul %235, %236, %cst_103 {dimension_numbers = #tpu.dot_dimension_numbers<[1], [0], [0], [1], [0, 0, 1, 1], [], []>} : vector<64x4xf32>, vector<4x1xf32>, vector<64x1xf32> -> vector<64x1xf32>
    %238 = arith.addf %229, %237 : vector<64x1xf32>
    %c0_104 = arith.constant 0 : index
    %c0_105 = arith.constant 0 : index
    %239 = vector.load %arg25[%c0_104, %c0_105] : memref<1x1xf32, #tpu.memory_space<vmem>>, vector<1x1xf32>
    %240 = vector.broadcast %239 : vector<1x1xf32> to vector<64x1xf32>
    %241 = arith.addf %238, %240 : vector<64x1xf32>
    %242 = arith.subf %1, %207 : vector<64x32xf32>
    %243 = arith.mulf %242, %242 : vector<64x32xf32>
    %cst_106 = arith.constant dense<0.000000e+00> : vector<64xf32>
    %244 = vector.multi_reduction <add>, %243, %cst_106 [1] : vector<64x32xf32> to vector<64xf32>
    %245 = vector.shape_cast %244 : vector<64xf32> to vector<64x1xf32>
    %246 = math.sqrt %245 : vector<64x1xf32>
    %247 = vector.shape_cast %246 : vector<64x1xf32> to vector<1x64x1xf32>
    %cst_107 = arith.constant dense<0.000000e+00> : vector<1xf32>
    %248 = vector.multi_reduction <add>, %247, %cst_107 [1, 2] : vector<1x64x1xf32> to vector<1xf32>
    %249 = vector.shape_cast %248 : vector<1xf32> to vector<1x1x1xf32>
    %250 = vector.extract %249[0, 0, 0] : f32 from vector<1x1x1xf32>
    %cst_108 = arith.constant 6.400000e+01 : f32
    %251 = arith.divf %250, %cst_108 : f32
    %c0_109 = arith.constant 0 : index
    %c0_110 = arith.constant 0 : index
    %252 = vector.load %arg6[%c0_109, %c0_110] : memref<6x32xf32, #tpu.memory_space<vmem>>, vector<6x32xf32>
    %cst_111 = arith.constant dense<0.000000e+00> : vector<64x32xf32>
    %253 = tpu.matmul %227, %252, %cst_111 {dimension_numbers = #tpu.dot_dimension_numbers<[1], [0], [0], [1], [0, 0, 1, 1], [], []>} : vector<64x6xf32>, vector<6x32xf32>, vector<64x32xf32> -> vector<64x32xf32>
    %cst_112 = arith.constant 9.99999997E-7 : f32
    %254 = vector.broadcast %cst_112 : f32 to vector<64x32xf32>
    %255 = arith.addf %253, %254 : vector<64x32xf32>
    %256 = math.log %255 : vector<64x32xf32>
    %257 = vector.broadcast %241 : vector<64x1xf32> to vector<64x32xf32>
    %258 = arith.addf %256, %257 : vector<64x32xf32>
    %c0_113 = arith.constant 0 : index
    %c0_114 = arith.constant 0 : index
    %259 = vector.load %arg7[%c0_113, %c0_114] : memref<64x32xf32, #tpu.memory_space<vmem>>, vector<64x32xf32>
    %260 = arith.addf %258, %259 : vector<64x32xf32>
    %c0_115 = arith.constant 0 : index
    %c0_116 = arith.constant 0 : index
    %261 = vector.load %arg5[%c0_115, %c0_116] : memref<64x1xf32, #tpu.memory_space<vmem>>, vector<64x1xf32>
    %262 = math.exp %260 : vector<64x32xf32>
    %263 = vector.broadcast %261 : vector<64x1xf32> to vector<64x32xf32>
    %264 = arith.mulf %263, %262 : vector<64x32xf32>
    %c0_117 = arith.constant 0 : index
    %c0_118 = arith.constant 0 : index
    %265 = vector.load %arg8[%c0_117, %c0_118] : memref<64x32xf32, #tpu.memory_space<vmem>>, vector<64x32xf32>
    %c0_119 = arith.constant 0 : index
    %c0_120 = arith.constant 0 : index
    %266 = vector.load %arg4[%c0_119, %c0_120] : memref<64x32xf32, #tpu.memory_space<vmem>>, vector<64x32xf32>
    %267 = arith.addf %266, %265 : vector<64x32xf32>
    %cst_121 = arith.constant 9.99999997E-7 : f32
    %268 = vector.broadcast %cst_121 : f32 to vector<64x32xf32>
    %269 = arith.addf %267, %268 : vector<64x32xf32>
    %cst_122 = arith.constant 8.000000e+00 : f32
    %270 = vector.broadcast %cst_122 : f32 to vector<64x32xf32>
    %271 = arith.addf %269, %270 : vector<64x32xf32>
    %cst_123 = arith.constant 1.000000e+00 : f32
    %272 = vector.broadcast %cst_123 : f32 to vector<64x32xf32>
    %273 = arith.addf %269, %272 : vector<64x32xf32>
    %274 = arith.mulf %269, %273 : vector<64x32xf32>
    %cst_124 = arith.constant 2.000000e+00 : f32
    %275 = vector.broadcast %cst_124 : f32 to vector<64x32xf32>
    %276 = arith.addf %269, %275 : vector<64x32xf32>
    %277 = arith.mulf %274, %276 : vector<64x32xf32>
    %cst_125 = arith.constant 3.000000e+00 : f32
    %278 = vector.broadcast %cst_125 : f32 to vector<64x32xf32>
    %279 = arith.addf %269, %278 : vector<64x32xf32>
    %280 = arith.mulf %277, %279 : vector<64x32xf32>
    %cst_126 = arith.constant 4.000000e+00 : f32
    %281 = vector.broadcast %cst_126 : f32 to vector<64x32xf32>
    %282 = arith.addf %269, %281 : vector<64x32xf32>
    %cst_127 = arith.constant 5.000000e+00 : f32
    %283 = vector.broadcast %cst_127 : f32 to vector<64x32xf32>
    %284 = arith.addf %269, %283 : vector<64x32xf32>
    %285 = arith.mulf %282, %284 : vector<64x32xf32>
    %cst_128 = arith.constant 6.000000e+00 : f32
    %286 = vector.broadcast %cst_128 : f32 to vector<64x32xf32>
    %287 = arith.addf %269, %286 : vector<64x32xf32>
    %288 = arith.mulf %285, %287 : vector<64x32xf32>
    %cst_129 = arith.constant 7.000000e+00 : f32
    %289 = vector.broadcast %cst_129 : f32 to vector<64x32xf32>
    %290 = arith.addf %269, %289 : vector<64x32xf32>
    %291 = arith.mulf %288, %290 : vector<64x32xf32>
    %292 = math.log %280 : vector<64x32xf32>
    %293 = math.log %291 : vector<64x32xf32>
    %294 = arith.addf %292, %293 : vector<64x32xf32>
    %cst_130 = arith.constant 1.000000e+00 : f32
    %295 = vector.broadcast %cst_130 : f32 to vector<64x32xf32>
    %296 = arith.divf %295, %271 : vector<64x32xf32>
    %297 = arith.mulf %296, %296 : vector<64x32xf32>
    %cst_131 = arith.constant -5.95238118E-4 : f32
    %298 = vector.broadcast %cst_131 : f32 to vector<64x32xf32>
    %299 = arith.mulf %297, %298 : vector<64x32xf32>
    %cst_132 = arith.constant 7.93650805E-4 : f32
    %300 = vector.broadcast %cst_132 : f32 to vector<64x32xf32>
    %301 = arith.addf %300, %299 : vector<64x32xf32>
    %302 = arith.mulf %297, %301 : vector<64x32xf32>
    %cst_133 = arith.constant -0.00277777785 : f32
    %303 = vector.broadcast %cst_133 : f32 to vector<64x32xf32>
    %304 = arith.addf %303, %302 : vector<64x32xf32>
    %305 = arith.mulf %297, %304 : vector<64x32xf32>
    %cst_134 = arith.constant 0.0833333358 : f32
    %306 = vector.broadcast %cst_134 : f32 to vector<64x32xf32>
    %307 = arith.addf %306, %305 : vector<64x32xf32>
    %308 = arith.mulf %296, %307 : vector<64x32xf32>
    %cst_135 = arith.constant 5.000000e-01 : f32
    %309 = vector.broadcast %cst_135 : f32 to vector<64x32xf32>
    %310 = arith.subf %271, %309 : vector<64x32xf32>
    %311 = math.log %271 : vector<64x32xf32>
    %312 = arith.mulf %310, %311 : vector<64x32xf32>
    %313 = arith.subf %312, %271 : vector<64x32xf32>
    %cst_136 = arith.constant 0.918938517 : f32
    %314 = vector.broadcast %cst_136 : f32 to vector<64x32xf32>
    %315 = arith.addf %313, %314 : vector<64x32xf32>
    %316 = arith.addf %315, %308 : vector<64x32xf32>
    %317 = arith.subf %316, %294 : vector<64x32xf32>
    %c0_137 = arith.constant 0 : index
    %c0_138 = arith.constant 0 : index
    %318 = vector.load %arg9[%c0_137, %c0_138] : memref<64x32xf32, #tpu.memory_space<vmem>>, vector<64x32xf32>
    %319 = arith.addf %317, %318 : vector<64x32xf32>
    %320 = arith.addf %265, %266 : vector<64x32xf32>
    %321 = arith.addf %265, %264 : vector<64x32xf32>
    %cst_139 = arith.constant 9.99999997E-7 : f32
    %322 = vector.broadcast %cst_139 : f32 to vector<64x32xf32>
    %323 = arith.addf %321, %322 : vector<64x32xf32>
    %324 = math.log %323 : vector<64x32xf32>
    %325 = arith.mulf %320, %324 : vector<64x32xf32>
    %326 = arith.subf %319, %325 : vector<64x32xf32>
    %cst_140 = arith.constant 9.99999997E-7 : f32
    %327 = vector.broadcast %cst_140 : f32 to vector<64x32xf32>
    %328 = arith.addf %264, %327 : vector<64x32xf32>
    %329 = math.log %328 : vector<64x32xf32>
    %330 = arith.mulf %266, %329 : vector<64x32xf32>
    %331 = arith.addf %326, %330 : vector<64x32xf32>
    %cst_141 = arith.constant dense<0.000000e+00> : vector<64xf32>
    %332 = vector.multi_reduction <add>, %331, %cst_141 [1] : vector<64x32xf32> to vector<64xf32>
    %333 = vector.shape_cast %332 : vector<64xf32> to vector<64x1xf32>
    %334 = vector.shape_cast %333 : vector<64x1xf32> to vector<1x64x1xf32>
    %cst_142 = arith.constant dense<0.000000e+00> : vector<1xf32>
    %335 = vector.multi_reduction <add>, %334, %cst_142 [1, 2] : vector<1x64x1xf32> to vector<1xf32>
    %336 = vector.shape_cast %335 : vector<1xf32> to vector<1x1x1xf32>
    %337 = vector.extract %336[0, 0, 0] : f32 from vector<1x1x1xf32>
    %cst_143 = arith.constant 6.400000e+01 : f32
    %338 = arith.divf %337, %cst_143 : f32
    %cst_144 = arith.constant 0.000000e+00 : f32
    %339 = arith.subf %cst_144, %338 : f32
    %cst_145 = arith.constant 1.000000e-01 : f32
    %340 = arith.mulf %cst_145, %251 : f32
    %341 = arith.addf %339, %340 : f32
    %342 = vector.broadcast %341 : f32 to vector<1x1xf32>
    %c0_146 = arith.constant 0 : index
    %c0_147 = arith.constant 0 : index
    %343 = vector.load %arg26[%c0_146, %c0_147] : memref<1x1xf32, #tpu.memory_space<vmem>>, vector<1x1xf32>
    tpu.vector_store %arg26[%c0_146, %c0_147], %342 {strides = array<i32>} : memref<1x1xf32, #tpu.memory_space<vmem>>, vector<1x1xf32>,
    return
  }
  func.func @transform_0(%arg0: i32) -> (i32, i32) {
    %c0_i32 = arith.constant 0 : i32
    %c0_i32_0 = arith.constant 0 : i32
    %c0_i32_1 = arith.constant 0 : i32
    return %c0_i32, %c0_i32_0 : i32, i32
  }
  func.func @transform_1(%arg0: i32) -> (i32, i32) {
    %c0_i32 = arith.constant 0 : i32
    %c0_i32_0 = arith.constant 0 : i32
    %c0_i32_1 = arith.constant 0 : i32
    return %c0_i32, %c0_i32_0 : i32, i32
  }
  func.func @transform_2(%arg0: i32) -> (i32, i32) {
    %c0_i32 = arith.constant 0 : i32
    %c0_i32_0 = arith.constant 0 : i32
    %c0_i32_1 = arith.constant 0 : i32
    return %c0_i32, %c0_i32_0 : i32, i32
  }
  func.func @transform_3(%arg0: i32) -> (i32, i32) {
    %c0_i32 = arith.constant 0 : i32
    %c0_i32_0 = arith.constant 0 : i32
    %c0_i32_1 = arith.constant 0 : i32
    return %c0_i32, %c0_i32_0 : i32, i32
  }
  func.func @transform_4(%arg0: i32) -> (i32, i32) {
    %c0_i32 = arith.constant 0 : i32
    %c0_i32_0 = arith.constant 0 : i32
    %c0_i32_1 = arith.constant 0 : i32
    return %c0_i32, %c0_i32_0 : i32, i32
  }
  func.func @transform_5(%arg0: i32) -> (i32, i32) {
    %c0_i32 = arith.constant 0 : i32
    %c0_i32_0 = arith.constant 0 : i32
    %c0_i32_1 = arith.constant 0 : i32
    return %c0_i32, %c0_i32_0 : i32, i32
  }
  func.func @transform_6(%arg0: i32) -> (i32, i32) {
    %c0_i32 = arith.constant 0 : i32
    %c0_i32_0 = arith.constant 0 : i32
    %c0_i32_1 = arith.constant 0 : i32
    return %c0_i32, %c0_i32_0 : i32, i32
  }
  func.func @transform_7(%arg0: i32) -> (i32, i32) {
    %c0_i32 = arith.constant 0 : i32
    %c0_i32_0 = arith.constant 0 : i32
    %c0_i32_1 = arith.constant 0 : i32
    return %c0_i32, %c0_i32_0 : i32, i32
  }
  func.func @transform_8(%arg0: i32) -> (i32, i32) {
    %c0_i32 = arith.constant 0 : i32
    %c0_i32_0 = arith.constant 0 : i32
    %c0_i32_1 = arith.constant 0 : i32
    return %c0_i32, %c0_i32_0 : i32, i32
  }
  func.func @transform_9(%arg0: i32) -> (i32, i32) {
    %c0_i32 = arith.constant 0 : i32
    %c0_i32_0 = arith.constant 0 : i32
    %c0_i32_1 = arith.constant 0 : i32
    return %c0_i32, %c0_i32_0 : i32, i32
  }
  func.func @transform_10(%arg0: i32) -> (i32, i32) {
    %c0_i32 = arith.constant 0 : i32
    %c0_i32_0 = arith.constant 0 : i32
    %c0_i32_1 = arith.constant 0 : i32
    return %c0_i32, %c0_i32_0 : i32, i32
  }
  func.func @transform_11(%arg0: i32) -> (i32, i32) {
    %c0_i32 = arith.constant 0 : i32
    %c0_i32_0 = arith.constant 0 : i32
    %c0_i32_1 = arith.constant 0 : i32
    return %c0_i32, %c0_i32_0 : i32, i32
  }
  func.func @transform_12(%arg0: i32) -> (i32, i32) {
    %c0_i32 = arith.constant 0 : i32
    %c0_i32_0 = arith.constant 0 : i32
    %c0_i32_1 = arith.constant 0 : i32
    return %c0_i32, %c0_i32_0 : i32, i32
  }
  func.func @transform_13(%arg0: i32) -> (i32, i32) {
    %c0_i32 = arith.constant 0 : i32
    %c0_i32_0 = arith.constant 0 : i32
    %c0_i32_1 = arith.constant 0 : i32
    return %c0_i32, %c0_i32_0 : i32, i32
  }
  func.func @transform_14(%arg0: i32) -> (i32, i32) {
    %c0_i32 = arith.constant 0 : i32
    %c0_i32_0 = arith.constant 0 : i32
    %c0_i32_1 = arith.constant 0 : i32
    return %c0_i32, %c0_i32_0 : i32, i32
  }
  func.func @transform_15(%arg0: i32) -> (i32, i32) {
    %c0_i32 = arith.constant 0 : i32
    %c0_i32_0 = arith.constant 0 : i32
    %c0_i32_1 = arith.constant 0 : i32
    return %c0_i32, %c0_i32_0 : i32, i32
  }
  func.func @transform_16(%arg0: i32) -> (i32, i32) {
    %c0_i32 = arith.constant 0 : i32
    %c0_i32_0 = arith.constant 0 : i32
    %c0_i32_1 = arith.constant 0 : i32
    return %c0_i32, %c0_i32_0 : i32, i32
  }
  func.func @transform_17(%arg0: i32) -> (i32, i32) {
    %c0_i32 = arith.constant 0 : i32
    %c0_i32_0 = arith.constant 0 : i32
    %c0_i32_1 = arith.constant 0 : i32
    return %c0_i32, %c0_i32_0 : i32, i32
  }
  func.func @transform_18(%arg0: i32) -> (i32, i32) {
    %c0_i32 = arith.constant 0 : i32
    %c0_i32_0 = arith.constant 0 : i32
    %c0_i32_1 = arith.constant 0 : i32
    return %c0_i32, %c0_i32_0 : i32, i32
  }
  func.func @transform_19(%arg0: i32) -> (i32, i32) {
    %c0_i32 = arith.constant 0 : i32
    %c0_i32_0 = arith.constant 0 : i32
    %c0_i32_1 = arith.constant 0 : i32
    return %c0_i32, %c0_i32_0 : i32, i32
  }
  func.func @transform_20(%arg0: i32) -> (i32, i32) {
    %c0_i32 = arith.constant 0 : i32
    %c0_i32_0 = arith.constant 0 : i32
    %c0_i32_1 = arith.constant 0 : i32
    return %c0_i32, %c0_i32_0 : i32, i32
  }
  func.func @transform_21(%arg0: i32) -> (i32, i32) {
    %c0_i32 = arith.constant 0 : i32
    %c0_i32_0 = arith.constant 0 : i32
    %c0_i32_1 = arith.constant 0 : i32
    return %c0_i32, %c0_i32_0 : i32, i32
  }
  func.func @transform_22(%arg0: i32) -> (i32, i32) {
    %c0_i32 = arith.constant 0 : i32
    %c0_i32_0 = arith.constant 0 : i32
    %c0_i32_1 = arith.constant 0 : i32
    return %c0_i32, %c0_i32_0 : i32, i32
  }
  func.func @transform_23(%arg0: i32) -> (i32, i32) {
    %c0_i32 = arith.constant 0 : i32
    %c0_i32_0 = arith.constant 0 : i32
    %c0_i32_1 = arith.constant 0 : i32
    return %c0_i32, %c0_i32_0 : i32, i32
  }
  func.func @transform_24(%arg0: i32) -> (i32, i32) {
    %c0_i32 = arith.constant 0 : i32
    %c0_i32_0 = arith.constant 0 : i32
    %c0_i32_1 = arith.constant 0 : i32
    return %c0_i32, %c0_i32_0 : i32, i32
  }
  func.func @transform_25(%arg0: i32) -> (i32, i32) {
    %c0_i32 = arith.constant 0 : i32
    %c0_i32_0 = arith.constant 0 : i32
    %c0_i32_1 = arith.constant 0 : i32
    return %c0_i32, %c0_i32_0 : i32, i32
  }
}

</mosaic_0001>

<llo_original>
// kernel: deconvnet_nb_forward.1
$region0: #{deconvnet_nb_forward.1}
  #allocation0 [shape = 'u32[]', space=smem, size = 0x4, offset = 0x4, fixed_abs, tag = 'smem constant byte address 0x4 - core index']
  #allocation1 [shape = 'u32[144,128]{1,0:T(1,128)}', space=vmem, size = 0x12000, scoped, tag = 'internal scratch']
  #allocation2 [shape = 'f32[1,1]{1,0:T(1,128)S(1)}', space=vmem, size = 0x200, scoped, tag = 'scoped memory for deconvnet_nb_forward.1']
  %s0 = inlined_call_operand.vmem [shape: f32[64,64], index: 0, kind: input, shape index: {}]
  %s1 = inlined_call_operand.vmem [shape: f32[64,32], index: 1, kind: input, shape index: {}]
  %s2 = inlined_call_operand.vmem [shape: f32[64,4], index: 2, kind: input, shape index: {}]
  %s3 = inlined_call_operand.vmem [shape: f32[64,32], index: 3, kind: input, shape index: {}]
  %s4 = inlined_call_operand.vmem [shape: f32[64,1], index: 4, kind: input, shape index: {}]
  %s5 = inlined_call_operand.vmem [shape: f32[6,32], index: 5, kind: input, shape index: {}]
  %s6 = inlined_call_operand.vmem [shape: f32[64,32], index: 6, kind: input, shape index: {}]
  %s7 = inlined_call_operand.vmem [shape: f32[64,32], index: 7, kind: input, shape index: {}]
  %s8 = inlined_call_operand.vmem [shape: f32[64,32], index: 8, kind: input, shape index: {}]
  %s9 = inlined_call_operand.vmem [shape: f32[32,16], index: 9, kind: input, shape index: {}]
  %s10 = inlined_call_operand.vmem [shape: f32[1,16], index: 10, kind: input, shape index: {}]
  %s11 = inlined_call_operand.vmem [shape: f32[16,4], index: 11, kind: input, shape index: {}]
  %s12 = inlined_call_operand.vmem [shape: f32[16,8], index: 12, kind: input, shape index: {}]
  %s13 = inlined_call_operand.vmem [shape: f32[1,8], index: 13, kind: input, shape index: {}]
  %s14 = inlined_call_operand.vmem [shape: f32[8,16], index: 14, kind: input, shape index: {}]
  %s15 = inlined_call_operand.vmem [shape: f32[4,16], index: 15, kind: input, shape index: {}]
  %s16 = inlined_call_operand.vmem [shape: f32[1,16], index: 16, kind: input, shape index: {}]
  %s17 = inlined_call_operand.vmem [shape: f32[16,4], index: 17, kind: input, shape index: {}]
  %s18 = inlined_call_operand.vmem [shape: f32[16,32], index: 18, kind: input, shape index: {}]
  %s19 = inlined_call_operand.vmem [shape: f32[1,32], index: 19, kind: input, shape index: {}]
  %s20 = inlined_call_operand.vmem [shape: f32[8,6], index: 20, kind: input, shape index: {}]
  %s21 = inlined_call_operand.vmem [shape: f32[1,6], index: 21, kind: input, shape index: {}]
  %s22 = inlined_call_operand.vmem [shape: f32[8,1], index: 22, kind: input, shape index: {}]
  %s23 = inlined_call_operand.vmem [shape: f32[4,1], index: 23, kind: input, shape index: {}]
  %s24 = inlined_call_operand.<no memory space> [shape: f32[1,1], index: 24, kind: input, shape index: {}]
  %s25 = inlined_call_operand.hbm [shape: f32[1,1], index: 25, kind: output, shape index: {}]
  %s26 = sld [smem:[#allocation0]]
  $region110: #{deconvnet_nb_forward.1} parent=0
    _
  %s28 = ssub.s32 1, %s26
  %s29 = scalar_select 0, %s28, %s26
  %v30 = vstv %s24
  %31 = vst [vmem:[#allocation2] sm:$0x1] %v30
  $region1: #{deconvnet_nb_forward.1} parent=0
    #allocation3 [shape = 'u8[512]{0}', space=vmem, size = 0x400, scoped, tag = 'output window, operand 0, single buffered']
    #allocation4 [shape = 's32[1]{0}', space=sflag, size = 0x4, scoped, tag = 'scoped memory for deconvnet_nb_forward.1']
    %32 = vsyncpa [#allocation4], 0
    // Predicated region
    $region2: #{deconvnet_nb_forward.1} parent=1 // pred_check
      _
    $region3: #{deconvnet_nb_forward.1} parent=1 // pred_check_branch
      %34 = sbr.rel (0) target = $region5
    $region4: #{deconvnet_nb_forward.1} parent=1 // pred_region
      _
    $region5: #{deconvnet_nb_forward.1} parent=1 // pred_fallthru
      _
    // Predicated region
    $region6: #{deconvnet_nb_forward.1} parent=1 // pred_check
      _
    $region7: #{deconvnet_nb_forward.1} parent=1 // pred_check_branch
      %36 = sbr.rel (0) target = $region9
    $region8: #{deconvnet_nb_forward.1} parent=1 // pred_region
      _
    $region9: #{deconvnet_nb_forward.1} parent=1 // pred_fallthru
      _
    // Predicated region
    $region10: #{deconvnet_nb_forward.1} parent=1 // pred_check
      _
    $region11: #{deconvnet_nb_forward.1} parent=1 // pred_check_branch
      %38 = sbr.rel (0) target = $region13
    $region12: #{deconvnet_nb_forward.1} parent=1 // pred_region
      _
    $region13: #{deconvnet_nb_forward.1} parent=1 // pred_fallthru
      _
    // Predicated region
    $region14: #{deconvnet_nb_forward.1} parent=1 // pred_check
      _
    $region15: #{deconvnet_nb_forward.1} parent=1 // pred_check_branch
      %40 = sbr.rel (0) target = $region17
    $region16: #{deconvnet_nb_forward.1} parent=1 // pred_region
      _
    $region17: #{deconvnet_nb_forward.1} parent=1 // pred_fallthru
      _
    // Predicated region
    $region18: #{deconvnet_nb_forward.1} parent=1 // pred_check
      _
    $region19: #{deconvnet_nb_forward.1} parent=1 // pred_check_branch
      %42 = sbr.rel (0) target = $region21
    $region20: #{deconvnet_nb_forward.1} parent=1 // pred_region
      _
    $region21: #{deconvnet_nb_forward.1} parent=1 // pred_fallthru
      _
    // Predicated region
    $region22: #{deconvnet_nb_forward.1} parent=1 // pred_check
      _
    $region23: #{deconvnet_nb_forward.1} parent=1 // pred_check_branch
      %44 = sbr.rel (0) target = $region25
    $region24: #{deconvnet_nb_forward.1} parent=1 // pred_region
      _
    $region25: #{deconvnet_nb_forward.1} parent=1 // pred_fallthru
      _
    // Predicated region
    $region26: #{deconvnet_nb_forward.1} parent=1 // pred_check
      _
    $region27: #{deconvnet_nb_forward.1} parent=1 // pred_check_branch
      %46 = sbr.rel (0) target = $region29
    $region28: #{deconvnet_nb_forward.1} parent=1 // pred_region
      _
    $region29: #{deconvnet_nb_forward.1} parent=1 // pred_fallthru
      _
    // Predicated region
    $region30: #{deconvnet_nb_forward.1} parent=1 // pred_check
      _
    $region31: #{deconvnet_nb_forward.1} parent=1 // pred_check_branch
      %48 = sbr.rel (0) target = $region33
    $region32: #{deconvnet_nb_forward.1} parent=1 // pred_region
      _
    $region33: #{deconvnet_nb_forward.1} parent=1 // pred_fallthru
      _
    // Predicated region
    $region34: #{deconvnet_nb_forward.1} parent=1 // pred_check
      _
    $region35: #{deconvnet_nb_forward.1} parent=1 // pred_check_branch
      %50 = sbr.rel (0) target = $region37
    $region36: #{deconvnet_nb_forward.1} parent=1 // pred_region
      _
    $region37: #{deconvnet_nb_forward.1} parent=1 // pred_fallthru
      _
    // Predicated region
    $region38: #{deconvnet_nb_forward.1} parent=1 // pred_check
      _
    $region39: #{deconvnet_nb_forward.1} parent=1 // pred_check_branch
      %52 = sbr.rel (0) target = $region41
    $region40: #{deconvnet_nb_forward.1} parent=1 // pred_region
      _
    $region41: #{deconvnet_nb_forward.1} parent=1 // pred_fallthru
      _
    // Predicated region
    $region42: #{deconvnet_nb_forward.1} parent=1 // pred_check
      _
    $region43: #{deconvnet_nb_forward.1} parent=1 // pred_check_branch
      %54 = sbr.rel (0) target = $region45
    $region44: #{deconvnet_nb_forward.1} parent=1 // pred_region
      _
    $region45: #{deconvnet_nb_forward.1} parent=1 // pred_fallthru
      _
    // Predicated region
    $region46: #{deconvnet_nb_forward.1} parent=1 // pred_check
      _
    $region47: #{deconvnet_nb_forward.1} parent=1 // pred_check_branch
      %56 = sbr.rel (0) target = $region49
    $region48: #{deconvnet_nb_forward.1} parent=1 // pred_region
      _
    $region49: #{deconvnet_nb_forward.1} parent=1 // pred_fallthru
      _
    // Predicated region
    $region50: #{deconvnet_nb_forward.1} parent=1 // pred_check
      _
    $region51: #{deconvnet_nb_forward.1} parent=1 // pred_check_branch
      %58 = sbr.rel (0) target = $region53
    $region52: #{deconvnet_nb_forward.1} parent=1 // pred_region
      _
    $region53: #{deconvnet_nb_forward.1} parent=1 // pred_fallthru
      _
    // Predicated region
    $region54: #{deconvnet_nb_forward.1} parent=1 // pred_check
      _
    $region55: #{deconvnet_nb_forward.1} parent=1 // pred_check_branch
      %60 = sbr.rel (0) target = $region57
    $region56: #{deconvnet_nb_forward.1} parent=1 // pred_region
      _
    $region57: #{deconvnet_nb_forward.1} parent=1 // pred_fallthru
      _
    // Predicated region
    $region58: #{deconvnet_nb_forward.1} parent=1 // pred_check
      _
    $region59: #{deconvnet_nb_forward.1} parent=1 // pred_check_branch
      %62 = sbr.rel (0) target = $region61
    $region60: #{deconvnet_nb_forward.1} parent=1 // pred_region
      _
    $region61: #{deconvnet_nb_forward.1} parent=1 // pred_fallthru
      _
    // Predicated region
    $region62: #{deconvnet_nb_forward.1} parent=1 // pred_check
      _
    $region63: #{deconvnet_nb_forward.1} parent=1 // pred_check_branch
      %64 = sbr.rel (0) target = $region65
    $region64: #{deconvnet_nb_forward.1} parent=1 // pred_region
      _
    $region65: #{deconvnet_nb_forward.1} parent=1 // pred_fallthru
      _
    // Predicated region
    $region66: #{deconvnet_nb_forward.1} parent=1 // pred_check
      _
    $region67: #{deconvnet_nb_forward.1} parent=1 // pred_check_branch
      %66 = sbr.rel (0) target = $region69
    $region68: #{deconvnet_nb_forward.1} parent=1 // pred_region
      _
    $region69: #{deconvnet_nb_forward.1} parent=1 // pred_fallthru
      _
    // Predicated region
    $region70: #{deconvnet_nb_forward.1} parent=1 // pred_check
      _
    $region71: #{deconvnet_nb_forward.1} parent=1 // pred_check_branch
      %68 = sbr.rel (0) target = $region73
    $region72: #{deconvnet_nb_forward.1} parent=1 // pred_region
      _
    $region73: #{deconvnet_nb_forward.1} parent=1 // pred_fallthru
      _
    // Predicated region
    $region74: #{deconvnet_nb_forward.1} parent=1 // pred_check
      _
    $region75: #{deconvnet_nb_forward.1} parent=1 // pred_check_branch
      %70 = sbr.rel (0) target = $region77
    $region76: #{deconvnet_nb_forward.1} parent=1 // pred_region
      _
    $region77: #{deconvnet_nb_forward.1} parent=1 // pred_fallthru
      _
    // Predicated region
    $region78: #{deconvnet_nb_forward.1} parent=1 // pred_check
      _
    $region79: #{deconvnet_nb_forward.1} parent=1 // pred_check_branch
      %72 = sbr.rel (0) target = $region81
    $region80: #{deconvnet_nb_forward.1} parent=1 // pred_region
      _
    $region81: #{deconvnet_nb_forward.1} parent=1 // pred_fallthru
      _
    // Predicated region
    $region82: #{deconvnet_nb_forward.1} parent=1 // pred_check
      _
    $region83: #{deconvnet_nb_forward.1} parent=1 // pred_check_branch
      %74 = sbr.rel (0) target = $region85
    $region84: #{deconvnet_nb_forward.1} parent=1 // pred_region
      _
    $region85: #{deconvnet_nb_forward.1} parent=1 // pred_fallthru
      _
    // Predicated region
    $region86: #{deconvnet_nb_forward.1} parent=1 // pred_check
      _
    $region87: #{deconvnet_nb_forward.1} parent=1 // pred_check_branch
      %76 = sbr.rel (0) target = $region89
    $region88: #{deconvnet_nb_forward.1} parent=1 // pred_region
      _
    $region89: #{deconvnet_nb_forward.1} parent=1 // pred_fallthru
      _
    // Predicated region
    $region90: #{deconvnet_nb_forward.1} parent=1 // pred_check
      _
    $region91: #{deconvnet_nb_forward.1} parent=1 // pred_check_branch
      %78 = sbr.rel (0) target = $region93
    $region92: #{deconvnet_nb_forward.1} parent=1 // pred_region
      _
    $region93: #{deconvnet_nb_forward.1} parent=1 // pred_fallthru
      _
    // Predicated region
    $region94: #{deconvnet_nb_forward.1} parent=1 // pred_check
      _
    $region95: #{deconvnet_nb_forward.1} parent=1 // pred_check_branch
      %80 = sbr.rel (0) target = $region97
    $region96: #{deconvnet_nb_forward.1} parent=1 // pred_region
      _
    $region97: #{deconvnet_nb_forward.1} parent=1 // pred_fallthru
      _
    // Predicated region
    $region98: #{deconvnet_nb_forward.1} parent=1 // pred_check
      _
    $region99: #{deconvnet_nb_forward.1} parent=1 // pred_check_branch
      %82 = sbr.rel (0) target = $region101
    $region100: #{deconvnet_nb_forward.1} parent=1 // pred_region
      _
    $region101: #{deconvnet_nb_forward.1} parent=1 // pred_fallthru
      _
    %v84 = vld [vmem:[%s0] sm:$0xff]
    %v85 = vld [vmem:[%s0 + $0x8] sm:$0xff]
    %v86 = vld [vmem:[%s0 + $0x10] sm:$0xff]
    %v87 = vld [vmem:[%s0 + $0x18] sm:$0xff]
    %v88 = vld [vmem:[%s0 + $0x20] sm:$0xff]
    %v89 = vld [vmem:[%s0 + $0x28] sm:$0xff]
    %v90 = vld [vmem:[%s0 + $0x30] sm:$0xff]
    %v91 = vld [vmem:[%s0 + $0x38] sm:$0xff]
    %v92 = vld [vmem:[%s1] sm:$0xff]
    %v93 = vld [vmem:[%s1 + $0x8] sm:$0xff]
    %v94 = vld [vmem:[%s1 + $0x10] sm:$0xff]
    %v95 = vld [vmem:[%s1 + $0x18] sm:$0xff]
    %v96 = vld [vmem:[%s1 + $0x20] sm:$0xff]
    %v97 = vld [vmem:[%s1 + $0x28] sm:$0xff]
    %v98 = vld [vmem:[%s1 + $0x30] sm:$0xff]
    %v99 = vld [vmem:[%s1 + $0x38] sm:$0xff]
    %v100 = vld [vmem:[%s2] sm:$0xff]
    %v101 = vld [vmem:[%s2 + $0x8] sm:$0xff]
    %v102 = vld [vmem:[%s2 + $0x10] sm:$0xff]
    %v103 = vld [vmem:[%s2 + $0x18] sm:$0xff]
    %v104 = vld [vmem:[%s2 + $0x20] sm:$0xff]
    %v105 = vld [vmem:[%s2 + $0x28] sm:$0xff]
    %v106 = vld [vmem:[%s2 + $0x30] sm:$0xff]
    %v107 = vld [vmem:[%s2 + $0x38] sm:$0xff]
    %v108 = vpack.c.bf16 %v93, %v92
    %v109 = vpack.c.bf16 %v95, %v94
    %v110 = vpack.c.bf16 %v97, %v96
    %v111 = vpack.c.bf16 %v99, %v98
    %v112 = vld [vmem:[%s9] sm:$0xff]
    %v113 = vld [vmem:[%s9 + $0x8] sm:$0xff]
    %v114 = vld [vmem:[%s9 + $0x10] sm:$0xff]
    %v115 = vld [vmem:[%s9 + $0x18] sm:$0xff]
    %v116 = vpack.c.bf16 %v113, %v112
    %v117 = vpack.c.bf16 %v115, %v114
    %v118 = vld [vmem:[%s10] sm:$0x1]
    %v120 = vlaneseq
    %v121 = vshrl.u32 %v120, 7
    %v122 = vsub.s32 0, %v121
    %v123 = vrot.slane %v118, %v122
    %vm125 = vcmask 261120
    %v127 = vsel %vm125, %v108, 0
    %v130 = vsel %vm125, %v109, 0
    %v133 = vsel %vm125, %v110, 0
    %v136 = vsel %vm125, %v111, 0
    %138 = vmatprep.subr.bf16.mxu0 0
    %139 = vmatpush1.bf16.msra.mxu0 %v116
    %140 = vmatprep.subr.bf16.mxu0 0
    %141 = vmatpush1.bf16.msra.mxu0 %v117
    %142 = vmatprep.subr.bf16.mxu0 0
    %143 = vmatpush1.bf16.msra.mxu0 0
    %144 = vmatprep.subr.bf16.mxu0 0
    %145 = vmatpush1.bf16.msra.mxu0 0
    %146 = vmatprep.subr.bf16.mxu0 0
    %147 = vmatpush1.bf16.msra.mxu0 0
    %148 = vmatprep.subr.bf16.mxu0 0
    %149 = vmatpush1.bf16.msra.mxu0 0
    %150 = vmatprep.subr.bf16.mxu0 0
    %151 = vmatpush1.bf16.msra.mxu0 0
    %152 = vmatprep.subr.bf16.mxu0 0
    %153 = vmatpush1.bf16.msra.mxu0 0
    %154 = vmatprep.subr.bf16.mxu0 0
    %155 = vmatpush1.bf16.msra.mxu0 0
    %156 = vmatprep.subr.bf16.mxu0 0
    %157 = vmatpush1.bf16.msra.mxu0 0
    %158 = vmatprep.subr.bf16.mxu0 0
    %159 = vmatpush1.bf16.msra.mxu0 0
    %160 = vmatprep.subr.bf16.mxu0 0
    %161 = vmatpush1.bf16.msra.mxu0 0
    %162 = vmatprep.subr.bf16.mxu0 0
    %163 = vmatpush1.bf16.msra.mxu0 0
    %164 = vmatprep.subr.bf16.mxu0 0
    %165 = vmatpush1.bf16.msra.mxu0 0
    %166 = vmatprep.subr.bf16.mxu0 0
    %167 = vmatpush1.bf16.msra.mxu0 0
    %168 = vmatprep.subr.bf16.mxu0 0
    %169 = vmatpush1.bf16.msra.mxu0 0
    %170 = vmatprep.mubr.bf16.mxu0 0
    %171 = vmatmul.mubr.bf16.gmra.mrb[0].mxu0 %v127
    %v172 = vpop.f32.mrb[0].mxu0
    %v173 = vadd.f32 %v123, %v172
    %v174 = vpop.f32.mrb[0].mxu0
    %v175 = vpop.f32.mrb[0].mxu0
    %v176 = vadd.f32 %v123, %v175
    %v177 = vpop.f32.mrb[0].mxu0
    %178 = vmatprep.mubr.bf16.mxu0 0
    %179 = vmatmul.mubr.bf16.gmra.mrb[0].mxu0 %v130
    %v180 = vpop.f32.mrb[0].mxu0
    %v181 = vadd.f32 %v123, %v180
    %v182 = vpop.f32.mrb[0].mxu0
    %v183 = vpop.f32.mrb[0].mxu0
    %v184 = vadd.f32 %v123, %v183
    %v185 = vpop.f32.mrb[0].mxu0
    %186 = vmatprep.mubr.bf16.mxu0 0
    %187 = vmatmul.mubr.bf16.gmra.mrb[0].mxu0 %v133
    %v188 = vpop.f32.mrb[0].mxu0
    %v189 = vadd.f32 %v123, %v188
    %v190 = vpop.f32.mrb[0].mxu0
    %v191 = vpop.f32.mrb[0].mxu0
    %v192 = vadd.f32 %v123, %v191
    %v193 = vpop.f32.mrb[0].mxu0
    %194 = vmatprep.mubr.bf16.mxu0 0
    %195 = vmatmul.mubr.bf16.gmra.mrb[0].mxu0 %v136
    %v196 = vpop.f32.mrb[0].mxu0
    %v197 = vadd.f32 %v123, %v196
    %v198 = vpop.f32.mrb[0].mxu0
    %v199 = vpop.f32.mrb[0].mxu0
    %v200 = vadd.f32 %v123, %v199
    %v201 = vpop.f32.mrb[0].mxu0
    %202 = vdwg.mxu0
    %v203 = vld [vmem:[%s11] sm:$0xff]
    %v204 = vld [vmem:[%s11 + $0x8] sm:$0xff]
    %vm205 = vcmask 130048
    %v207 = vsel %vm205, %v173, 0
    %v210 = vsel %vm205, %v176, 0
    %v213 = vsel %vm205, %v181, 0
    %v216 = vsel %vm205, %v184, 0
    %v219 = vsel %vm205, %v189, 0
    %v222 = vsel %vm205, %v192, 0
    %v225 = vsel %vm205, %v197, 0
    %v228 = vsel %vm205, %v200, 0
    %230 = vmatprep.subr.mxu0 0.0
    %231 = vmatpush1.msra.mxu0 %v203
    %232 = vmatprep.subr.mxu0 0.0
    %233 = vmatpush1.msra.mxu0 %v204
    %234 = vmatprep.subr.mxu0 0.0
    %235 = vmatpush1.msra.mxu0 0.0
    %236 = vmatprep.subr.mxu0 0.0
    %237 = vmatpush1.msra.mxu0 0.0
    %238 = vmatprep.subr.mxu0 0.0
    %239 = vmatpush1.msra.mxu0 0.0
    %240 = vmatprep.subr.mxu0 0.0
    %241 = vmatpush1.msra.mxu0 0.0
    %242 = vmatprep.subr.mxu0 0.0
    %243 = vmatpush1.msra.mxu0 0.0
    %244 = vmatprep.subr.mxu0 0.0
    %245 = vmatpush1.msra.mxu0 0.0
    %246 = vmatprep.subr.mxu0 0.0
    %247 = vmatpush1.msra.mxu0 0.0
    %248 = vmatprep.subr.mxu0 0.0
    %249 = vmatpush1.msra.mxu0 0.0
    %250 = vmatprep.subr.mxu0 0.0
    %251 = vmatpush1.msra.mxu0 0.0
    %252 = vmatprep.subr.mxu0 0.0
    %253 = vmatpush1.msra.mxu0 0.0
    %254 = vmatprep.subr.mxu0 0.0
    %255 = vmatpush1.msra.mxu0 0.0
    %256 = vmatprep.subr.mxu0 0.0
    %257 = vmatpush1.msra.mxu0 0.0
    %258 = vmatprep.subr.mxu0 0.0
    %259 = vmatpush1.msra.mxu0 0.0
    %260 = vmatprep.subr.mxu0 0.0
    %261 = vmatpush1.msra.mxu0 0.0
    %262 = vmatprep.subr.mxu0 0.0
    %263 = vmatpush1.msra.mxu0 0.0
    %264 = vmatprep.subr.mxu0 0.0
    %265 = vmatpush1.msra.mxu0 0.0
    %266 = vmatprep.subr.mxu0 0.0
    %267 = vmatpush1.msra.mxu0 0.0
    %268 = vmatprep.subr.mxu0 0.0
    %269 = vmatpush1.msra.mxu0 0.0
    %270 = vmatprep.subr.mxu0 0.0
    %271 = vmatpush1.msra.mxu0 0.0
    %272 = vmatprep.subr.mxu0 0.0
    %273 = vmatpush1.msra.mxu0 0.0
    %274 = vmatprep.subr.mxu0 0.0
    %275 = vmatpush1.msra.mxu0 0.0
    %276 = vmatprep.subr.mxu0 0.0
    %277 = vmatpush1.msra.mxu0 0.0
    %278 = vmatprep.subr.mxu0 0.0
    %279 = vmatpush1.msra.mxu0 0.0
    %280 = vmatprep.subr.mxu0 0.0
    %281 = vmatpush1.msra.mxu0 0.0
    %282 = vmatprep.subr.mxu0 0.0
    %283 = vmatpush1.msra.mxu0 0.0
    %284 = vmatprep.subr.mxu0 0.0
    %285 = vmatpush1.msra.mxu0 0.0
    %286 = vmatprep.subr.mxu0 0.0
    %287 = vmatpush1.msra.mxu0 0.0
    %288 = vmatprep.subr.mxu0 0.0
    %289 = vmatpush1.msra.mxu0 0.0
    %290 = vmatprep.subr.mxu0 0.0
    %291 = vmatpush1.msra.mxu0 0.0
    %292 = vmatprep.subr.mxu0 0.0
    %293 = vmatpush1.msra.mxu0 0.0
    %294 = vmatprep.mubr.f32.mxu0 0.0
    %295 = vmatmul.mubr.f32.gmra.mrb[0].mxu0 %v207
    %v296 = vpop.f32.mrb[0].mxu0
    %v297 = vadd.f32 0.0, %v296
    %v298 = vpop.f32.mrb[0].mxu0
    %299 = vmatprep.mubr.f32.mxu0 0.0
    %300 = vmatmul.mubr.f32.gmra.mrb[0].mxu0 %v210
    %v301 = vpop.f32.mrb[0].mxu0
    %v302 = vadd.f32 0.0, %v301
    %v303 = vpop.f32.mrb[0].mxu0
    %304 = vmatprep.mubr.f32.mxu0 0.0
    %305 = vmatmul.mubr.f32.gmra.mrb[0].mxu0 %v213
    %v306 = vpop.f32.mrb[0].mxu0
    %v307 = vadd.f32 0.0, %v306
    %v308 = vpop.f32.mrb[0].mxu0
    %309 = vmatprep.mubr.f32.mxu0 0.0
    %310 = vmatmul.mubr.f32.gmra.mrb[0].mxu0 %v216
    %v311 = vpop.f32.mrb[0].mxu0
    %v312 = vadd.f32 0.0, %v311
    %v313 = vpop.f32.mrb[0].mxu0
    %314 = vmatprep.mubr.f32.mxu0 0.0
    %315 = vmatmul.mubr.f32.gmra.mrb[0].mxu0 %v219
    %v316 = vpop.f32.mrb[0].mxu0
    %v317 = vadd.f32 0.0, %v316
    %v318 = vpop.f32.mrb[0].mxu0
    %319 = vmatprep.mubr.f32.mxu0 0.0
    %320 = vmatmul.mubr.f32.gmra.mrb[0].mxu0 %v222
    %v321 = vpop.f32.mrb[0].mxu0
    %v322 = vadd.f32 0.0, %v321
    %v323 = vpop.f32.mrb[0].mxu0
    %324 = vmatprep.mubr.f32.mxu0 0.0
    %325 = vmatmul.mubr.f32.gmra.mrb[0].mxu0 %v225
    %v326 = vpop.f32.mrb[0].mxu0
    %v327 = vadd.f32 0.0, %v326
    %v328 = vpop.f32.mrb[0].mxu0
    %329 = vmatprep.mubr.f32.mxu0 0.0
    %330 = vmatmul.mubr.f32.gmra.mrb[0].mxu0 %v228
    %v331 = vpop.f32.mrb[0].mxu0
    %v332 = vadd.f32 0.0, %v331
    %v333 = vpop.f32.mrb[0].mxu0
    %334 = vdwg.mxu0
    %v335 = vld [vmem:[%s13] sm:$0x1]
    %v336 = vld [vmem:[%s12] sm:$0xff]
    %v337 = vld [vmem:[%s12 + $0x8] sm:$0xff]
    %346 = vrot.lane.b32.xlu0 %v297, 126
    %v347 = vpop.permute.xlu0 %346
    %348 = vrot.lane.b32.xlu0 %v302, 126
    %v349 = vpop.permute.xlu0 %348
    %350 = vrot.lane.b32.xlu0 %v307, 126
    %v351 = vpop.permute.xlu0 %350
    %352 = vrot.lane.b32.xlu0 %v312, 126
    %v353 = vpop.permute.xlu0 %352
    %354 = vrot.lane.b32.xlu0 %v317, 126
    %v355 = vpop.permute.xlu0 %354
    %356 = vrot.lane.b32.xlu0 %v322, 126
    %v357 = vpop.permute.xlu0 %356
    %358 = vrot.lane.b32.xlu0 %v327, 126
    %v359 = vpop.permute.xlu0 %358
    %360 = vrot.lane.b32.xlu0 %v332, 126
    %v361 = vpop.permute.xlu0 %360
    %370 = vxpose.xlu0.b32.start [1/16] %v347, 128
    %371 = vxpose.xlu0.b32.cont [2/16] %v349, 128
    %372 = vxpose.xlu0.b32.cont [3/16] %v351, 128
    %373 = vxpose.xlu0.b32.cont [4/16] %v353, 128
    %374 = vxpose.xlu0.b32.cont [5/16] %v355, 128
    %375 = vxpose.xlu0.b32.cont [6/16] %v357, 128
    %376 = vxpose.xlu0.b32.cont [7/16] %v359, 128
    %377 = vxpose.xlu0.b32.cont [8/16] %v361, 128
    %378 = vxpose.xlu0.b32.cont [9/16] 0.0, 128
    %379 = vxpose.xlu0.b32.cont [10/16] 0.0, 128
    %380 = vxpose.xlu0.b32.cont [11/16] 0.0, 128
    %381 = vxpose.xlu0.b32.cont [12/16] 0.0, 128
    %382 = vxpose.xlu0.b32.cont [13/16] 0.0, 128
    %383 = vxpose.xlu0.b32.cont [14/16] 0.0, 128
    %384 = vxpose.xlu0.b32.cont [15/16] 0.0, 128
    %385 = vxpose.xlu0.b32.end [16/16] 0.0, 128
    %v386 = vpop.trf.xlu0
    %v387 = vpop.trf.xlu0
    %v388 = vpop.trf.xlu0
    %v389 = vpop.trf.xlu0
    %v390 = vpop.trf.xlu0
    %v391 = vpop.trf.xlu0
    %v392 = vpop.trf.xlu0
    %v393 = vpop.trf.xlu0
    %v394 = vpop.trf.xlu0
    %v395 = vpop.trf.xlu0
    %v396 = vpop.trf.xlu0
    %v397 = vpop.trf.xlu0
    %v398 = vpop.trf.xlu0
    %v399 = vpop.trf.xlu0
    %v400 = vpop.trf.xlu0
    %v401 = vpop.trf.xlu0
    %402 = vset.pattern.permute.xlu0 0
    %403 = vperm.xlu0 %402, %v297
    %v404 = vpop.permute.xlu0 %403
    %406 = vset.pattern.permute.xlu0 0
    %407 = vperm.xlu0 %406, %v302
    %v408 = vpop.permute.xlu0 %407
    %410 = vset.pattern.permute.xlu0 0
    %411 = vperm.xlu0 %410, %v307
    %v412 = vpop.permute.xlu0 %411
    %414 = vset.pattern.permute.xlu0 0
    %415 = vperm.xlu0 %414, %v312
    %v416 = vpop.permute.xlu0 %415
    %418 = vset.pattern.permute.xlu0 0
    %419 = vperm.xlu0 %418, %v317
    %v420 = vpop.permute.xlu0 %419
    %422 = vset.pattern.permute.xlu0 0
    %423 = vperm.xlu0 %422, %v322
    %v424 = vpop.permute.xlu0 %423
    %426 = vset.pattern.permute.xlu0 0
    %427 = vperm.xlu0 %426, %v327
    %v428 = vpop.permute.xlu0 %427
    %430 = vset.pattern.permute.xlu0 0
    %431 = vperm.xlu0 %430, %v332
    %v432 = vpop.permute.xlu0 %431
    %v434 = vlaneseq
    %v435 = vshrl.u32 %v434, 7
    %v436 = vsub.s32 0, %v435
    %v437 = vrot.slane %v386, %v436
    %v438 = vadd.f32 %v404, %v437
    %v439 = vadd.f32 %v408, %v437
    %v440 = vadd.f32 %v412, %v437
    %v441 = vadd.f32 %v416, %v437
    %v442 = vadd.f32 %v420, %v437
    %v443 = vadd.f32 %v424, %v437
    %v444 = vadd.f32 %v428, %v437
    %v445 = vadd.f32 %v432, %v437
    %v446 = vmul.f32 %v84, %v438
    %v447 = vmul.f32 %v85, %v439
    %v448 = vmul.f32 %v86, %v440
    %v449 = vmul.f32 %v87, %v441
    %v450 = vmul.f32 %v88, %v442
    %v451 = vmul.f32 %v89, %v443
    %v452 = vmul.f32 %v90, %v444
    %v453 = vmul.f32 %v91, %v445
    %vm454 = vcmp.ne.f32.partialorder %v446, 0.0
    %vm455 = vcmp.ne.f32.partialorder %v447, 0.0
    %vm456 = vcmp.ne.f32.partialorder %v448, 0.0
    %vm457 = vcmp.ne.f32.partialorder %v449, 0.0
    %vm458 = vcmp.ne.f32.partialorder %v450, 0.0
    %vm459 = vcmp.ne.f32.partialorder %v451, 0.0
    %vm460 = vcmp.ne.f32.partialorder %v452, 0.0
    %vm461 = vcmp.ne.f32.partialorder %v453, 0.0
    %v462 = vsub.f32 0.0, %v446
    %v463 = vsub.f32 0.0, %v447
    %v464 = vsub.f32 0.0, %v448
    %v465 = vsub.f32 0.0, %v449
    %v466 = vsub.f32 0.0, %v450
    %v467 = vsub.f32 0.0, %v451
    %v468 = vsub.f32 0.0, %v452
    %v469 = vsub.f32 0.0, %v453
    %v470 = vmul.f32 %v462, 1.442695
    %v471 = vpow.pop %v470
    %v472 = vmul.f32 %v463, 1.442695
    %v473 = vpow.pop %v472
    %v474 = vmul.f32 %v464, 1.442695
    %v475 = vpow.pop %v474
    %v476 = vmul.f32 %v465, 1.442695
    %v477 = vpow.pop %v476
    %v478 = vmul.f32 %v466, 1.442695
    %v479 = vpow.pop %v478
    %v480 = vmul.f32 %v467, 1.442695
    %v481 = vpow.pop %v480
    %v482 = vmul.f32 %v468, 1.442695
    %v483 = vpow.pop %v482
    %v484 = vmul.f32 %v469, 1.442695
    %v485 = vpow.pop %v484
    %v486 = vadd.f32 %v471, 1.0
    %v487 = vadd.f32 %v473, 1.0
    %v488 = vadd.f32 %v475, 1.0
    %v489 = vadd.f32 %v477, 1.0
    %v490 = vadd.f32 %v479, 1.0
    %v491 = vadd.f32 %v481, 1.0
    %v492 = vadd.f32 %v483, 1.0
    %v493 = vadd.f32 %v485, 1.0
    %v494 = vrcp.pop %v486
    %v495 = vmul.f32 1.0, %v494
    %v496 = vrcp.pop %v487
    %v497 = vmul.f32 1.0, %v496
    %v498 = vrcp.pop %v488
    %v499 = vmul.f32 1.0, %v498
    %v500 = vrcp.pop %v489
    %v501 = vmul.f32 1.0, %v500
    %v502 = vrcp.pop %v490
    %v503 = vmul.f32 1.0, %v502
    %v504 = vrcp.pop %v491
    %v505 = vmul.f32 1.0, %v504
    %v506 = vrcp.pop %v492
    %v507 = vmul.f32 1.0, %v506
    %v508 = vrcp.pop %v493
    %v509 = vmul.f32 1.0, %v508
    %v510 = vsub.f32 %v495, 0.5
    %v511 = vsub.f32 %v497, 0.5
    %v512 = vsub.f32 %v499, 0.5
    %v513 = vsub.f32 %v501, 0.5
    %v514 = vsub.f32 %v503, 0.5
    %v515 = vsub.f32 %v505, 0.5
    %v516 = vsub.f32 %v507, 0.5
    %v517 = vsub.f32 %v509, 0.5
    %v518 = vmul.f32 %v510, 1.442695
    %v519 = vpow.pop %v518
    %v520 = vmul.f32 %v511, 1.442695
    %v521 = vpow.pop %v520
    %v522 = vmul.f32 %v512, 1.442695
    %v523 = vpow.pop %v522
    %v524 = vmul.f32 %v513, 1.442695
    %v525 = vpow.pop %v524
    %v526 = vmul.f32 %v514, 1.442695
    %v527 = vpow.pop %v526
    %v528 = vmul.f32 %v515, 1.442695
    %v529 = vpow.pop %v528
    %v530 = vmul.f32 %v516, 1.442695
    %v531 = vpow.pop %v530
    %v532 = vmul.f32 %v517, 1.442695
    %v533 = vpow.pop %v532
    %v534 = vsel %vm454, %v519, 0.0
    %v535 = vsel %vm455, %v521, 0.0
    %v536 = vsel %vm456, %v523, 0.0
    %v537 = vsel %vm457, %v525, 0.0
    %v538 = vsel %vm458, %v527, 0.0
    %v539 = vsel %vm459, %v529, 0.0
    %v540 = vsel %vm460, %v531, 0.0
    %v541 = vsel %vm461, %v533, 0.0
    %vm542 = vcmask 523264
    %v543 = vsel %vm542, %v534, 0.0
    %544 = vadd.xlane.f32.xlu0 %v543
    %v545 = vpop.xlane.xlu0 %544
    %v546 = vsel %vm542, %v535, 0.0
    %547 = vadd.xlane.f32.xlu0 %v546
    %v548 = vpop.xlane.xlu0 %547
    %v549 = vsel %vm542, %v536, 0.0
    %550 = vadd.xlane.f32.xlu0 %v549
    %v551 = vpop.xlane.xlu0 %550
    %v552 = vsel %vm542, %v537, 0.0
    %553 = vadd.xlane.f32.xlu0 %v552
    %v554 = vpop.xlane.xlu0 %553
    %v555 = vsel %vm542, %v538, 0.0
    %556 = vadd.xlane.f32.xlu0 %v555
    %v557 = vpop.xlane.xlu0 %556
    %v558 = vsel %vm542, %v539, 0.0
    %559 = vadd.xlane.f32.xlu0 %v558
    %v560 = vpop.xlane.xlu0 %559
    %v561 = vsel %vm542, %v540, 0.0
    %562 = vadd.xlane.f32.xlu0 %v561
    %v563 = vpop.xlane.xlu0 %562
    %v564 = vsel %vm542, %v541, 0.0
    %565 = vadd.xlane.f32.xlu0 %v564
    %v566 = vpop.xlane.xlu0 %565
    %vm567 = vcmp.gt.f32.partialorder %v545, 0.0
    %vm568 = vcmp.gt.f32.partialorder %v548, 0.0
    %vm569 = vcmp.gt.f32.partialorder %v551, 0.0
    %vm570 = vcmp.gt.f32.partialorder %v554, 0.0
    %vm571 = vcmp.gt.f32.partialorder %v557, 0.0
    %vm572 = vcmp.gt.f32.partialorder %v560, 0.0
    %vm573 = vcmp.gt.f32.partialorder %v563, 0.0
    %vm574 = vcmp.gt.f32.partialorder %v566, 0.0
    %v575 = vsel %vm567, %v545, 1.0
    %v576 = vsel %vm568, %v548, 1.0
    %v577 = vsel %vm569, %v551, 1.0
    %v578 = vsel %vm570, %v554, 1.0
    %v579 = vsel %vm571, %v557, 1.0
    %v580 = vsel %vm572, %v560, 1.0
    %v581 = vsel %vm573, %v563, 1.0
    %v582 = vsel %vm574, %v566, 1.0
    %v583 = vrcp.pop %v575
    %v584 = vrcp.pop %v576
    %v585 = vrcp.pop %v577
    %v586 = vrcp.pop %v578
    %v587 = vrcp.pop %v579
    %v588 = vrcp.pop %v580
    %v589 = vrcp.pop %v581
    %v590 = vrcp.pop %v582
    %v591 = vmul.f32 %v534, %v583
    %v592 = vmul.f32 %v535, %v584
    %v593 = vmul.f32 %v536, %v585
    %v594 = vmul.f32 %v537, %v586
    %v595 = vmul.f32 %v538, %v587
    %v596 = vmul.f32 %v539, %v588
    %v597 = vmul.f32 %v540, %v589
    %v598 = vmul.f32 %v541, %v590
    %v599 = vpack.c.bf16 %v592, %v591
    %v600 = vpack.c.bf16 %v594, %v593
    %v601 = vpack.c.bf16 %v596, %v595
    %v602 = vpack.c.bf16 %v598, %v597
    %v603 = vpack.c.bf16 %v176, %v173
    %v604 = vpack.c.bf16 %v184, %v181
    %v605 = vpack.c.bf16 %v192, %v189
    %v606 = vpack.c.bf16 %v200, %v197
    %v608 = vsel %vm542, %v599, 0
    %v611 = vsel %vm542, %v600, 0
    %v614 = vsel %vm542, %v601, 0
    %v617 = vsel %vm542, %v602, 0
    %619 = vmatprep.subr.bf16.mxu0 0
    %620 = vmatpush1.bf16.msra.mxu0 %v603
    %621 = vmatprep.subr.bf16.mxu0 0
    %622 = vmatpush1.bf16.msra.mxu0 %v604
    %623 = vmatprep.subr.bf16.mxu0 0
    %624 = vmatpush1.bf16.msra.mxu0 %v605
    %625 = vmatprep.subr.bf16.mxu0 0
    %626 = vmatpush1.bf16.msra.mxu0 %v606
    %627 = vmatprep.subr.bf16.mxu0 0
    %628 = vmatpush1.bf16.msra.mxu0 0
    %629 = vmatprep.subr.bf16.mxu0 0
    %630 = vmatpush1.bf16.msra.mxu0 0
    %631 = vmatprep.subr.bf16.mxu0 0
    %632 = vmatpush1.bf16.msra.mxu0 0
    %633 = vmatprep.subr.bf16.mxu0 0
    %634 = vmatpush1.bf16.msra.mxu0 0
    %635 = vmatprep.subr.bf16.mxu0 0
    %636 = vmatpush1.bf16.msra.mxu0 0
    %637 = vmatprep.subr.bf16.mxu0 0
    %638 = vmatpush1.bf16.msra.mxu0 0
    %639 = vmatprep.subr.bf16.mxu0 0
    %640 = vmatpush1.bf16.msra.mxu0 0
    %641 = vmatprep.subr.bf16.mxu0 0
    %642 = vmatpush1.bf16.msra.mxu0 0
    %643 = vmatprep.subr.bf16.mxu0 0
    %644 = vmatpush1.bf16.msra.mxu0 0
    %645 = vmatprep.subr.bf16.mxu0 0
    %646 = vmatpush1.bf16.msra.mxu0 0
    %647 = vmatprep.subr.bf16.mxu0 0
    %648 = vmatpush1.bf16.msra.mxu0 0
    %649 = vmatprep.subr.bf16.mxu0 0
    %650 = vmatpush1.bf16.msra.mxu0 0
    %651 = vmatprep.mubr.bf16.mxu0 0
    %652 = vmatmul.mubr.bf16.gmra.mrb[0].mxu0 %v608
    %v653 = vpop.f32.mrb[0].mxu0
    %v654 = vadd.f32 0.0, %v653
    %v655 = vpop.f32.mrb[0].mxu0
    %v656 = vpop.f32.mrb[0].mxu0
    %v657 = vadd.f32 0.0, %v656
    %v658 = vpop.f32.mrb[0].mxu0
    %659 = vmatprep.mubr.bf16.mxu0 0
    %660 = vmatmul.mubr.bf16.gmra.mrb[0].mxu0 %v611
    %v661 = vpop.f32.mrb[0].mxu0
    %v662 = vadd.f32 0.0, %v661
    %v663 = vpop.f32.mrb[0].mxu0
    %v664 = vpop.f32.mrb[0].mxu0
    %v665 = vadd.f32 0.0, %v664
    %v666 = vpop.f32.mrb[0].mxu0
    %667 = vmatprep.mubr.bf16.mxu0 0
    %668 = vmatmul.mubr.bf16.gmra.mrb[0].mxu0 %v614
    %v669 = vpop.f32.mrb[0].mxu0
    %v670 = vadd.f32 0.0, %v669
    %v671 = vpop.f32.mrb[0].mxu0
    %v672 = vpop.f32.mrb[0].mxu0
    %v673 = vadd.f32 0.0, %v672
    %v674 = vpop.f32.mrb[0].mxu0
    %675 = vmatprep.mubr.bf16.mxu0 0
    %676 = vmatmul.mubr.bf16.gmra.mrb[0].mxu0 %v617
    %v677 = vpop.f32.mrb[0].mxu0
    %v678 = vadd.f32 0.0, %v677
    %v679 = vpop.f32.mrb[0].mxu0
    %v680 = vpop.f32.mrb[0].mxu0
    %v681 = vadd.f32 0.0, %v680
    %v682 = vpop.f32.mrb[0].mxu0
    %683 = vdwg.mxu0
    %vm684 = vcmp.gt.f32.partialorder %v654, 0.0
    %vm685 = vcmp.gt.f32.partialorder %v657, 0.0
    %vm686 = vcmp.gt.f32.partialorder %v662, 0.0
    %vm687 = vcmp.gt.f32.partialorder %v665, 0.0
    %vm688 = vcmp.gt.f32.partialorder %v670, 0.0
    %vm689 = vcmp.gt.f32.partialorder %v673, 0.0
    %vm690 = vcmp.gt.f32.partialorder %v678, 0.0
    %vm691 = vcmp.gt.f32.partialorder %v681, 0.0
    %v692 = vmul.f32 %v654, 1.442695
    %v693 = vpow.pop %v692
    %v694 = vmul.f32 %v657, 1.442695
    %v695 = vpow.pop %v694
    %v696 = vmul.f32 %v662, 1.442695
    %v697 = vpow.pop %v696
    %v698 = vmul.f32 %v665, 1.442695
    %v699 = vpow.pop %v698
    %v700 = vmul.f32 %v670, 1.442695
    %v701 = vpow.pop %v700
    %v702 = vmul.f32 %v673, 1.442695
    %v703 = vpow.pop %v702
    %v704 = vmul.f32 %v678, 1.442695
    %v705 = vpow.pop %v704
    %v706 = vmul.f32 %v681, 1.442695
    %v707 = vpow.pop %v706
    %v708 = vsub.f32 %v693, 1.0
    %v709 = vsub.f32 %v695, 1.0
    %v710 = vsub.f32 %v697, 1.0
    %v711 = vsub.f32 %v699, 1.0
    %v712 = vsub.f32 %v701, 1.0
    %v713 = vsub.f32 %v703, 1.0
    %v714 = vsub.f32 %v705, 1.0
    %v715 = vsub.f32 %v707, 1.0
    %v716 = vsel %vm684, %v654, %v708
    %v717 = vsel %vm685, %v657, %v709
    %v718 = vsel %vm686, %v662, %v710
    %v719 = vsel %vm687, %v665, %v711
    %v720 = vsel %vm688, %v670, %v712
    %v721 = vsel %vm689, %v673, %v713
    %v722 = vsel %vm690, %v678, %v714
    %v723 = vsel %vm691, %v681, %v715
    %724 = vrot.lane.b32.xlu0 %v297, 125
    %v725 = vpop.permute.xlu0 %724
    %726 = vrot.lane.b32.xlu0 %v302, 125
    %v727 = vpop.permute.xlu0 %726
    %728 = vrot.lane.b32.xlu0 %v307, 125
    %v729 = vpop.permute.xlu0 %728
    %730 = vrot.lane.b32.xlu0 %v312, 125
    %v731 = vpop.permute.xlu0 %730
    %732 = vrot.lane.b32.xlu0 %v317, 125
    %v733 = vpop.permute.xlu0 %732
    %734 = vrot.lane.b32.xlu0 %v322, 125
    %v735 = vpop.permute.xlu0 %734
    %736 = vrot.lane.b32.xlu0 %v327, 125
    %v737 = vpop.permute.xlu0 %736
    %738 = vrot.lane.b32.xlu0 %v332, 125
    %v739 = vpop.permute.xlu0 %738
    %748 = vxpose.xlu0.b32.start [1/16] %v725, 128
    %749 = vxpose.xlu0.b32.cont [2/16] %v727, 128
    %750 = vxpose.xlu0.b32.cont [3/16] %v729, 128
    %751 = vxpose.xlu0.b32.cont [4/16] %v731, 128
    %752 = vxpose.xlu0.b32.cont [5/16] %v733, 128
    %753 = vxpose.xlu0.b32.cont [6/16] %v735, 128
    %754 = vxpose.xlu0.b32.cont [7/16] %v737, 128
    %755 = vxpose.xlu0.b32.cont [8/16] %v739, 128
    %756 = vxpose.xlu0.b32.cont [9/16] 0.0, 128
    %757 = vxpose.xlu0.b32.cont [10/16] 0.0, 128
    %758 = vxpose.xlu0.b32.cont [11/16] 0.0, 128
    %759 = vxpose.xlu0.b32.cont [12/16] 0.0, 128
    %760 = vxpose.xlu0.b32.cont [13/16] 0.0, 128
    %761 = vxpose.xlu0.b32.cont [14/16] 0.0, 128
    %762 = vxpose.xlu0.b32.cont [15/16] 0.0, 128
    %763 = vxpose.xlu0.b32.end [16/16] 0.0, 128
    %v764 = vpop.trf.xlu0
    %v765 = vpop.trf.xlu0
    %v766 = vpop.trf.xlu0
    %v767 = vpop.trf.xlu0
    %v768 = vpop.trf.xlu0
    %v769 = vpop.trf.xlu0
    %v770 = vpop.trf.xlu0
    %v771 = vpop.trf.xlu0
    %v772 = vpop.trf.xlu0
    %v773 = vpop.trf.xlu0
    %v774 = vpop.trf.xlu0
    %v775 = vpop.trf.xlu0
    %v776 = vpop.trf.xlu0
    %v777 = vpop.trf.xlu0
    %v778 = vpop.trf.xlu0
    %v779 = vpop.trf.xlu0
    %780 = vset.pattern.permute.xlu0 1
    %781 = vperm.xlu0 %780, %v297
    %v782 = vpop.permute.xlu0 %781
    %784 = vset.pattern.permute.xlu0 1
    %785 = vperm.xlu0 %784, %v302
    %v786 = vpop.permute.xlu0 %785
    %788 = vset.pattern.permute.xlu0 1
    %789 = vperm.xlu0 %788, %v307
    %v790 = vpop.permute.xlu0 %789
    %792 = vset.pattern.permute.xlu0 1
    %793 = vperm.xlu0 %792, %v312
    %v794 = vpop.permute.xlu0 %793
    %796 = vset.pattern.permute.xlu0 1
    %797 = vperm.xlu0 %796, %v317
    %v798 = vpop.permute.xlu0 %797
    %800 = vset.pattern.permute.xlu0 1
    %801 = vperm.xlu0 %800, %v322
    %v802 = vpop.permute.xlu0 %801
    %804 = vset.pattern.permute.xlu0 1
    %805 = vperm.xlu0 %804, %v327
    %v806 = vpop.permute.xlu0 %805
    %808 = vset.pattern.permute.xlu0 1
    %809 = vperm.xlu0 %808, %v332
    %v810 = vpop.permute.xlu0 %809
    %v812 = vlaneseq
    %v813 = vshrl.u32 %v812, 7
    %v814 = vsub.s32 0, %v813
    %v815 = vrot.slane %v764, %v814
    %v816 = vadd.f32 %v782, %v815
    %v817 = vadd.f32 %v786, %v815
    %v818 = vadd.f32 %v790, %v815
    %v819 = vadd.f32 %v794, %v815
    %v820 = vadd.f32 %v798, %v815
    %v821 = vadd.f32 %v802, %v815
    %v822 = vadd.f32 %v806, %v815
    %v823 = vadd.f32 %v810, %v815
    %v824 = vmul.f32 %v84, %v816
    %v825 = vmul.f32 %v85, %v817
    %v826 = vmul.f32 %v86, %v818
    %v827 = vmul.f32 %v87, %v819
    %v828 = vmul.f32 %v88, %v820
    %v829 = vmul.f32 %v89, %v821
    %v830 = vmul.f32 %v90, %v822
    %v831 = vmul.f32 %v91, %v823
    %vm832 = vcmp.ne.f32.partialorder %v824, 0.0
    %vm833 = vcmp.ne.f32.partialorder %v825, 0.0
    %vm834 = vcmp.ne.f32.partialorder %v826, 0.0
    %vm835 = vcmp.ne.f32.partialorder %v827, 0.0
    %vm836 = vcmp.ne.f32.partialorder %v828, 0.0
    %vm837 = vcmp.ne.f32.partialorder %v829, 0.0
    %vm838 = vcmp.ne.f32.partialorder %v830, 0.0
    %vm839 = vcmp.ne.f32.partialorder %v831, 0.0
    %v840 = vsub.f32 0.0, %v824
    %v841 = vsub.f32 0.0, %v825
    %v842 = vsub.f32 0.0, %v826
    %v843 = vsub.f32 0.0, %v827
    %v844 = vsub.f32 0.0, %v828
    %v845 = vsub.f32 0.0, %v829
    %v846 = vsub.f32 0.0, %v830
    %v847 = vsub.f32 0.0, %v831
    %v848 = vmul.f32 %v840, 1.442695
    %v849 = vpow.pop %v848
    %v850 = vmul.f32 %v841, 1.442695
    %v851 = vpow.pop %v850
    %v852 = vmul.f32 %v842, 1.442695
    %v853 = vpow.pop %v852
    %v854 = vmul.f32 %v843, 1.442695
    %v855 = vpow.pop %v854
    %v856 = vmul.f32 %v844, 1.442695
    %v857 = vpow.pop %v856
    %v858 = vmul.f32 %v845, 1.442695
    %v859 = vpow.pop %v858
    %v860 = vmul.f32 %v846, 1.442695
    %v861 = vpow.pop %v860
    %v862 = vmul.f32 %v847, 1.442695
    %v863 = vpow.pop %v862
    %v864 = vadd.f32 %v849, 1.0
    %v865 = vadd.f32 %v851, 1.0
    %v866 = vadd.f32 %v853, 1.0
    %v867 = vadd.f32 %v855, 1.0
    %v868 = vadd.f32 %v857, 1.0
    %v869 = vadd.f32 %v859, 1.0
    %v870 = vadd.f32 %v861, 1.0
    %v871 = vadd.f32 %v863, 1.0
    %v872 = vrcp.pop %v864
    %v873 = vmul.f32 1.0, %v872
    %v874 = vrcp.pop %v865
    %v875 = vmul.f32 1.0, %v874
    %v876 = vrcp.pop %v866
    %v877 = vmul.f32 1.0, %v876
    %v878 = vrcp.pop %v867
    %v879 = vmul.f32 1.0, %v878
    %v880 = vrcp.pop %v868
    %v881 = vmul.f32 1.0, %v880
    %v882 = vrcp.pop %v869
    %v883 = vmul.f32 1.0, %v882
    %v884 = vrcp.pop %v870
    %v885 = vmul.f32 1.0, %v884
    %v886 = vrcp.pop %v871
    %v887 = vmul.f32 1.0, %v886
    %v888 = vsub.f32 %v873, 0.5
    %v889 = vsub.f32 %v875, 0.5
    %v890 = vsub.f32 %v877, 0.5
    %v891 = vsub.f32 %v879, 0.5
    %v892 = vsub.f32 %v881, 0.5
    %v893 = vsub.f32 %v883, 0.5
    %v894 = vsub.f32 %v885, 0.5
    %v895 = vsub.f32 %v887, 0.5
    %v896 = vmul.f32 %v888, 1.442695
    %v897 = vpow.pop %v896
    %v898 = vmul.f32 %v889, 1.442695
    %v899 = vpow.pop %v898
    %v900 = vmul.f32 %v890, 1.442695
    %v901 = vpow.pop %v900
    %v902 = vmul.f32 %v891, 1.442695
    %v903 = vpow.pop %v902
    %v904 = vmul.f32 %v892, 1.442695
    %v905 = vpow.pop %v904
    %v906 = vmul.f32 %v893, 1.442695
    %v907 = vpow.pop %v906
    %v908 = vmul.f32 %v894, 1.442695
    %v909 = vpow.pop %v908
    %v910 = vmul.f32 %v895, 1.442695
    %v911 = vpow.pop %v910
    %v912 = vsel %vm832, %v897, 0.0
    %v913 = vsel %vm833, %v899, 0.0
    %v914 = vsel %vm834, %v901, 0.0
    %v915 = vsel %vm835, %v903, 0.0
    %v916 = vsel %vm836, %v905, 0.0
    %v917 = vsel %vm837, %v907, 0.0
    %v918 = vsel %vm838, %v909, 0.0
    %v919 = vsel %vm839, %v911, 0.0
    %v920 = vsel %vm542, %v912, 0.0
    %921 = vadd.xlane.f32.xlu0 %v920
    %v922 = vpop.xlane.xlu0 %921
    %v923 = vsel %vm542, %v913, 0.0
    %924 = vadd.xlane.f32.xlu0 %v923
    %v925 = vpop.xlane.xlu0 %924
    %v926 = vsel %vm542, %v914, 0.0
    %927 = vadd.xlane.f32.xlu0 %v926
    %v928 = vpop.xlane.xlu0 %927
    %v929 = vsel %vm542, %v915, 0.0
    %930 = vadd.xlane.f32.xlu0 %v929
    %v931 = vpop.xlane.xlu0 %930
    %v932 = vsel %vm542, %v916, 0.0
    %933 = vadd.xlane.f32.xlu0 %v932
    %v934 = vpop.xlane.xlu0 %933
    %v935 = vsel %vm542, %v917, 0.0
    %936 = vadd.xlane.f32.xlu0 %v935
    %v937 = vpop.xlane.xlu0 %936
    %v938 = vsel %vm542, %v918, 0.0
    %939 = vadd.xlane.f32.xlu0 %v938
    %v940 = vpop.xlane.xlu0 %939
    %v941 = vsel %vm542, %v919, 0.0
    %942 = vadd.xlane.f32.xlu0 %v941
    %v943 = vpop.xlane.xlu0 %942
    %vm944 = vcmp.gt.f32.partialorder %v922, 0.0
    %vm945 = vcmp.gt.f32.partialorder %v925, 0.0
    %vm946 = vcmp.gt.f32.partialorder %v928, 0.0
    %vm947 = vcmp.gt.f32.partialorder %v931, 0.0
    %vm948 = vcmp.gt.f32.partialorder %v934, 0.0
    %vm949 = vcmp.gt.f32.partialorder %v937, 0.0
    %vm950 = vcmp.gt.f32.partialorder %v940, 0.0
    %vm951 = vcmp.gt.f32.partialorder %v943, 0.0
    %v952 = vsel %vm944, %v922, 1.0
    %v953 = vsel %vm945, %v925, 1.0
    %v954 = vsel %vm946, %v928, 1.0
    %v955 = vsel %vm947, %v931, 1.0
    %v956 = vsel %vm948, %v934, 1.0
    %v957 = vsel %vm949, %v937, 1.0
    %v958 = vsel %vm950, %v940, 1.0
    %v959 = vsel %vm951, %v943, 1.0
    %v960 = vrcp.pop %v952
    %v961 = vrcp.pop %v953
    %v962 = vrcp.pop %v954
    %v963 = vrcp.pop %v955
    %v964 = vrcp.pop %v956
    %v965 = vrcp.pop %v957
    %v966 = vrcp.pop %v958
    %v967 = vrcp.pop %v959
    %v968 = vmul.f32 %v912, %v960
    %v969 = vmul.f32 %v913, %v961
    %v970 = vmul.f32 %v914, %v962
    %v971 = vmul.f32 %v915, %v963
    %v972 = vmul.f32 %v916, %v964
    %v973 = vmul.f32 %v917, %v965
    %v974 = vmul.f32 %v918, %v966
    %v975 = vmul.f32 %v919, %v967
    %v976 = vpack.c.bf16 %v969, %v968
    %v977 = vpack.c.bf16 %v971, %v970
    %v978 = vpack.c.bf16 %v973, %v972
    %v979 = vpack.c.bf16 %v975, %v974
    %984 = vrot.lane.b32.xlu0 %v603, 120
    %v985 = vpop.permute.xlu0 %984
    %986 = vrot.lane.b32.xlu0 %v604, 120
    %v987 = vpop.permute.xlu0 %986
    %988 = vrot.lane.b32.xlu0 %v605, 120
    %v989 = vpop.permute.xlu0 %988
    %990 = vrot.lane.b32.xlu0 %v606, 120
    %v991 = vpop.permute.xlu0 %990
    %v997 = vsel %vm542, %v976, 0
    %v1000 = vsel %vm542, %v977, 0
    %v1003 = vsel %vm542, %v978, 0
    %v1006 = vsel %vm542, %v979, 0
    %1008 = vmatprep.subr.bf16.mxu0 0
    %1009 = vmatpush1.bf16.msra.mxu0 %v985
    %1010 = vmatprep.subr.bf16.mxu0 0
    %1011 = vmatpush1.bf16.msra.mxu0 %v987
    %1012 = vmatprep.subr.bf16.mxu0 0
    %1013 = vmatpush1.bf16.msra.mxu0 %v989
    %1014 = vmatprep.subr.bf16.mxu0 0
    %1015 = vmatpush1.bf16.msra.mxu0 %v991
    %1016 = vmatprep.subr.bf16.mxu0 0
    %1017 = vmatpush1.bf16.msra.mxu0 0
    %1018 = vmatprep.subr.bf16.mxu0 0
    %1019 = vmatpush1.bf16.msra.mxu0 0
    %1020 = vmatprep.subr.bf16.mxu0 0
    %1021 = vmatpush1.bf16.msra.mxu0 0
    %1022 = vmatprep.subr.bf16.mxu0 0
    %1023 = vmatpush1.bf16.msra.mxu0 0
    %1024 = vmatprep.subr.bf16.mxu0 0
    %1025 = vmatpush1.bf16.msra.mxu0 0
    %1026 = vmatprep.subr.bf16.mxu0 0
    %1027 = vmatpush1.bf16.msra.mxu0 0
    %1028 = vmatprep.subr.bf16.mxu0 0
    %1029 = vmatpush1.bf16.msra.mxu0 0
    %1030 = vmatprep.subr.bf16.mxu0 0
    %1031 = vmatpush1.bf16.msra.mxu0 0
    %1032 = vmatprep.subr.bf16.mxu0 0
    %1033 = vmatpush1.bf16.msra.mxu0 0
    %1034 = vmatprep.subr.bf16.mxu0 0
    %1035 = vmatpush1.bf16.msra.mxu0 0
    %1036 = vmatprep.subr.bf16.mxu0 0
    %1037 = vmatpush1.bf16.msra.mxu0 0
    %1038 = vmatprep.subr.bf16.mxu0 0
    %1039 = vmatpush1.bf16.msra.mxu0 0
    %1040 = vmatprep.mubr.bf16.mxu0 0
    %1041 = vmatmul.mubr.bf16.gmra.mrb[0].mxu0 %v997
    %v1042 = vpop.f32.mrb[0].mxu0
    %v1043 = vadd.f32 0.0, %v1042
    %v1044 = vpop.f32.mrb[0].mxu0
    %v1045 = vpop.f32.mrb[0].mxu0
    %v1046 = vadd.f32 0.0, %v1045
    %v1047 = vpop.f32.mrb[0].mxu0
    %1048 = vmatprep.mubr.bf16.mxu0 0
    %1049 = vmatmul.mubr.bf16.gmra.mrb[0].mxu0 %v1000
    %v1050 = vpop.f32.mrb[0].mxu0
    %v1051 = vadd.f32 0.0, %v1050
    %v1052 = vpop.f32.mrb[0].mxu0
    %v1053 = vpop.f32.mrb[0].mxu0
    %v1054 = vadd.f32 0.0, %v1053
    %v1055 = vpop.f32.mrb[0].mxu0
    %1056 = vmatprep.mubr.bf16.mxu0 0
    %1057 = vmatmul.mubr.bf16.gmra.mrb[0].mxu0 %v1003
    %v1058 = vpop.f32.mrb[0].mxu0
    %v1059 = vadd.f32 0.0, %v1058
    %v1060 = vpop.f32.mrb[0].mxu0
    %v1061 = vpop.f32.mrb[0].mxu0
    %v1062 = vadd.f32 0.0, %v1061
    %v1063 = vpop.f32.mrb[0].mxu0
    %1064 = vmatprep.mubr.bf16.mxu0 0
    %1065 = vmatmul.mubr.bf16.gmra.mrb[0].mxu0 %v1006
    %v1066 = vpop.f32.mrb[0].mxu0
    %v1067 = vadd.f32 0.0, %v1066
    %v1068 = vpop.f32.mrb[0].mxu0
    %v1069 = vpop.f32.mrb[0].mxu0
    %v1070 = vadd.f32 0.0, %v1069
    %v1071 = vpop.f32.mrb[0].mxu0
    %1072 = vdwg.mxu0
    %vm1073 = vcmp.gt.f32.partialorder %v1043, 0.0
    %vm1074 = vcmp.gt.f32.partialorder %v1046, 0.0
    %vm1075 = vcmp.gt.f32.partialorder %v1051, 0.0
    %vm1076 = vcmp.gt.f32.partialorder %v1054, 0.0
    %vm1077 = vcmp.gt.f32.partialorder %v1059, 0.0
    %vm1078 = vcmp.gt.f32.partialorder %v1062, 0.0
    %vm1079 = vcmp.gt.f32.partialorder %v1067, 0.0
    %vm1080 = vcmp.gt.f32.partialorder %v1070, 0.0
    %v1081 = vmul.f32 %v1043, 1.442695
    %v1082 = vpow.pop %v1081
    %v1083 = vmul.f32 %v1046, 1.442695
    %v1084 = vpow.pop %v1083
    %v1085 = vmul.f32 %v1051, 1.442695
    %v1086 = vpow.pop %v1085
    %v1087 = vmul.f32 %v1054, 1.442695
    %v1088 = vpow.pop %v1087
    %v1089 = vmul.f32 %v1059, 1.442695
    %v1090 = vpow.pop %v1089
    %v1091 = vmul.f32 %v1062, 1.442695
    %v1092 = vpow.pop %v1091
    %v1093 = vmul.f32 %v1067, 1.442695
    %v1094 = vpow.pop %v1093
    %v1095 = vmul.f32 %v1070, 1.442695
    %v1096 = vpow.pop %v1095
    %v1097 = vsub.f32 %v1082, 1.0
    %v1098 = vsub.f32 %v1084, 1.0
    %v1099 = vsub.f32 %v1086, 1.0
    %v1100 = vsub.f32 %v1088, 1.0
    %v1101 = vsub.f32 %v1090, 1.0
    %v1102 = vsub.f32 %v1092, 1.0
    %v1103 = vsub.f32 %v1094, 1.0
    %v1104 = vsub.f32 %v1096, 1.0
    %v1105 = vsel %vm1073, %v1043, %v1097
    %v1106 = vsel %vm1074, %v1046, %v1098
    %v1107 = vsel %vm1075, %v1051, %v1099
    %v1108 = vsel %vm1076, %v1054, %v1100
    %v1109 = vsel %vm1077, %v1059, %v1101
    %v1110 = vsel %vm1078, %v1062, %v1102
    %v1111 = vsel %vm1079, %v1067, %v1103
    %v1112 = vsel %vm1080, %v1070, %v1104
    %vm1113 = vcmask 64512
    %v1115 = vsel %vm1113, %v1105, 0
    %v1118 = vsel %vm1113, %v1106, 0
    %v1121 = vsel %vm1113, %v1107, 0
    %v1124 = vsel %vm1113, %v1108, 0
    %v1127 = vsel %vm1113, %v1109, 0
    %v1130 = vsel %vm1113, %v1110, 0
    %v1133 = vsel %vm1113, %v1111, 0
    %v1136 = vsel %vm1113, %v1112, 0
    %1138 = vmatprep.subr.mxu0 0.0
    %1139 = vmatpush1.msra.mxu0 %v337
    %1140 = vmatprep.subr.mxu0 0.0
    %1141 = vmatpush1.msra.mxu0 0.0
    %1142 = vmatprep.subr.mxu0 0.0
    %1143 = vmatpush1.msra.mxu0 0.0
    %1144 = vmatprep.subr.mxu0 0.0
    %1145 = vmatpush1.msra.mxu0 0.0
    %1146 = vmatprep.subr.mxu0 0.0
    %1147 = vmatpush1.msra.mxu0 0.0
    %1148 = vmatprep.subr.mxu0 0.0
    %1149 = vmatpush1.msra.mxu0 0.0
    %1150 = vmatprep.subr.mxu0 0.0
    %1151 = vmatpush1.msra.mxu0 0.0
    %1152 = vmatprep.subr.mxu0 0.0
    %1153 = vmatpush1.msra.mxu0 0.0
    %1154 = vmatprep.subr.mxu0 0.0
    %1155 = vmatpush1.msra.mxu0 0.0
    %1156 = vmatprep.subr.mxu0 0.0
    %1157 = vmatpush1.msra.mxu0 0.0
    %1158 = vmatprep.subr.mxu0 0.0
    %1159 = vmatpush1.msra.mxu0 0.0
    %1160 = vmatprep.subr.mxu0 0.0
    %1161 = vmatpush1.msra.mxu0 0.0
    %1162 = vmatprep.subr.mxu0 0.0
    %1163 = vmatpush1.msra.mxu0 0.0
    %1164 = vmatprep.subr.mxu0 0.0
    %1165 = vmatpush1.msra.mxu0 0.0
    %1166 = vmatprep.subr.mxu0 0.0
    %1167 = vmatpush1.msra.mxu0 0.0
    %1168 = vmatprep.subr.mxu0 0.0
    %1169 = vmatpush1.msra.mxu0 0.0
    %1170 = vmatprep.subr.mxu0 0.0
    %1171 = vmatpush1.msra.mxu0 0.0
    %1172 = vmatprep.subr.mxu0 0.0
    %1173 = vmatpush1.msra.mxu0 0.0
    %1174 = vmatprep.subr.mxu0 0.0
    %1175 = vmatpush1.msra.mxu0 0.0
    %1176 = vmatprep.subr.mxu0 0.0
    %1177 = vmatpush1.msra.mxu0 0.0
    %1178 = vmatprep.subr.mxu0 0.0
    %1179 = vmatpush1.msra.mxu0 0.0
    %1180 = vmatprep.subr.mxu0 0.0
    %1181 = vmatpush1.msra.mxu0 0.0
    %1182 = vmatprep.subr.mxu0 0.0
    %1183 = vmatpush1.msra.mxu0 0.0
    %1184 = vmatprep.subr.mxu0 0.0
    %1185 = vmatpush1.msra.mxu0 0.0
    %1186 = vmatprep.subr.mxu0 0.0
    %1187 = vmatpush1.msra.mxu0 0.0
    %1188 = vmatprep.subr.mxu0 0.0
    %1189 = vmatpush1.msra.mxu0 0.0
    %1190 = vmatprep.subr.mxu0 0.0
    %1191 = vmatpush1.msra.mxu0 0.0
    %1192 = vmatprep.subr.mxu0 0.0
    %1193 = vmatpush1.msra.mxu0 0.0
    %1194 = vmatprep.subr.mxu0 0.0
    %1195 = vmatpush1.msra.mxu0 0.0
    %1196 = vmatprep.subr.mxu0 0.0
    %1197 = vmatpush1.msra.mxu0 0.0
    %1198 = vmatprep.subr.mxu0 0.0
    %1199 = vmatpush1.msra.mxu0 0.0
    %1200 = vmatprep.subr.mxu0 0.0
    %1201 = vmatpush1.msra.mxu0 0.0
    %1202 = vmatprep.mubr.f32.mxu0 0.0
    %1203 = vmatmul.mubr.f32.gmra.mrb[0].mxu0 %v1115
    %v1204 = vpop.f32.mrb[0].mxu0
    %v1205 = vadd.f32 0.0, %v1204
    %v1206 = vpop.f32.mrb[0].mxu0
    %1207 = vmatprep.mubr.f32.mxu0 0.0
    %1208 = vmatmul.mubr.f32.gmra.mrb[0].mxu0 %v1118
    %v1209 = vpop.f32.mrb[0].mxu0
    %v1210 = vadd.f32 0.0, %v1209
    %v1211 = vpop.f32.mrb[0].mxu0
    %1212 = vmatprep.mubr.f32.mxu0 0.0
    %1213 = vmatmul.mubr.f32.gmra.mrb[0].mxu0 %v1121
    %v1214 = vpop.f32.mrb[0].mxu0
    %v1215 = vadd.f32 0.0, %v1214
    %v1216 = vpop.f32.mrb[0].mxu0
    %1217 = vmatprep.mubr.f32.mxu0 0.0
    %1218 = vmatmul.mubr.f32.gmra.mrb[0].mxu0 %v1124
    %v1219 = vpop.f32.mrb[0].mxu0
    %v1220 = vadd.f32 0.0, %v1219
    %v1221 = vpop.f32.mrb[0].mxu0
    %1222 = vmatprep.mubr.f32.mxu0 0.0
    %1223 = vmatmul.mubr.f32.gmra.mrb[0].mxu0 %v1127
    %v1224 = vpop.f32.mrb[0].mxu0
    %v1225 = vadd.f32 0.0, %v1224
    %v1226 = vpop.f32.mrb[0].mxu0
    %1227 = vmatprep.mubr.f32.mxu0 0.0
    %1228 = vmatmul.mubr.f32.gmra.mrb[0].mxu0 %v1130
    %v1229 = vpop.f32.mrb[0].mxu0
    %v1230 = vadd.f32 0.0, %v1229
    %v1231 = vpop.f32.mrb[0].mxu0
    %1232 = vmatprep.mubr.f32.mxu0 0.0
    %1233 = vmatmul.mubr.f32.gmra.mrb[0].mxu0 %v1133
    %v1234 = vpop.f32.mrb[0].mxu0
    %v1235 = vadd.f32 0.0, %v1234
    %v1236 = vpop.f32.mrb[0].mxu0
    %1237 = vmatprep.mubr.f32.mxu0 0.0
    %1238 = vmatmul.mubr.f32.gmra.mrb[0].mxu0 %v1136
    %v1239 = vpop.f32.mrb[0].mxu0
    %v1240 = vadd.f32 0.0, %v1239
    %v1241 = vpop.f32.mrb[0].mxu0
    %1242 = vdwg.mxu0
    %v1244 = vsel %vm1113, %v716, 0
    %v1247 = vsel %vm1113, %v717, 0
    %v1250 = vsel %vm1113, %v718, 0
    %v1253 = vsel %vm1113, %v719, 0
    %v1256 = vsel %vm1113, %v720, 0
    %v1259 = vsel %vm1113, %v721, 0
    %v1262 = vsel %vm1113, %v722, 0
    %v1265 = vsel %vm1113, %v723, 0
    %1267 = vmatprep.subr.mxu0 0.0
    %1268 = vmatpush1.msra.mxu0 %v336
    %1269 = vmatprep.subr.mxu0 0.0
    %1270 = vmatpush1.msra.mxu0 0.0
    %1271 = vmatprep.subr.mxu0 0.0
    %1272 = vmatpush1.msra.mxu0 0.0
    %1273 = vmatprep.subr.mxu0 0.0
    %1274 = vmatpush1.msra.mxu0 0.0
    %1275 = vmatprep.subr.mxu0 0.0
    %1276 = vmatpush1.msra.mxu0 0.0
    %1277 = vmatprep.subr.mxu0 0.0
    %1278 = vmatpush1.msra.mxu0 0.0
    %1279 = vmatprep.subr.mxu0 0.0
    %1280 = vmatpush1.msra.mxu0 0.0
    %1281 = vmatprep.subr.mxu0 0.0
    %1282 = vmatpush1.msra.mxu0 0.0
    %1283 = vmatprep.subr.mxu0 0.0
    %1284 = vmatpush1.msra.mxu0 0.0
    %1285 = vmatprep.subr.mxu0 0.0
    %1286 = vmatpush1.msra.mxu0 0.0
    %1287 = vmatprep.subr.mxu0 0.0
    %1288 = vmatpush1.msra.mxu0 0.0
    %1289 = vmatprep.subr.mxu0 0.0
    %1290 = vmatpush1.msra.mxu0 0.0
    %1291 = vmatprep.subr.mxu0 0.0
    %1292 = vmatpush1.msra.mxu0 0.0
    %1293 = vmatprep.subr.mxu0 0.0
    %1294 = vmatpush1.msra.mxu0 0.0
    %1295 = vmatprep.subr.mxu0 0.0
    %1296 = vmatpush1.msra.mxu0 0.0
    %1297 = vmatprep.subr.mxu0 0.0
    %1298 = vmatpush1.msra.mxu0 0.0
    %1299 = vmatprep.subr.mxu0 0.0
    %1300 = vmatpush1.msra.mxu0 0.0
    %1301 = vmatprep.subr.mxu0 0.0
    %1302 = vmatpush1.msra.mxu0 0.0
    %1303 = vmatprep.subr.mxu0 0.0
    %1304 = vmatpush1.msra.mxu0 0.0
    %1305 = vmatprep.subr.mxu0 0.0
    %1306 = vmatpush1.msra.mxu0 0.0
    %1307 = vmatprep.subr.mxu0 0.0
    %1308 = vmatpush1.msra.mxu0 0.0
    %1309 = vmatprep.subr.mxu0 0.0
    %1310 = vmatpush1.msra.mxu0 0.0
    %1311 = vmatprep.subr.mxu0 0.0
    %1312 = vmatpush1.msra.mxu0 0.0
    %1313 = vmatprep.subr.mxu0 0.0
    %1314 = vmatpush1.msra.mxu0 0.0
    %1315 = vmatprep.subr.mxu0 0.0
    %1316 = vmatpush1.msra.mxu0 0.0
    %1317 = vmatprep.subr.mxu0 0.0
    %1318 = vmatpush1.msra.mxu0 0.0
    %1319 = vmatprep.subr.mxu0 0.0
    %1320 = vmatpush1.msra.mxu0 0.0
    %1321 = vmatprep.subr.mxu0 0.0
    %1322 = vmatpush1.msra.mxu0 0.0
    %1323 = vmatprep.subr.mxu0 0.0
    %1324 = vmatpush1.msra.mxu0 0.0
    %1325 = vmatprep.subr.mxu0 0.0
    %1326 = vmatpush1.msra.mxu0 0.0
    %1327 = vmatprep.subr.mxu0 0.0
    %1328 = vmatpush1.msra.mxu0 0.0
    %1329 = vmatprep.subr.mxu0 0.0
    %1330 = vmatpush1.msra.mxu0 0.0
    %1331 = vmatprep.mubr.f32.mxu0 0.0
    %1332 = vmatmul.mubr.f32.gmra.mrb[0].mxu0 %v1244
    %v1333 = vpop.f32.mrb[0].mxu0
    %v1334 = vadd.f32 %v1205, %v1333
    %v1335 = vpop.f32.mrb[0].mxu0
    %1336 = vmatprep.mubr.f32.mxu0 0.0
    %1337 = vmatmul.mubr.f32.gmra.mrb[0].mxu0 %v1247
    %v1338 = vpop.f32.mrb[0].mxu0
    %v1339 = vadd.f32 %v1210, %v1338
    %v1340 = vpop.f32.mrb[0].mxu0
    %1341 = vmatprep.mubr.f32.mxu0 0.0
    %1342 = vmatmul.mubr.f32.gmra.mrb[0].mxu0 %v1250
    %v1343 = vpop.f32.mrb[0].mxu0
    %v1344 = vadd.f32 %v1215, %v1343
    %v1345 = vpop.f32.mrb[0].mxu0
    %1346 = vmatprep.mubr.f32.mxu0 0.0
    %1347 = vmatmul.mubr.f32.gmra.mrb[0].mxu0 %v1253
    %v1348 = vpop.f32.mrb[0].mxu0
    %v1349 = vadd.f32 %v1220, %v1348
    %v1350 = vpop.f32.mrb[0].mxu0
    %1351 = vmatprep.mubr.f32.mxu0 0.0
    %1352 = vmatmul.mubr.f32.gmra.mrb[0].mxu0 %v1256
    %v1353 = vpop.f32.mrb[0].mxu0
    %v1354 = vadd.f32 %v1225, %v1353
    %v1355 = vpop.f32.mrb[0].mxu0
    %1356 = vmatprep.mubr.f32.mxu0 0.0
    %1357 = vmatmul.mubr.f32.gmra.mrb[0].mxu0 %v1259
    %v1358 = vpop.f32.mrb[0].mxu0
    %v1359 = vadd.f32 %v1230, %v1358
    %v1360 = vpop.f32.mrb[0].mxu0
    %1361 = vmatprep.mubr.f32.mxu0 0.0
    %1362 = vmatmul.mubr.f32.gmra.mrb[0].mxu0 %v1262
    %v1363 = vpop.f32.mrb[0].mxu0
    %v1364 = vadd.f32 %v1235, %v1363
    %v1365 = vpop.f32.mrb[0].mxu0
    %1366 = vmatprep.mubr.f32.mxu0 0.0
    %1367 = vmatmul.mubr.f32.gmra.mrb[0].mxu0 %v1265
    %v1368 = vpop.f32.mrb[0].mxu0
    %v1369 = vadd.f32 %v1240, %v1368
    %v1370 = vpop.f32.mrb[0].mxu0
    %1371 = vdwg.mxu0
    %v1373 = vlaneseq
    %v1374 = vshrl.u32 %v1373, 7
    %v1375 = vsub.s32 0, %v1374
    %v1376 = vrot.slane %v335, %v1375
    %v1378 = vadd.f32 %v1376, %v1334
    %v1379 = vadd.f32 %v1376, %v1339
    %v1380 = vadd.f32 %v1376, %v1344
    %v1381 = vadd.f32 %v1376, %v1349
    %v1382 = vadd.f32 %v1376, %v1354
    %v1383 = vadd.f32 %v1376, %v1359
    %v1384 = vadd.f32 %v1376, %v1364
    %v1385 = vadd.f32 %v1376, %v1369
    %v1386 = vld [vmem:[%s14] sm:$0xff]
    %v1387 = vld [vmem:[%s15] sm:$0xf]
    %vm1388 = vcmask 31744
    %v1390 = vsel %vm1388, %v100, 0
    %v1393 = vsel %vm1388, %v101, 0
    %v1396 = vsel %vm1388, %v102, 0
    %v1399 = vsel %vm1388, %v103, 0
    %v1402 = vsel %vm1388, %v104, 0
    %v1405 = vsel %vm1388, %v105, 0
    %v1408 = vsel %vm1388, %v106, 0
    %v1411 = vsel %vm1388, %v107, 0
    %vm1413 = vcmask 1043456
    %v1415 = vsel %vm1413, %v1387, 0
    %1417 = vmatprep.subr.mxu0 0.0
    %1418 = vmatpush1.msra.mxu0 %v1415
    %1419 = vmatprep.subr.mxu0 0.0
    %1420 = vmatpush1.msra.mxu0 0.0
    %1421 = vmatprep.subr.mxu0 0.0
    %1422 = vmatpush1.msra.mxu0 0.0
    %1423 = vmatprep.subr.mxu0 0.0
    %1424 = vmatpush1.msra.mxu0 0.0
    %1425 = vmatprep.subr.mxu0 0.0
    %1426 = vmatpush1.msra.mxu0 0.0
    %1427 = vmatprep.subr.mxu0 0.0
    %1428 = vmatpush1.msra.mxu0 0.0
    %1429 = vmatprep.subr.mxu0 0.0
    %1430 = vmatpush1.msra.mxu0 0.0
    %1431 = vmatprep.subr.mxu0 0.0
    %1432 = vmatpush1.msra.mxu0 0.0
    %1433 = vmatprep.subr.mxu0 0.0
    %1434 = vmatpush1.msra.mxu0 0.0
    %1435 = vmatprep.subr.mxu0 0.0
    %1436 = vmatpush1.msra.mxu0 0.0
    %1437 = vmatprep.subr.mxu0 0.0
    %1438 = vmatpush1.msra.mxu0 0.0
    %1439 = vmatprep.subr.mxu0 0.0
    %1440 = vmatpush1.msra.mxu0 0.0
    %1441 = vmatprep.subr.mxu0 0.0
    %1442 = vmatpush1.msra.mxu0 0.0
    %1443 = vmatprep.subr.mxu0 0.0
    %1444 = vmatpush1.msra.mxu0 0.0
    %1445 = vmatprep.subr.mxu0 0.0
    %1446 = vmatpush1.msra.mxu0 0.0
    %1447 = vmatprep.subr.mxu0 0.0
    %1448 = vmatpush1.msra.mxu0 0.0
    %1449 = vmatprep.subr.mxu0 0.0
    %1450 = vmatpush1.msra.mxu0 0.0
    %1451 = vmatprep.subr.mxu0 0.0
    %1452 = vmatpush1.msra.mxu0 0.0
    %1453 = vmatprep.subr.mxu0 0.0
    %1454 = vmatpush1.msra.mxu0 0.0
    %1455 = vmatprep.subr.mxu0 0.0
    %1456 = vmatpush1.msra.mxu0 0.0
    %1457 = vmatprep.subr.mxu0 0.0
    %1458 = vmatpush1.msra.mxu0 0.0
    %1459 = vmatprep.subr.mxu0 0.0
    %1460 = vmatpush1.msra.mxu0 0.0
    %1461 = vmatprep.subr.mxu0 0.0
    %1462 = vmatpush1.msra.mxu0 0.0
    %1463 = vmatprep.subr.mxu0 0.0
    %1464 = vmatpush1.msra.mxu0 0.0
    %1465 = vmatprep.subr.mxu0 0.0
    %1466 = vmatpush1.msra.mxu0 0.0
    %1467 = vmatprep.subr.mxu0 0.0
    %1468 = vmatpush1.msra.mxu0 0.0
    %1469 = vmatprep.subr.mxu0 0.0
    %1470 = vmatpush1.msra.mxu0 0.0
    %1471 = vmatprep.subr.mxu0 0.0
    %1472 = vmatpush1.msra.mxu0 0.0
    %1473 = vmatprep.subr.mxu0 0.0
    %1474 = vmatpush1.msra.mxu0 0.0
    %1475 = vmatprep.subr.mxu0 0.0
    %1476 = vmatpush1.msra.mxu0 0.0
    %1477 = vmatprep.subr.mxu0 0.0
    %1478 = vmatpush1.msra.mxu0 0.0
    %1479 = vmatprep.subr.mxu0 0.0
    %1480 = vmatpush1.msra.mxu0 0.0
    %1481 = vmatprep.mubr.f32.mxu0 0.0
    %1482 = vmatmul.mubr.f32.gmra.mrb[0].mxu0 %v1390
    %v1483 = vpop.f32.mrb[0].mxu0
    %v1484 = vadd.f32 0.0, %v1483
    %v1485 = vpop.f32.mrb[0].mxu0
    %1486 = vmatprep.mubr.f32.mxu0 0.0
    %1487 = vmatmul.mubr.f32.gmra.mrb[0].mxu0 %v1393
    %v1488 = vpop.f32.mrb[0].mxu0
    %v1489 = vadd.f32 0.0, %v1488
    %v1490 = vpop.f32.mrb[0].mxu0
    %1491 = vmatprep.mubr.f32.mxu0 0.0
    %1492 = vmatmul.mubr.f32.gmra.mrb[0].mxu0 %v1396
    %v1493 = vpop.f32.mrb[0].mxu0
    %v1494 = vadd.f32 0.0, %v1493
    %v1495 = vpop.f32.mrb[0].mxu0
    %1496 = vmatprep.mubr.f32.mxu0 0.0
    %1497 = vmatmul.mubr.f32.gmra.mrb[0].mxu0 %v1399
    %v1498 = vpop.f32.mrb[0].mxu0
    %v1499 = vadd.f32 0.0, %v1498
    %v1500 = vpop.f32.mrb[0].mxu0
    %1501 = vmatprep.mubr.f32.mxu0 0.0
    %1502 = vmatmul.mubr.f32.gmra.mrb[0].mxu0 %v1402
    %v1503 = vpop.f32.mrb[0].mxu0
    %v1504 = vadd.f32 0.0, %v1503
    %v1505 = vpop.f32.mrb[0].mxu0
    %1506 = vmatprep.mubr.f32.mxu0 0.0
    %1507 = vmatmul.mubr.f32.gmra.mrb[0].mxu0 %v1405
    %v1508 = vpop.f32.mrb[0].mxu0
    %v1509 = vadd.f32 0.0, %v1508
    %v1510 = vpop.f32.mrb[0].mxu0
    %1511 = vmatprep.mubr.f32.mxu0 0.0
    %1512 = vmatmul.mubr.f32.gmra.mrb[0].mxu0 %v1408
    %v1513 = vpop.f32.mrb[0].mxu0
    %v1514 = vadd.f32 0.0, %v1513
    %v1515 = vpop.f32.mrb[0].mxu0
    %1516 = vmatprep.mubr.f32.mxu0 0.0
    %1517 = vmatmul.mubr.f32.gmra.mrb[0].mxu0 %v1411
    %v1518 = vpop.f32.mrb[0].mxu0
    %v1519 = vadd.f32 0.0, %v1518
    %v1520 = vpop.f32.mrb[0].mxu0
    %1521 = vdwg.mxu0
    %v1523 = vsel %vm1113, %v1378, 0
    %v1526 = vsel %vm1113, %v1379, 0
    %v1529 = vsel %vm1113, %v1380, 0
    %v1532 = vsel %vm1113, %v1381, 0
    %v1535 = vsel %vm1113, %v1382, 0
    %v1538 = vsel %vm1113, %v1383, 0
    %v1541 = vsel %vm1113, %v1384, 0
    %v1544 = vsel %vm1113, %v1385, 0
    %1546 = vmatprep.subr.mxu0 0.0
    %1547 = vmatpush1.msra.mxu0 %v1386
    %1548 = vmatprep.subr.mxu0 0.0
    %1549 = vmatpush1.msra.mxu0 0.0
    %1550 = vmatprep.subr.mxu0 0.0
    %1551 = vmatpush1.msra.mxu0 0.0
    %1552 = vmatprep.subr.mxu0 0.0
    %1553 = vmatpush1.msra.mxu0 0.0
    %1554 = vmatprep.subr.mxu0 0.0
    %1555 = vmatpush1.msra.mxu0 0.0
    %1556 = vmatprep.subr.mxu0 0.0
    %1557 = vmatpush1.msra.mxu0 0.0
    %1558 = vmatprep.subr.mxu0 0.0
    %1559 = vmatpush1.msra.mxu0 0.0
    %1560 = vmatprep.subr.mxu0 0.0
    %1561 = vmatpush1.msra.mxu0 0.0
    %1562 = vmatprep.subr.mxu0 0.0
    %1563 = vmatpush1.msra.mxu0 0.0
    %1564 = vmatprep.subr.mxu0 0.0
    %1565 = vmatpush1.msra.mxu0 0.0
    %1566 = vmatprep.subr.mxu0 0.0
    %1567 = vmatpush1.msra.mxu0 0.0
    %1568 = vmatprep.subr.mxu0 0.0
    %1569 = vmatpush1.msra.mxu0 0.0
    %1570 = vmatprep.subr.mxu0 0.0
    %1571 = vmatpush1.msra.mxu0 0.0
    %1572 = vmatprep.subr.mxu0 0.0
    %1573 = vmatpush1.msra.mxu0 0.0
    %1574 = vmatprep.subr.mxu0 0.0
    %1575 = vmatpush1.msra.mxu0 0.0
    %1576 = vmatprep.subr.mxu0 0.0
    %1577 = vmatpush1.msra.mxu0 0.0
    %1578 = vmatprep.subr.mxu0 0.0
    %1579 = vmatpush1.msra.mxu0 0.0
    %1580 = vmatprep.subr.mxu0 0.0
    %1581 = vmatpush1.msra.mxu0 0.0
    %1582 = vmatprep.subr.mxu0 0.0
    %1583 = vmatpush1.msra.mxu0 0.0
    %1584 = vmatprep.subr.mxu0 0.0
    %1585 = vmatpush1.msra.mxu0 0.0
    %1586 = vmatprep.subr.mxu0 0.0
    %1587 = vmatpush1.msra.mxu0 0.0
    %1588 = vmatprep.subr.mxu0 0.0
    %1589 = vmatpush1.msra.mxu0 0.0
    %1590 = vmatprep.subr.mxu0 0.0
    %1591 = vmatpush1.msra.mxu0 0.0
    %1592 = vmatprep.subr.mxu0 0.0
    %1593 = vmatpush1.msra.mxu0 0.0
    %1594 = vmatprep.subr.mxu0 0.0
    %1595 = vmatpush1.msra.mxu0 0.0
    %1596 = vmatprep.subr.mxu0 0.0
    %1597 = vmatpush1.msra.mxu0 0.0
    %1598 = vmatprep.subr.mxu0 0.0
    %1599 = vmatpush1.msra.mxu0 0.0
    %1600 = vmatprep.subr.mxu0 0.0
    %1601 = vmatpush1.msra.mxu0 0.0
    %1602 = vmatprep.subr.mxu0 0.0
    %1603 = vmatpush1.msra.mxu0 0.0
    %1604 = vmatprep.subr.mxu0 0.0
    %1605 = vmatpush1.msra.mxu0 0.0
    %1606 = vmatprep.subr.mxu0 0.0
    %1607 = vmatpush1.msra.mxu0 0.0
    %1608 = vmatprep.subr.mxu0 0.0
    %1609 = vmatpush1.msra.mxu0 0.0
    %1610 = vmatprep.mubr.f32.mxu0 0.0
    %1611 = vmatmul.mubr.f32.gmra.mrb[0].mxu0 %v1523
    %v1612 = vpop.f32.mrb[0].mxu0
    %v1613 = vadd.f32 %v1484, %v1612
    %v1614 = vpop.f32.mrb[0].mxu0
    %1615 = vmatprep.mubr.f32.mxu0 0.0
    %1616 = vmatmul.mubr.f32.gmra.mrb[0].mxu0 %v1526
    %v1617 = vpop.f32.mrb[0].mxu0
    %v1618 = vadd.f32 %v1489, %v1617
    %v1619 = vpop.f32.mrb[0].mxu0
    %1620 = vmatprep.mubr.f32.mxu0 0.0
    %1621 = vmatmul.mubr.f32.gmra.mrb[0].mxu0 %v1529
    %v1622 = vpop.f32.mrb[0].mxu0
    %v1623 = vadd.f32 %v1494, %v1622
    %v1624 = vpop.f32.mrb[0].mxu0
    %1625 = vmatprep.mubr.f32.mxu0 0.0
    %1626 = vmatmul.mubr.f32.gmra.mrb[0].mxu0 %v1532
    %v1627 = vpop.f32.mrb[0].mxu0
    %v1628 = vadd.f32 %v1499, %v1627
    %v1629 = vpop.f32.mrb[0].mxu0
    %1630 = vmatprep.mubr.f32.mxu0 0.0
    %1631 = vmatmul.mubr.f32.gmra.mrb[0].mxu0 %v1535
    %v1632 = vpop.f32.mrb[0].mxu0
    %v1633 = vadd.f32 %v1504, %v1632
    %v1634 = vpop.f32.mrb[0].mxu0
    %1635 = vmatprep.mubr.f32.mxu0 0.0
    %1636 = vmatmul.mubr.f32.gmra.mrb[0].mxu0 %v1538
    %v1637 = vpop.f32.mrb[0].mxu0
    %v1638 = vadd.f32 %v1509, %v1637
    %v1639 = vpop.f32.mrb[0].mxu0
    %1640 = vmatprep.mubr.f32.mxu0 0.0
    %1641 = vmatmul.mubr.f32.gmra.mrb[0].mxu0 %v1541
    %v1642 = vpop.f32.mrb[0].mxu0
    %v1643 = vadd.f32 %v1514, %v1642
    %v1644 = vpop.f32.mrb[0].mxu0
    %1645 = vmatprep.mubr.f32.mxu0 0.0
    %1646 = vmatmul.mubr.f32.gmra.mrb[0].mxu0 %v1544
    %v1647 = vpop.f32.mrb[0].mxu0
    %v1648 = vadd.f32 %v1519, %v1647
    %v1649 = vpop.f32.mrb[0].mxu0
    %1650 = vdwg.mxu0
    %v1651 = vld [vmem:[%s16] sm:$0x1]
    %v1653 = vlaneseq
    %v1654 = vshrl.u32 %v1653, 7
    %v1655 = vsub.s32 0, %v1654
    %v1656 = vrot.slane %v1651, %v1655
    %v1658 = vadd.f32 %v1613, %v1656
    %v1659 = vadd.f32 %v1618, %v1656
    %v1660 = vadd.f32 %v1623, %v1656
    %v1661 = vadd.f32 %v1628, %v1656
    %v1662 = vadd.f32 %v1633, %v1656
    %v1663 = vadd.f32 %v1638, %v1656
    %v1664 = vadd.f32 %v1643, %v1656
    %v1665 = vadd.f32 %v1648, %v1656
    %v1666 = vld [vmem:[%s17] sm:$0xff]
    %v1667 = vld [vmem:[%s17 + $0x8] sm:$0xff]
    %v1669 = vsel %vm205, %v1658, 0
    %v1672 = vsel %vm205, %v1659, 0
    %v1675 = vsel %vm205, %v1660, 0
    %v1678 = vsel %vm205, %v1661, 0
    %v1681 = vsel %vm205, %v1662, 0
    %v1684 = vsel %vm205, %v1663, 0
    %v1687 = vsel %vm205, %v1664, 0
    %v1690 = vsel %vm205, %v1665, 0
    %1692 = vmatprep.subr.mxu0 0.0
    %1693 = vmatpush1.msra.mxu0 %v1666
    %1694 = vmatprep.subr.mxu0 0.0
    %1695 = vmatpush1.msra.mxu0 %v1667
    %1696 = vmatprep.subr.mxu0 0.0
    %1697 = vmatpush1.msra.mxu0 0.0
    %1698 = vmatprep.subr.mxu0 0.0
    %1699 = vmatpush1.msra.mxu0 0.0
    %1700 = vmatprep.subr.mxu0 0.0
    %1701 = vmatpush1.msra.mxu0 0.0
    %1702 = vmatprep.subr.mxu0 0.0
    %1703 = vmatpush1.msra.mxu0 0.0
    %1704 = vmatprep.subr.mxu0 0.0
    %1705 = vmatpush1.msra.mxu0 0.0
    %1706 = vmatprep.subr.mxu0 0.0
    %1707 = vmatpush1.msra.mxu0 0.0
    %1708 = vmatprep.subr.mxu0 0.0
    %1709 = vmatpush1.msra.mxu0 0.0
    %1710 = vmatprep.subr.mxu0 0.0
    %1711 = vmatpush1.msra.mxu0 0.0
    %1712 = vmatprep.subr.mxu0 0.0
    %1713 = vmatpush1.msra.mxu0 0.0
    %1714 = vmatprep.subr.mxu0 0.0
    %1715 = vmatpush1.msra.mxu0 0.0
    %1716 = vmatprep.subr.mxu0 0.0
    %1717 = vmatpush1.msra.mxu0 0.0
    %1718 = vmatprep.subr.mxu0 0.0
    %1719 = vmatpush1.msra.mxu0 0.0
    %1720 = vmatprep.subr.mxu0 0.0
    %1721 = vmatpush1.msra.mxu0 0.0
    %1722 = vmatprep.subr.mxu0 0.0
    %1723 = vmatpush1.msra.mxu0 0.0
    %1724 = vmatprep.subr.mxu0 0.0
    %1725 = vmatpush1.msra.mxu0 0.0
    %1726 = vmatprep.subr.mxu0 0.0
    %1727 = vmatpush1.msra.mxu0 0.0
    %1728 = vmatprep.subr.mxu0 0.0
    %1729 = vmatpush1.msra.mxu0 0.0
    %1730 = vmatprep.subr.mxu0 0.0
    %1731 = vmatpush1.msra.mxu0 0.0
    %1732 = vmatprep.subr.mxu0 0.0
    %1733 = vmatpush1.msra.mxu0 0.0
    %1734 = vmatprep.subr.mxu0 0.0
    %1735 = vmatpush1.msra.mxu0 0.0
    %1736 = vmatprep.subr.mxu0 0.0
    %1737 = vmatpush1.msra.mxu0 0.0
    %1738 = vmatprep.subr.mxu0 0.0
    %1739 = vmatpush1.msra.mxu0 0.0
    %1740 = vmatprep.subr.mxu0 0.0
    %1741 = vmatpush1.msra.mxu0 0.0
    %1742 = vmatprep.subr.mxu0 0.0
    %1743 = vmatpush1.msra.mxu0 0.0
    %1744 = vmatprep.subr.mxu0 0.0
    %1745 = vmatpush1.msra.mxu0 0.0
    %1746 = vmatprep.subr.mxu0 0.0
    %1747 = vmatpush1.msra.mxu0 0.0
    %1748 = vmatprep.subr.mxu0 0.0
    %1749 = vmatpush1.msra.mxu0 0.0
    %1750 = vmatprep.subr.mxu0 0.0
    %1751 = vmatpush1.msra.mxu0 0.0
    %1752 = vmatprep.subr.mxu0 0.0
    %1753 = vmatpush1.msra.mxu0 0.0
    %1754 = vmatprep.subr.mxu0 0.0
    %1755 = vmatpush1.msra.mxu0 0.0
    %1756 = vmatprep.mubr.f32.mxu0 0.0
    %1757 = vmatmul.mubr.f32.gmra.mrb[0].mxu0 %v1669
    %v1758 = vpop.f32.mrb[0].mxu0
    %v1759 = vadd.f32 0.0, %v1758
    %v1760 = vpop.f32.mrb[0].mxu0
    %1761 = vmatprep.mubr.f32.mxu0 0.0
    %1762 = vmatmul.mubr.f32.gmra.mrb[0].mxu0 %v1672
    %v1763 = vpop.f32.mrb[0].mxu0
    %v1764 = vadd.f32 0.0, %v1763
    %v1765 = vpop.f32.mrb[0].mxu0
    %1766 = vmatprep.mubr.f32.mxu0 0.0
    %1767 = vmatmul.mubr.f32.gmra.mrb[0].mxu0 %v1675
    %v1768 = vpop.f32.mrb[0].mxu0
    %v1769 = vadd.f32 0.0, %v1768
    %v1770 = vpop.f32.mrb[0].mxu0
    %1771 = vmatprep.mubr.f32.mxu0 0.0
    %1772 = vmatmul.mubr.f32.gmra.mrb[0].mxu0 %v1678
    %v1773 = vpop.f32.mrb[0].mxu0
    %v1774 = vadd.f32 0.0, %v1773
    %v1775 = vpop.f32.mrb[0].mxu0
    %1776 = vmatprep.mubr.f32.mxu0 0.0
    %1777 = vmatmul.mubr.f32.gmra.mrb[0].mxu0 %v1681
    %v1778 = vpop.f32.mrb[0].mxu0
    %v1779 = vadd.f32 0.0, %v1778
    %v1780 = vpop.f32.mrb[0].mxu0
    %1781 = vmatprep.mubr.f32.mxu0 0.0
    %1782 = vmatmul.mubr.f32.gmra.mrb[0].mxu0 %v1684
    %v1783 = vpop.f32.mrb[0].mxu0
    %v1784 = vadd.f32 0.0, %v1783
    %v1785 = vpop.f32.mrb[0].mxu0
    %1786 = vmatprep.mubr.f32.mxu0 0.0
    %1787 = vmatmul.mubr.f32.gmra.mrb[0].mxu0 %v1687
    %v1788 = vpop.f32.mrb[0].mxu0
    %v1789 = vadd.f32 0.0, %v1788
    %v1790 = vpop.f32.mrb[0].mxu0
    %1791 = vmatprep.mubr.f32.mxu0 0.0
    %1792 = vmatmul.mubr.f32.gmra.mrb[0].mxu0 %v1690
    %v1793 = vpop.f32.mrb[0].mxu0
    %v1794 = vadd.f32 0.0, %v1793
    %v1795 = vpop.f32.mrb[0].mxu0
    %1796 = vdwg.mxu0
    %v1797 = vld [vmem:[%s19] sm:$0x1]
    %v1798 = vld [vmem:[%s18] sm:$0xff]
    %v1799 = vld [vmem:[%s18 + $0x8] sm:$0xff]
    %1808 = vrot.lane.b32.xlu0 %v1759, 126
    %v1809 = vpop.permute.xlu0 %1808
    %1810 = vrot.lane.b32.xlu0 %v1764, 126
    %v1811 = vpop.permute.xlu0 %1810
    %1812 = vrot.lane.b32.xlu0 %v1769, 126
    %v1813 = vpop.permute.xlu0 %1812
    %1814 = vrot.lane.b32.xlu0 %v1774, 126
    %v1815 = vpop.permute.xlu0 %1814
    %1816 = vrot.lane.b32.xlu0 %v1779, 126
    %v1817 = vpop.permute.xlu0 %1816
    %1818 = vrot.lane.b32.xlu0 %v1784, 126
    %v1819 = vpop.permute.xlu0 %1818
    %1820 = vrot.lane.b32.xlu0 %v1789, 126
    %v1821 = vpop.permute.xlu0 %1820
    %1822 = vrot.lane.b32.xlu0 %v1794, 126
    %v1823 = vpop.permute.xlu0 %1822
    %1832 = vxpose.xlu0.b32.start [1/16] %v1809, 128
    %1833 = vxpose.xlu0.b32.cont [2/16] %v1811, 128
    %1834 = vxpose.xlu0.b32.cont [3/16] %v1813, 128
    %1835 = vxpose.xlu0.b32.cont [4/16] %v1815, 128
    %1836 = vxpose.xlu0.b32.cont [5/16] %v1817, 128
    %1837 = vxpose.xlu0.b32.cont [6/16] %v1819, 128
    %1838 = vxpose.xlu0.b32.cont [7/16] %v1821, 128
    %1839 = vxpose.xlu0.b32.cont [8/16] %v1823, 128
    %1840 = vxpose.xlu0.b32.cont [9/16] 0.0, 128
    %1841 = vxpose.xlu0.b32.cont [10/16] 0.0, 128
    %1842 = vxpose.xlu0.b32.cont [11/16] 0.0, 128
    %1843 = vxpose.xlu0.b32.cont [12/16] 0.0, 128
    %1844 = vxpose.xlu0.b32.cont [13/16] 0.0, 128
    %1845 = vxpose.xlu0.b32.cont [14/16] 0.0, 128
    %1846 = vxpose.xlu0.b32.cont [15/16] 0.0, 128
    %1847 = vxpose.xlu0.b32.end [16/16] 0.0, 128
    %v1848 = vpop.trf.xlu0
    %v1849 = vpop.trf.xlu0
    %v1850 = vpop.trf.xlu0
    %v1851 = vpop.trf.xlu0
    %v1852 = vpop.trf.xlu0
    %v1853 = vpop.trf.xlu0
    %v1854 = vpop.trf.xlu0
    %v1855 = vpop.trf.xlu0
    %v1856 = vpop.trf.xlu0
    %v1857 = vpop.trf.xlu0
    %v1858 = vpop.trf.xlu0
    %v1859 = vpop.trf.xlu0
    %v1860 = vpop.trf.xlu0
    %v1861 = vpop.trf.xlu0
    %v1862 = vpop.trf.xlu0
    %v1863 = vpop.trf.xlu0
    %1864 = vset.pattern.permute.xlu0 0
    %1865 = vperm.xlu0 %1864, %v1759
    %v1866 = vpop.permute.xlu0 %1865
    %1868 = vset.pattern.permute.xlu0 0
    %1869 = vperm.xlu0 %1868, %v1764
    %v1870 = vpop.permute.xlu0 %1869
    %1872 = vset.pattern.permute.xlu0 0
    %1873 = vperm.xlu0 %1872, %v1769
    %v1874 = vpop.permute.xlu0 %1873
    %1876 = vset.pattern.permute.xlu0 0
    %1877 = vperm.xlu0 %1876, %v1774
    %v1878 = vpop.permute.xlu0 %1877
    %1880 = vset.pattern.permute.xlu0 0
    %1881 = vperm.xlu0 %1880, %v1779
    %v1882 = vpop.permute.xlu0 %1881
    %1884 = vset.pattern.permute.xlu0 0
    %1885 = vperm.xlu0 %1884, %v1784
    %v1886 = vpop.permute.xlu0 %1885
    %1888 = vset.pattern.permute.xlu0 0
    %1889 = vperm.xlu0 %1888, %v1789
    %v1890 = vpop.permute.xlu0 %1889
    %1892 = vset.pattern.permute.xlu0 0
    %1893 = vperm.xlu0 %1892, %v1794
    %v1894 = vpop.permute.xlu0 %1893
    %v1896 = vlaneseq
    %v1897 = vshrl.u32 %v1896, 7
    %v1898 = vsub.s32 0, %v1897
    %v1899 = vrot.slane %v1848, %v1898
    %v1900 = vadd.f32 %v1866, %v1899
    %v1901 = vadd.f32 %v1870, %v1899
    %v1902 = vadd.f32 %v1874, %v1899
    %v1903 = vadd.f32 %v1878, %v1899
    %v1904 = vadd.f32 %v1882, %v1899
    %v1905 = vadd.f32 %v1886, %v1899
    %v1906 = vadd.f32 %v1890, %v1899
    %v1907 = vadd.f32 %v1894, %v1899
    %v1908 = vmul.f32 %v84, %v1900
    %v1909 = vmul.f32 %v85, %v1901
    %v1910 = vmul.f32 %v86, %v1902
    %v1911 = vmul.f32 %v87, %v1903
    %v1912 = vmul.f32 %v88, %v1904
    %v1913 = vmul.f32 %v89, %v1905
    %v1914 = vmul.f32 %v90, %v1906
    %v1915 = vmul.f32 %v91, %v1907
    %vm1916 = vcmp.ne.f32.partialorder %v1908, 0.0
    %vm1917 = vcmp.ne.f32.partialorder %v1909, 0.0
    %vm1918 = vcmp.ne.f32.partialorder %v1910, 0.0
    %vm1919 = vcmp.ne.f32.partialorder %v1911, 0.0
    %vm1920 = vcmp.ne.f32.partialorder %v1912, 0.0
    %vm1921 = vcmp.ne.f32.partialorder %v1913, 0.0
    %vm1922 = vcmp.ne.f32.partialorder %v1914, 0.0
    %vm1923 = vcmp.ne.f32.partialorder %v1915, 0.0
    %v1924 = vsub.f32 0.0, %v1908
    %v1925 = vsub.f32 0.0, %v1909
    %v1926 = vsub.f32 0.0, %v1910
    %v1927 = vsub.f32 0.0, %v1911
    %v1928 = vsub.f32 0.0, %v1912
    %v1929 = vsub.f32 0.0, %v1913
    %v1930 = vsub.f32 0.0, %v1914
    %v1931 = vsub.f32 0.0, %v1915
    %v1932 = vmul.f32 %v1924, 1.442695
    %v1933 = vpow.pop %v1932
    %v1934 = vmul.f32 %v1925, 1.442695
    %v1935 = vpow.pop %v1934
    %v1936 = vmul.f32 %v1926, 1.442695
    %v1937 = vpow.pop %v1936
    %v1938 = vmul.f32 %v1927, 1.442695
    %v1939 = vpow.pop %v1938
    %v1940 = vmul.f32 %v1928, 1.442695
    %v1941 = vpow.pop %v1940
    %v1942 = vmul.f32 %v1929, 1.442695
    %v1943 = vpow.pop %v1942
    %v1944 = vmul.f32 %v1930, 1.442695
    %v1945 = vpow.pop %v1944
    %v1946 = vmul.f32 %v1931, 1.442695
    %v1947 = vpow.pop %v1946
    %v1948 = vadd.f32 %v1933, 1.0
    %v1949 = vadd.f32 %v1935, 1.0
    %v1950 = vadd.f32 %v1937, 1.0
    %v1951 = vadd.f32 %v1939, 1.0
    %v1952 = vadd.f32 %v1941, 1.0
    %v1953 = vadd.f32 %v1943, 1.0
    %v1954 = vadd.f32 %v1945, 1.0
    %v1955 = vadd.f32 %v1947, 1.0
    %v1956 = vrcp.pop %v1948
    %v1957 = vmul.f32 1.0, %v1956
    %v1958 = vrcp.pop %v1949
    %v1959 = vmul.f32 1.0, %v1958
    %v1960 = vrcp.pop %v1950
    %v1961 = vmul.f32 1.0, %v1960
    %v1962 = vrcp.pop %v1951
    %v1963 = vmul.f32 1.0, %v1962
    %v1964 = vrcp.pop %v1952
    %v1965 = vmul.f32 1.0, %v1964
    %v1966 = vrcp.pop %v1953
    %v1967 = vmul.f32 1.0, %v1966
    %v1968 = vrcp.pop %v1954
    %v1969 = vmul.f32 1.0, %v1968
    %v1970 = vrcp.pop %v1955
    %v1971 = vmul.f32 1.0, %v1970
    %v1972 = vsub.f32 %v1957, 0.5
    %v1973 = vsub.f32 %v1959, 0.5
    %v1974 = vsub.f32 %v1961, 0.5
    %v1975 = vsub.f32 %v1963, 0.5
    %v1976 = vsub.f32 %v1965, 0.5
    %v1977 = vsub.f32 %v1967, 0.5
    %v1978 = vsub.f32 %v1969, 0.5
    %v1979 = vsub.f32 %v1971, 0.5
    %v1980 = vmul.f32 %v1972, 1.442695
    %v1981 = vpow.pop %v1980
    %v1982 = vmul.f32 %v1973, 1.442695
    %v1983 = vpow.pop %v1982
    %v1984 = vmul.f32 %v1974, 1.442695
    %v1985 = vpow.pop %v1984
    %v1986 = vmul.f32 %v1975, 1.442695
    %v1987 = vpow.pop %v1986
    %v1988 = vmul.f32 %v1976, 1.442695
    %v1989 = vpow.pop %v1988
    %v1990 = vmul.f32 %v1977, 1.442695
    %v1991 = vpow.pop %v1990
    %v1992 = vmul.f32 %v1978, 1.442695
    %v1993 = vpow.pop %v1992
    %v1994 = vmul.f32 %v1979, 1.442695
    %v1995 = vpow.pop %v1994
    %v1996 = vsel %vm1916, %v1981, 0.0
    %v1997 = vsel %vm1917, %v1983, 0.0
    %v1998 = vsel %vm1918, %v1985, 0.0
    %v1999 = vsel %vm1919, %v1987, 0.0
    %v2000 = vsel %vm1920, %v1989, 0.0
    %v2001 = vsel %vm1921, %v1991, 0.0
    %v2002 = vsel %vm1922, %v1993, 0.0
    %v2003 = vsel %vm1923, %v1995, 0.0
    %v2004 = vsel %vm542, %v1996, 0.0
    %2005 = vadd.xlane.f32.xlu0 %v2004
    %v2006 = vpop.xlane.xlu0 %2005
    %v2007 = vsel %vm542, %v1997, 0.0
    %2008 = vadd.xlane.f32.xlu0 %v2007
    %v2009 = vpop.xlane.xlu0 %2008
    %v2010 = vsel %vm542, %v1998, 0.0
    %2011 = vadd.xlane.f32.xlu0 %v2010
    %v2012 = vpop.xlane.xlu0 %2011
    %v2013 = vsel %vm542, %v1999, 0.0
    %2014 = vadd.xlane.f32.xlu0 %v2013
    %v2015 = vpop.xlane.xlu0 %2014
    %v2016 = vsel %vm542, %v2000, 0.0
    %2017 = vadd.xlane.f32.xlu0 %v2016
    %v2018 = vpop.xlane.xlu0 %2017
    %v2019 = vsel %vm542, %v2001, 0.0
    %2020 = vadd.xlane.f32.xlu0 %v2019
    %v2021 = vpop.xlane.xlu0 %2020
    %v2022 = vsel %vm542, %v2002, 0.0
    %2023 = vadd.xlane.f32.xlu0 %v2022
    %v2024 = vpop.xlane.xlu0 %2023
    %v2025 = vsel %vm542, %v2003, 0.0
    %2026 = vadd.xlane.f32.xlu0 %v2025
    %v2027 = vpop.xlane.xlu0 %2026
    %vm2028 = vcmp.gt.f32.partialorder %v2006, 0.0
    %vm2029 = vcmp.gt.f32.partialorder %v2009, 0.0
    %vm2030 = vcmp.gt.f32.partialorder %v2012, 0.0
    %vm2031 = vcmp.gt.f32.partialorder %v2015, 0.0
    %vm2032 = vcmp.gt.f32.partialorder %v2018, 0.0
    %vm2033 = vcmp.gt.f32.partialorder %v2021, 0.0
    %vm2034 = vcmp.gt.f32.partialorder %v2024, 0.0
    %vm2035 = vcmp.gt.f32.partialorder %v2027, 0.0
    %v2036 = vsel %vm2028, %v2006, 1.0
    %v2037 = vsel %vm2029, %v2009, 1.0
    %v2038 = vsel %vm2030, %v2012, 1.0
    %v2039 = vsel %vm2031, %v2015, 1.0
    %v2040 = vsel %vm2032, %v2018, 1.0
    %v2041 = vsel %vm2033, %v2021, 1.0
    %v2042 = vsel %vm2034, %v2024, 1.0
    %v2043 = vsel %vm2035, %v2027, 1.0
    %v2044 = vrcp.pop %v2036
    %v2045 = vrcp.pop %v2037
    %v2046 = vrcp.pop %v2038
    %v2047 = vrcp.pop %v2039
    %v2048 = vrcp.pop %v2040
    %v2049 = vrcp.pop %v2041
    %v2050 = vrcp.pop %v2042
    %v2051 = vrcp.pop %v2043
    %v2052 = vmul.f32 %v1996, %v2044
    %v2053 = vmul.f32 %v1997, %v2045
    %v2054 = vmul.f32 %v1998, %v2046
    %v2055 = vmul.f32 %v1999, %v2047
    %v2056 = vmul.f32 %v2000, %v2048
    %v2057 = vmul.f32 %v2001, %v2049
    %v2058 = vmul.f32 %v2002, %v2050
    %v2059 = vmul.f32 %v2003, %v2051
    %v2060 = vpack.c.bf16 %v2053, %v2052
    %v2061 = vpack.c.bf16 %v2055, %v2054
    %v2062 = vpack.c.bf16 %v2057, %v2056
    %v2063 = vpack.c.bf16 %v2059, %v2058
    %v2064 = vpack.c.bf16 %v1659, %v1658
    %v2065 = vpack.c.bf16 %v1661, %v1660
    %v2066 = vpack.c.bf16 %v1663, %v1662
    %v2067 = vpack.c.bf16 %v1665, %v1664
    %v2069 = vsel %vm542, %v2060, 0
    %v2072 = vsel %vm542, %v2061, 0
    %v2075 = vsel %vm542, %v2062, 0
    %v2078 = vsel %vm542, %v2063, 0
    %2080 = vmatprep.subr.bf16.mxu0 0
    %2081 = vmatpush1.bf16.msra.mxu0 %v2064
    %2082 = vmatprep.subr.bf16.mxu0 0
    %2083 = vmatpush1.bf16.msra.mxu0 %v2065
    %2084 = vmatprep.subr.bf16.mxu0 0
    %2085 = vmatpush1.bf16.msra.mxu0 %v2066
    %2086 = vmatprep.subr.bf16.mxu0 0
    %2087 = vmatpush1.bf16.msra.mxu0 %v2067
    %2088 = vmatprep.subr.bf16.mxu0 0
    %2089 = vmatpush1.bf16.msra.mxu0 0
    %2090 = vmatprep.subr.bf16.mxu0 0
    %2091 = vmatpush1.bf16.msra.mxu0 0
    %2092 = vmatprep.subr.bf16.mxu0 0
    %2093 = vmatpush1.bf16.msra.mxu0 0
    %2094 = vmatprep.subr.bf16.mxu0 0
    %2095 = vmatpush1.bf16.msra.mxu0 0
    %2096 = vmatprep.subr.bf16.mxu0 0
    %2097 = vmatpush1.bf16.msra.mxu0 0
    %2098 = vmatprep.subr.bf16.mxu0 0
    %2099 = vmatpush1.bf16.msra.mxu0 0
    %2100 = vmatprep.subr.bf16.mxu0 0
    %2101 = vmatpush1.bf16.msra.mxu0 0
    %2102 = vmatprep.subr.bf16.mxu0 0
    %2103 = vmatpush1.bf16.msra.mxu0 0
    %2104 = vmatprep.subr.bf16.mxu0 0
    %2105 = vmatpush1.bf16.msra.mxu0 0
    %2106 = vmatprep.subr.bf16.mxu0 0
    %2107 = vmatpush1.bf16.msra.mxu0 0
    %2108 = vmatprep.subr.bf16.mxu0 0
    %2109 = vmatpush1.bf16.msra.mxu0 0
    %2110 = vmatprep.subr.bf16.mxu0 0
    %2111 = vmatpush1.bf16.msra.mxu0 0
    %2112 = vmatprep.mubr.bf16.mxu0 0
    %2113 = vmatmul.mubr.bf16.gmra.mrb[0].mxu0 %v2069
    %v2114 = vpop.f32.mrb[0].mxu0
    %v2115 = vadd.f32 0.0, %v2114
    %v2116 = vpop.f32.mrb[0].mxu0
    %v2117 = vpop.f32.mrb[0].mxu0
    %v2118 = vadd.f32 0.0, %v2117
    %v2119 = vpop.f32.mrb[0].mxu0
    %2120 = vmatprep.mubr.bf16.mxu0 0
    %2121 = vmatmul.mubr.bf16.gmra.mrb[0].mxu0 %v2072
    %v2122 = vpop.f32.mrb[0].mxu0
    %v2123 = vadd.f32 0.0, %v2122
    %v2124 = vpop.f32.mrb[0].mxu0
    %v2125 = vpop.f32.mrb[0].mxu0
    %v2126 = vadd.f32 0.0, %v2125
    %v2127 = vpop.f32.mrb[0].mxu0
    %2128 = vmatprep.mubr.bf16.mxu0 0
    %2129 = vmatmul.mubr.bf16.gmra.mrb[0].mxu0 %v2075
    %v2130 = vpop.f32.mrb[0].mxu0
    %v2131 = vadd.f32 0.0, %v2130
    %v2132 = vpop.f32.mrb[0].mxu0
    %v2133 = vpop.f32.mrb[0].mxu0
    %v2134 = vadd.f32 0.0, %v2133
    %v2135 = vpop.f32.mrb[0].mxu0
    %2136 = vmatprep.mubr.bf16.mxu0 0
    %2137 = vmatmul.mubr.bf16.gmra.mrb[0].mxu0 %v2078
    %v2138 = vpop.f32.mrb[0].mxu0
    %v2139 = vadd.f32 0.0, %v2138
    %v2140 = vpop.f32.mrb[0].mxu0
    %v2141 = vpop.f32.mrb[0].mxu0
    %v2142 = vadd.f32 0.0, %v2141
    %v2143 = vpop.f32.mrb[0].mxu0
    %2144 = vdwg.mxu0
    %vm2145 = vcmp.gt.f32.partialorder %v2115, 0.0
    %vm2146 = vcmp.gt.f32.partialorder %v2118, 0.0
    %vm2147 = vcmp.gt.f32.partialorder %v2123, 0.0
    %vm2148 = vcmp.gt.f32.partialorder %v2126, 0.0
    %vm2149 = vcmp.gt.f32.partialorder %v2131, 0.0
    %vm2150 = vcmp.gt.f32.partialorder %v2134, 0.0
    %vm2151 = vcmp.gt.f32.partialorder %v2139, 0.0
    %vm2152 = vcmp.gt.f32.partialorder %v2142, 0.0
    %v2153 = vmul.f32 %v2115, 1.442695
    %v2154 = vpow.pop %v2153
    %v2155 = vmul.f32 %v2118, 1.442695
    %v2156 = vpow.pop %v2155
    %v2157 = vmul.f32 %v2123, 1.442695
    %v2158 = vpow.pop %v2157
    %v2159 = vmul.f32 %v2126, 1.442695
    %v2160 = vpow.pop %v2159
    %v2161 = vmul.f32 %v2131, 1.442695
    %v2162 = vpow.pop %v2161
    %v2163 = vmul.f32 %v2134, 1.442695
    %v2164 = vpow.pop %v2163
    %v2165 = vmul.f32 %v2139, 1.442695
    %v2166 = vpow.pop %v2165
    %v2167 = vmul.f32 %v2142, 1.442695
    %v2168 = vpow.pop %v2167
    %v2169 = vsub.f32 %v2154, 1.0
    %v2170 = vsub.f32 %v2156, 1.0
    %v2171 = vsub.f32 %v2158, 1.0
    %v2172 = vsub.f32 %v2160, 1.0
    %v2173 = vsub.f32 %v2162, 1.0
    %v2174 = vsub.f32 %v2164, 1.0
    %v2175 = vsub.f32 %v2166, 1.0
    %v2176 = vsub.f32 %v2168, 1.0
    %v2177 = vsel %vm2145, %v2115, %v2169
    %v2178 = vsel %vm2146, %v2118, %v2170
    %v2179 = vsel %vm2147, %v2123, %v2171
    %v2180 = vsel %vm2148, %v2126, %v2172
    %v2181 = vsel %vm2149, %v2131, %v2173
    %v2182 = vsel %vm2150, %v2134, %v2174
    %v2183 = vsel %vm2151, %v2139, %v2175
    %v2184 = vsel %vm2152, %v2142, %v2176
    %2185 = vrot.lane.b32.xlu0 %v1759, 125
    %v2186 = vpop.permute.xlu0 %2185
    %2187 = vrot.lane.b32.xlu0 %v1764, 125
    %v2188 = vpop.permute.xlu0 %2187
    %2189 = vrot.lane.b32.xlu0 %v1769, 125
    %v2190 = vpop.permute.xlu0 %2189
    %2191 = vrot.lane.b32.xlu0 %v1774, 125
    %v2192 = vpop.permute.xlu0 %2191
    %2193 = vrot.lane.b32.xlu0 %v1779, 125
    %v2194 = vpop.permute.xlu0 %2193
    %2195 = vrot.lane.b32.xlu0 %v1784, 125
    %v2196 = vpop.permute.xlu0 %2195
    %2197 = vrot.lane.b32.xlu0 %v1789, 125
    %v2198 = vpop.permute.xlu0 %2197
    %2199 = vrot.lane.b32.xlu0 %v1794, 125
    %v2200 = vpop.permute.xlu0 %2199
    %2209 = vxpose.xlu0.b32.start [1/16] %v2186, 128
    %2210 = vxpose.xlu0.b32.cont [2/16] %v2188, 128
    %2211 = vxpose.xlu0.b32.cont [3/16] %v2190, 128
    %2212 = vxpose.xlu0.b32.cont [4/16] %v2192, 128
    %2213 = vxpose.xlu0.b32.cont [5/16] %v2194, 128
    %2214 = vxpose.xlu0.b32.cont [6/16] %v2196, 128
    %2215 = vxpose.xlu0.b32.cont [7/16] %v2198, 128
    %2216 = vxpose.xlu0.b32.cont [8/16] %v2200, 128
    %2217 = vxpose.xlu0.b32.cont [9/16] 0.0, 128
    %2218 = vxpose.xlu0.b32.cont [10/16] 0.0, 128
    %2219 = vxpose.xlu0.b32.cont [11/16] 0.0, 128
    %2220 = vxpose.xlu0.b32.cont [12/16] 0.0, 128
    %2221 = vxpose.xlu0.b32.cont [13/16] 0.0, 128
    %2222 = vxpose.xlu0.b32.cont [14/16] 0.0, 128
    %2223 = vxpose.xlu0.b32.cont [15/16] 0.0, 128
    %2224 = vxpose.xlu0.b32.end [16/16] 0.0, 128
    %v2225 = vpop.trf.xlu0
    %v2226 = vpop.trf.xlu0
    %v2227 = vpop.trf.xlu0
    %v2228 = vpop.trf.xlu0
    %v2229 = vpop.trf.xlu0
    %v2230 = vpop.trf.xlu0
    %v2231 = vpop.trf.xlu0
    %v2232 = vpop.trf.xlu0
    %v2233 = vpop.trf.xlu0
    %v2234 = vpop.trf.xlu0
    %v2235 = vpop.trf.xlu0
    %v2236 = vpop.trf.xlu0
    %v2237 = vpop.trf.xlu0
    %v2238 = vpop.trf.xlu0
    %v2239 = vpop.trf.xlu0
    %v2240 = vpop.trf.xlu0
    %2241 = vset.pattern.permute.xlu0 1
    %2242 = vperm.xlu0 %2241, %v1759
    %v2243 = vpop.permute.xlu0 %2242
    %2245 = vset.pattern.permute.xlu0 1
    %2246 = vperm.xlu0 %2245, %v1764
    %v2247 = vpop.permute.xlu0 %2246
    %2249 = vset.pattern.permute.xlu0 1
    %2250 = vperm.xlu0 %2249, %v1769
    %v2251 = vpop.permute.xlu0 %2250
    %2253 = vset.pattern.permute.xlu0 1
    %2254 = vperm.xlu0 %2253, %v1774
    %v2255 = vpop.permute.xlu0 %2254
    %2257 = vset.pattern.permute.xlu0 1
    %2258 = vperm.xlu0 %2257, %v1779
    %v2259 = vpop.permute.xlu0 %2258
    %2261 = vset.pattern.permute.xlu0 1
    %2262 = vperm.xlu0 %2261, %v1784
    %v2263 = vpop.permute.xlu0 %2262
    %2265 = vset.pattern.permute.xlu0 1
    %2266 = vperm.xlu0 %2265, %v1789
    %v2267 = vpop.permute.xlu0 %2266
    %2269 = vset.pattern.permute.xlu0 1
    %2270 = vperm.xlu0 %2269, %v1794
    %v2271 = vpop.permute.xlu0 %2270
    %v2273 = vlaneseq
    %v2274 = vshrl.u32 %v2273, 7
    %v2275 = vsub.s32 0, %v2274
    %v2276 = vrot.slane %v2225, %v2275
    %v2277 = vadd.f32 %v2243, %v2276
    %v2278 = vadd.f32 %v2247, %v2276
    %v2279 = vadd.f32 %v2251, %v2276
    %v2280 = vadd.f32 %v2255, %v2276
    %v2281 = vadd.f32 %v2259, %v2276
    %v2282 = vadd.f32 %v2263, %v2276
    %v2283 = vadd.f32 %v2267, %v2276
    %v2284 = vadd.f32 %v2271, %v2276
    %v2285 = vmul.f32 %v84, %v2277
    %v2286 = vmul.f32 %v85, %v2278
    %v2287 = vmul.f32 %v86, %v2279
    %v2288 = vmul.f32 %v87, %v2280
    %v2289 = vmul.f32 %v88, %v2281
    %v2290 = vmul.f32 %v89, %v2282
    %v2291 = vmul.f32 %v90, %v2283
    %v2292 = vmul.f32 %v91, %v2284
    %vm2293 = vcmp.ne.f32.partialorder %v2285, 0.0
    %vm2294 = vcmp.ne.f32.partialorder %v2286, 0.0
    %vm2295 = vcmp.ne.f32.partialorder %v2287, 0.0
    %vm2296 = vcmp.ne.f32.partialorder %v2288, 0.0
    %vm2297 = vcmp.ne.f32.partialorder %v2289, 0.0
    %vm2298 = vcmp.ne.f32.partialorder %v2290, 0.0
    %vm2299 = vcmp.ne.f32.partialorder %v2291, 0.0
    %vm2300 = vcmp.ne.f32.partialorder %v2292, 0.0
    %v2301 = vsub.f32 0.0, %v2285
    %v2302 = vsub.f32 0.0, %v2286
    %v2303 = vsub.f32 0.0, %v2287
    %v2304 = vsub.f32 0.0, %v2288
    %v2305 = vsub.f32 0.0, %v2289
    %v2306 = vsub.f32 0.0, %v2290
    %v2307 = vsub.f32 0.0, %v2291
    %v2308 = vsub.f32 0.0, %v2292
    %v2309 = vmul.f32 %v2301, 1.442695
    %v2310 = vpow.pop %v2309
    %v2311 = vmul.f32 %v2302, 1.442695
    %v2312 = vpow.pop %v2311
    %v2313 = vmul.f32 %v2303, 1.442695
    %v2314 = vpow.pop %v2313
    %v2315 = vmul.f32 %v2304, 1.442695
    %v2316 = vpow.pop %v2315
    %v2317 = vmul.f32 %v2305, 1.442695
    %v2318 = vpow.pop %v2317
    %v2319 = vmul.f32 %v2306, 1.442695
    %v2320 = vpow.pop %v2319
    %v2321 = vmul.f32 %v2307, 1.442695
    %v2322 = vpow.pop %v2321
    %v2323 = vmul.f32 %v2308, 1.442695
    %v2324 = vpow.pop %v2323
    %v2325 = vadd.f32 %v2310, 1.0
    %v2326 = vadd.f32 %v2312, 1.0
    %v2327 = vadd.f32 %v2314, 1.0
    %v2328 = vadd.f32 %v2316, 1.0
    %v2329 = vadd.f32 %v2318, 1.0
    %v2330 = vadd.f32 %v2320, 1.0
    %v2331 = vadd.f32 %v2322, 1.0
    %v2332 = vadd.f32 %v2324, 1.0
    %v2333 = vrcp.pop %v2325
    %v2334 = vmul.f32 1.0, %v2333
    %v2335 = vrcp.pop %v2326
    %v2336 = vmul.f32 1.0, %v2335
    %v2337 = vrcp.pop %v2327
    %v2338 = vmul.f32 1.0, %v2337
    %v2339 = vrcp.pop %v2328
    %v2340 = vmul.f32 1.0, %v2339
    %v2341 = vrcp.pop %v2329
    %v2342 = vmul.f32 1.0, %v2341
    %v2343 = vrcp.pop %v2330
    %v2344 = vmul.f32 1.0, %v2343
    %v2345 = vrcp.pop %v2331
    %v2346 = vmul.f32 1.0, %v2345
    %v2347 = vrcp.pop %v2332
    %v2348 = vmul.f32 1.0, %v2347
    %v2349 = vsub.f32 %v2334, 0.5
    %v2350 = vsub.f32 %v2336, 0.5
    %v2351 = vsub.f32 %v2338, 0.5
    %v2352 = vsub.f32 %v2340, 0.5
    %v2353 = vsub.f32 %v2342, 0.5
    %v2354 = vsub.f32 %v2344, 0.5
    %v2355 = vsub.f32 %v2346, 0.5
    %v2356 = vsub.f32 %v2348, 0.5
    %v2357 = vmul.f32 %v2349, 1.442695
    %v2358 = vpow.pop %v2357
    %v2359 = vmul.f32 %v2350, 1.442695
    %v2360 = vpow.pop %v2359
    %v2361 = vmul.f32 %v2351, 1.442695
    %v2362 = vpow.pop %v2361
    %v2363 = vmul.f32 %v2352, 1.442695
    %v2364 = vpow.pop %v2363
    %v2365 = vmul.f32 %v2353, 1.442695
    %v2366 = vpow.pop %v2365
    %v2367 = vmul.f32 %v2354, 1.442695
    %v2368 = vpow.pop %v2367
    %v2369 = vmul.f32 %v2355, 1.442695
    %v2370 = vpow.pop %v2369
    %v2371 = vmul.f32 %v2356, 1.442695
    %v2372 = vpow.pop %v2371
    %v2373 = vsel %vm2293, %v2358, 0.0
    %v2374 = vsel %vm2294, %v2360, 0.0
    %v2375 = vsel %vm2295, %v2362, 0.0
    %v2376 = vsel %vm2296, %v2364, 0.0
    %v2377 = vsel %vm2297, %v2366, 0.0
    %v2378 = vsel %vm2298, %v2368, 0.0
    %v2379 = vsel %vm2299, %v2370, 0.0
    %v2380 = vsel %vm2300, %v2372, 0.0
    %v2381 = vsel %vm542, %v2373, 0.0
    %2382 = vadd.xlane.f32.xlu0 %v2381
    %v2383 = vpop.xlane.xlu0 %2382
    %v2384 = vsel %vm542, %v2374, 0.0
    %2385 = vadd.xlane.f32.xlu0 %v2384
    %v2386 = vpop.xlane.xlu0 %2385
    %v2387 = vsel %vm542, %v2375, 0.0
    %2388 = vadd.xlane.f32.xlu0 %v2387
    %v2389 = vpop.xlane.xlu0 %2388
    %v2390 = vsel %vm542, %v2376, 0.0
    %2391 = vadd.xlane.f32.xlu0 %v2390
    %v2392 = vpop.xlane.xlu0 %2391
    %v2393 = vsel %vm542, %v2377, 0.0
    %2394 = vadd.xlane.f32.xlu0 %v2393
    %v2395 = vpop.xlane.xlu0 %2394
    %v2396 = vsel %vm542, %v2378, 0.0
    %2397 = vadd.xlane.f32.xlu0 %v2396
    %v2398 = vpop.xlane.xlu0 %2397
    %v2399 = vsel %vm542, %v2379, 0.0
    %2400 = vadd.xlane.f32.xlu0 %v2399
    %v2401 = vpop.xlane.xlu0 %2400
    %v2402 = vsel %vm542, %v2380, 0.0
    %2403 = vadd.xlane.f32.xlu0 %v2402
    %v2404 = vpop.xlane.xlu0 %2403
    %vm2405 = vcmp.gt.f32.partialorder %v2383, 0.0
    %vm2406 = vcmp.gt.f32.partialorder %v2386, 0.0
    %vm2407 = vcmp.gt.f32.partialorder %v2389, 0.0
    %vm2408 = vcmp.gt.f32.partialorder %v2392, 0.0
    %vm2409 = vcmp.gt.f32.partialorder %v2395, 0.0
    %vm2410 = vcmp.gt.f32.partialorder %v2398, 0.0
    %vm2411 = vcmp.gt.f32.partialorder %v2401, 0.0
    %vm2412 = vcmp.gt.f32.partialorder %v2404, 0.0
    %v2413 = vsel %vm2405, %v2383, 1.0
    %v2414 = vsel %vm2406, %v2386, 1.0
    %v2415 = vsel %vm2407, %v2389, 1.0
    %v2416 = vsel %vm2408, %v2392, 1.0
    %v2417 = vsel %vm2409, %v2395, 1.0
    %v2418 = vsel %vm2410, %v2398, 1.0
    %v2419 = vsel %vm2411, %v2401, 1.0
    %v2420 = vsel %vm2412, %v2404, 1.0
    %v2421 = vrcp.pop %v2413
    %v2422 = vrcp.pop %v2414
    %v2423 = vrcp.pop %v2415
    %v2424 = vrcp.pop %v2416
    %v2425 = vrcp.pop %v2417
    %v2426 = vrcp.pop %v2418
    %v2427 = vrcp.pop %v2419
    %v2428 = vrcp.pop %v2420
    %v2429 = vmul.f32 %v2373, %v2421
    %v2430 = vmul.f32 %v2374, %v2422
    %v2431 = vmul.f32 %v2375, %v2423
    %v2432 = vmul.f32 %v2376, %v2424
    %v2433 = vmul.f32 %v2377, %v2425
    %v2434 = vmul.f32 %v2378, %v2426
    %v2435 = vmul.f32 %v2379, %v2427
    %v2436 = vmul.f32 %v2380, %v2428
    %v2437 = vpack.c.bf16 %v2430, %v2429
    %v2438 = vpack.c.bf16 %v2432, %v2431
    %v2439 = vpack.c.bf16 %v2434, %v2433
    %v2440 = vpack.c.bf16 %v2436, %v2435
    %2445 = vrot.lane.b32.xlu0 %v2064, 120
    %v2446 = vpop.permute.xlu0 %2445
    %2447 = vrot.lane.b32.xlu0 %v2065, 120
    %v2448 = vpop.permute.xlu0 %2447
    %2449 = vrot.lane.b32.xlu0 %v2066, 120
    %v2450 = vpop.permute.xlu0 %2449
    %2451 = vrot.lane.b32.xlu0 %v2067, 120
    %v2452 = vpop.permute.xlu0 %2451
    %v2458 = vsel %vm542, %v2437, 0
    %v2461 = vsel %vm542, %v2438, 0
    %v2464 = vsel %vm542, %v2439, 0
    %v2467 = vsel %vm542, %v2440, 0
    %2469 = vmatprep.subr.bf16.mxu0 0
    %2470 = vmatpush1.bf16.msra.mxu0 %v2446
    %2471 = vmatprep.subr.bf16.mxu0 0
    %2472 = vmatpush1.bf16.msra.mxu0 %v2448
    %2473 = vmatprep.subr.bf16.mxu0 0
    %2474 = vmatpush1.bf16.msra.mxu0 %v2450
    %2475 = vmatprep.subr.bf16.mxu0 0
    %2476 = vmatpush1.bf16.msra.mxu0 %v2452
    %2477 = vmatprep.subr.bf16.mxu0 0
    %2478 = vmatpush1.bf16.msra.mxu0 0
    %2479 = vmatprep.subr.bf16.mxu0 0
    %2480 = vmatpush1.bf16.msra.mxu0 0
    %2481 = vmatprep.subr.bf16.mxu0 0
    %2482 = vmatpush1.bf16.msra.mxu0 0
    %2483 = vmatprep.subr.bf16.mxu0 0
    %2484 = vmatpush1.bf16.msra.mxu0 0
    %2485 = vmatprep.subr.bf16.mxu0 0
    %2486 = vmatpush1.bf16.msra.mxu0 0
    %2487 = vmatprep.subr.bf16.mxu0 0
    %2488 = vmatpush1.bf16.msra.mxu0 0
    %2489 = vmatprep.subr.bf16.mxu0 0
    %2490 = vmatpush1.bf16.msra.mxu0 0
    %2491 = vmatprep.subr.bf16.mxu0 0
    %2492 = vmatpush1.bf16.msra.mxu0 0
    %2493 = vmatprep.subr.bf16.mxu0 0
    %2494 = vmatpush1.bf16.msra.mxu0 0
    %2495 = vmatprep.subr.bf16.mxu0 0
    %2496 = vmatpush1.bf16.msra.mxu0 0
    %2497 = vmatprep.subr.bf16.mxu0 0
    %2498 = vmatpush1.bf16.msra.mxu0 0
    %2499 = vmatprep.subr.bf16.mxu0 0
    %2500 = vmatpush1.bf16.msra.mxu0 0
    %2501 = vmatprep.mubr.bf16.mxu0 0
    %2502 = vmatmul.mubr.bf16.gmra.mrb[0].mxu0 %v2458
    %v2503 = vpop.f32.mrb[0].mxu0
    %v2504 = vadd.f32 0.0, %v2503
    %v2505 = vpop.f32.mrb[0].mxu0
    %v2506 = vpop.f32.mrb[0].mxu0
    %v2507 = vadd.f32 0.0, %v2506
    %v2508 = vpop.f32.mrb[0].mxu0
    %2509 = vmatprep.mubr.bf16.mxu0 0
    %2510 = vmatmul.mubr.bf16.gmra.mrb[0].mxu0 %v2461
    %v2511 = vpop.f32.mrb[0].mxu0
    %v2512 = vadd.f32 0.0, %v2511
    %v2513 = vpop.f32.mrb[0].mxu0
    %v2514 = vpop.f32.mrb[0].mxu0
    %v2515 = vadd.f32 0.0, %v2514
    %v2516 = vpop.f32.mrb[0].mxu0
    %2517 = vmatprep.mubr.bf16.mxu0 0
    %2518 = vmatmul.mubr.bf16.gmra.mrb[0].mxu0 %v2464
    %v2519 = vpop.f32.mrb[0].mxu0
    %v2520 = vadd.f32 0.0, %v2519
    %v2521 = vpop.f32.mrb[0].mxu0
    %v2522 = vpop.f32.mrb[0].mxu0
    %v2523 = vadd.f32 0.0, %v2522
    %v2524 = vpop.f32.mrb[0].mxu0
    %2525 = vmatprep.mubr.bf16.mxu0 0
    %2526 = vmatmul.mubr.bf16.gmra.mrb[0].mxu0 %v2467
    %v2527 = vpop.f32.mrb[0].mxu0
    %v2528 = vadd.f32 0.0, %v2527
    %v2529 = vpop.f32.mrb[0].mxu0
    %v2530 = vpop.f32.mrb[0].mxu0
    %v2531 = vadd.f32 0.0, %v2530
    %v2532 = vpop.f32.mrb[0].mxu0
    %2533 = vdwg.mxu0
    %vm2534 = vcmp.gt.f32.partialorder %v2504, 0.0
    %vm2535 = vcmp.gt.f32.partialorder %v2507, 0.0
    %vm2536 = vcmp.gt.f32.partialorder %v2512, 0.0
    %vm2537 = vcmp.gt.f32.partialorder %v2515, 0.0
    %vm2538 = vcmp.gt.f32.partialorder %v2520, 0.0
    %vm2539 = vcmp.gt.f32.partialorder %v2523, 0.0
    %vm2540 = vcmp.gt.f32.partialorder %v2528, 0.0
    %vm2541 = vcmp.gt.f32.partialorder %v2531, 0.0
    %v2542 = vmul.f32 %v2504, 1.442695
    %v2543 = vpow.pop %v2542
    %v2544 = vmul.f32 %v2507, 1.442695
    %v2545 = vpow.pop %v2544
    %v2546 = vmul.f32 %v2512, 1.442695
    %v2547 = vpow.pop %v2546
    %v2548 = vmul.f32 %v2515, 1.442695
    %v2549 = vpow.pop %v2548
    %v2550 = vmul.f32 %v2520, 1.442695
    %v2551 = vpow.pop %v2550
    %v2552 = vmul.f32 %v2523, 1.442695
    %v2553 = vpow.pop %v2552
    %v2554 = vmul.f32 %v2528, 1.442695
    %v2555 = vpow.pop %v2554
    %v2556 = vmul.f32 %v2531, 1.442695
    %v2557 = vpow.pop %v2556
    %v2558 = vsub.f32 %v2543, 1.0
    %v2559 = vsub.f32 %v2545, 1.0
    %v2560 = vsub.f32 %v2547, 1.0
    %v2561 = vsub.f32 %v2549, 1.0
    %v2562 = vsub.f32 %v2551, 1.0
    %v2563 = vsub.f32 %v2553, 1.0
    %v2564 = vsub.f32 %v2555, 1.0
    %v2565 = vsub.f32 %v2557, 1.0
    %v2566 = vsel %vm2534, %v2504, %v2558
    %v2567 = vsel %vm2535, %v2507, %v2559
    %v2568 = vsel %vm2536, %v2512, %v2560
    %v2569 = vsel %vm2537, %v2515, %v2561
    %v2570 = vsel %vm2538, %v2520, %v2562
    %v2571 = vsel %vm2539, %v2523, %v2563
    %v2572 = vsel %vm2540, %v2528, %v2564
    %v2573 = vsel %vm2541, %v2531, %v2565
    %v2575 = vsel %vm1113, %v2566, 0
    %v2578 = vsel %vm1113, %v2567, 0
    %v2581 = vsel %vm1113, %v2568, 0
    %v2584 = vsel %vm1113, %v2569, 0
    %v2587 = vsel %vm1113, %v2570, 0
    %v2590 = vsel %vm1113, %v2571, 0
    %v2593 = vsel %vm1113, %v2572, 0
    %v2596 = vsel %vm1113, %v2573, 0
    %2598 = vmatprep.subr.mxu0 0.0
    %2599 = vmatpush1.msra.mxu0 %v1799
    %2600 = vmatprep.subr.mxu0 0.0
    %2601 = vmatpush1.msra.mxu0 0.0
    %2602 = vmatprep.subr.mxu0 0.0
    %2603 = vmatpush1.msra.mxu0 0.0
    %2604 = vmatprep.subr.mxu0 0.0
    %2605 = vmatpush1.msra.mxu0 0.0
    %2606 = vmatprep.subr.mxu0 0.0
    %2607 = vmatpush1.msra.mxu0 0.0
    %2608 = vmatprep.subr.mxu0 0.0
    %2609 = vmatpush1.msra.mxu0 0.0
    %2610 = vmatprep.subr.mxu0 0.0
    %2611 = vmatpush1.msra.mxu0 0.0
    %2612 = vmatprep.subr.mxu0 0.0
    %2613 = vmatpush1.msra.mxu0 0.0
    %2614 = vmatprep.subr.mxu0 0.0
    %2615 = vmatpush1.msra.mxu0 0.0
    %2616 = vmatprep.subr.mxu0 0.0
    %2617 = vmatpush1.msra.mxu0 0.0
    %2618 = vmatprep.subr.mxu0 0.0
    %2619 = vmatpush1.msra.mxu0 0.0
    %2620 = vmatprep.subr.mxu0 0.0
    %2621 = vmatpush1.msra.mxu0 0.0
    %2622 = vmatprep.subr.mxu0 0.0
    %2623 = vmatpush1.msra.mxu0 0.0
    %2624 = vmatprep.subr.mxu0 0.0
    %2625 = vmatpush1.msra.mxu0 0.0
    %2626 = vmatprep.subr.mxu0 0.0
    %2627 = vmatpush1.msra.mxu0 0.0
    %2628 = vmatprep.subr.mxu0 0.0
    %2629 = vmatpush1.msra.mxu0 0.0
    %2630 = vmatprep.subr.mxu0 0.0
    %2631 = vmatpush1.msra.mxu0 0.0
    %2632 = vmatprep.subr.mxu0 0.0
    %2633 = vmatpush1.msra.mxu0 0.0
    %2634 = vmatprep.subr.mxu0 0.0
    %2635 = vmatpush1.msra.mxu0 0.0
    %2636 = vmatprep.subr.mxu0 0.0
    %2637 = vmatpush1.msra.mxu0 0.0
    %2638 = vmatprep.subr.mxu0 0.0
    %2639 = vmatpush1.msra.mxu0 0.0
    %2640 = vmatprep.subr.mxu0 0.0
    %2641 = vmatpush1.msra.mxu0 0.0
    %2642 = vmatprep.subr.mxu0 0.0
    %2643 = vmatpush1.msra.mxu0 0.0
    %2644 = vmatprep.subr.mxu0 0.0
    %2645 = vmatpush1.msra.mxu0 0.0
    %2646 = vmatprep.subr.mxu0 0.0
    %2647 = vmatpush1.msra.mxu0 0.0
    %2648 = vmatprep.subr.mxu0 0.0
    %2649 = vmatpush1.msra.mxu0 0.0
    %2650 = vmatprep.subr.mxu0 0.0
    %2651 = vmatpush1.msra.mxu0 0.0
    %2652 = vmatprep.subr.mxu0 0.0
    %2653 = vmatpush1.msra.mxu0 0.0
    %2654 = vmatprep.subr.mxu0 0.0
    %2655 = vmatpush1.msra.mxu0 0.0
    %2656 = vmatprep.subr.mxu0 0.0
    %2657 = vmatpush1.msra.mxu0 0.0
    %2658 = vmatprep.subr.mxu0 0.0
    %2659 = vmatpush1.msra.mxu0 0.0
    %2660 = vmatprep.subr.mxu0 0.0
    %2661 = vmatpush1.msra.mxu0 0.0
    %2662 = vmatprep.mubr.f32.mxu0 0.0
    %2663 = vmatmul.mubr.f32.gmra.mrb[0].mxu0 %v2575
    %v2664 = vpop.f32.mrb[0].mxu0
    %v2665 = vadd.f32 0.0, %v2664
    %v2666 = vpop.f32.mrb[0].mxu0
    %2667 = vmatprep.mubr.f32.mxu0 0.0
    %2668 = vmatmul.mubr.f32.gmra.mrb[0].mxu0 %v2578
    %v2669 = vpop.f32.mrb[0].mxu0
    %v2670 = vadd.f32 0.0, %v2669
    %v2671 = vpop.f32.mrb[0].mxu0
    %2672 = vmatprep.mubr.f32.mxu0 0.0
    %2673 = vmatmul.mubr.f32.gmra.mrb[0].mxu0 %v2581
    %v2674 = vpop.f32.mrb[0].mxu0
    %v2675 = vadd.f32 0.0, %v2674
    %v2676 = vpop.f32.mrb[0].mxu0
    %2677 = vmatprep.mubr.f32.mxu0 0.0
    %2678 = vmatmul.mubr.f32.gmra.mrb[0].mxu0 %v2584
    %v2679 = vpop.f32.mrb[0].mxu0
    %v2680 = vadd.f32 0.0, %v2679
    %v2681 = vpop.f32.mrb[0].mxu0
    %2682 = vmatprep.mubr.f32.mxu0 0.0
    %2683 = vmatmul.mubr.f32.gmra.mrb[0].mxu0 %v2587
    %v2684 = vpop.f32.mrb[0].mxu0
    %v2685 = vadd.f32 0.0, %v2684
    %v2686 = vpop.f32.mrb[0].mxu0
    %2687 = vmatprep.mubr.f32.mxu0 0.0
    %2688 = vmatmul.mubr.f32.gmra.mrb[0].mxu0 %v2590
    %v2689 = vpop.f32.mrb[0].mxu0
    %v2690 = vadd.f32 0.0, %v2689
    %v2691 = vpop.f32.mrb[0].mxu0
    %2692 = vmatprep.mubr.f32.mxu0 0.0
    %2693 = vmatmul.mubr.f32.gmra.mrb[0].mxu0 %v2593
    %v2694 = vpop.f32.mrb[0].mxu0
    %v2695 = vadd.f32 0.0, %v2694
    %v2696 = vpop.f32.mrb[0].mxu0
    %2697 = vmatprep.mubr.f32.mxu0 0.0
    %2698 = vmatmul.mubr.f32.gmra.mrb[0].mxu0 %v2596
    %v2699 = vpop.f32.mrb[0].mxu0
    %v2700 = vadd.f32 0.0, %v2699
    %v2701 = vpop.f32.mrb[0].mxu0
    %2702 = vdwg.mxu0
    %v2704 = vsel %vm1113, %v2177, 0
    %v2707 = vsel %vm1113, %v2178, 0
    %v2710 = vsel %vm1113, %v2179, 0
    %v2713 = vsel %vm1113, %v2180, 0
    %v2716 = vsel %vm1113, %v2181, 0
    %v2719 = vsel %vm1113, %v2182, 0
    %v2722 = vsel %vm1113, %v2183, 0
    %v2725 = vsel %vm1113, %v2184, 0
    %2727 = vmatprep.subr.mxu0 0.0
    %2728 = vmatpush1.msra.mxu0 %v1798
    %2729 = vmatprep.subr.mxu0 0.0
    %2730 = vmatpush1.msra.mxu0 0.0
    %2731 = vmatprep.subr.mxu0 0.0
    %2732 = vmatpush1.msra.mxu0 0.0
    %2733 = vmatprep.subr.mxu0 0.0
    %2734 = vmatpush1.msra.mxu0 0.0
    %2735 = vmatprep.subr.mxu0 0.0
    %2736 = vmatpush1.msra.mxu0 0.0
    %2737 = vmatprep.subr.mxu0 0.0
    %2738 = vmatpush1.msra.mxu0 0.0
    %2739 = vmatprep.subr.mxu0 0.0
    %2740 = vmatpush1.msra.mxu0 0.0
    %2741 = vmatprep.subr.mxu0 0.0
    %2742 = vmatpush1.msra.mxu0 0.0
    %2743 = vmatprep.subr.mxu0 0.0
    %2744 = vmatpush1.msra.mxu0 0.0
    %2745 = vmatprep.subr.mxu0 0.0
    %2746 = vmatpush1.msra.mxu0 0.0
    %2747 = vmatprep.subr.mxu0 0.0
    %2748 = vmatpush1.msra.mxu0 0.0
    %2749 = vmatprep.subr.mxu0 0.0
    %2750 = vmatpush1.msra.mxu0 0.0
    %2751 = vmatprep.subr.mxu0 0.0
    %2752 = vmatpush1.msra.mxu0 0.0
    %2753 = vmatprep.subr.mxu0 0.0
    %2754 = vmatpush1.msra.mxu0 0.0
    %2755 = vmatprep.subr.mxu0 0.0
    %2756 = vmatpush1.msra.mxu0 0.0
    %2757 = vmatprep.subr.mxu0 0.0
    %2758 = vmatpush1.msra.mxu0 0.0
    %2759 = vmatprep.subr.mxu0 0.0
    %2760 = vmatpush1.msra.mxu0 0.0
    %2761 = vmatprep.subr.mxu0 0.0
    %2762 = vmatpush1.msra.mxu0 0.0
    %2763 = vmatprep.subr.mxu0 0.0
    %2764 = vmatpush1.msra.mxu0 0.0
    %2765 = vmatprep.subr.mxu0 0.0
    %2766 = vmatpush1.msra.mxu0 0.0
    %2767 = vmatprep.subr.mxu0 0.0
    %2768 = vmatpush1.msra.mxu0 0.0
    %2769 = vmatprep.subr.mxu0 0.0
    %2770 = vmatpush1.msra.mxu0 0.0
    %2771 = vmatprep.subr.mxu0 0.0
    %2772 = vmatpush1.msra.mxu0 0.0
    %2773 = vmatprep.subr.mxu0 0.0
    %2774 = vmatpush1.msra.mxu0 0.0
    %2775 = vmatprep.subr.mxu0 0.0
    %2776 = vmatpush1.msra.mxu0 0.0
    %2777 = vmatprep.subr.mxu0 0.0
    %2778 = vmatpush1.msra.mxu0 0.0
    %2779 = vmatprep.subr.mxu0 0.0
    %2780 = vmatpush1.msra.mxu0 0.0
    %2781 = vmatprep.subr.mxu0 0.0
    %2782 = vmatpush1.msra.mxu0 0.0
    %2783 = vmatprep.subr.mxu0 0.0
    %2784 = vmatpush1.msra.mxu0 0.0
    %2785 = vmatprep.subr.mxu0 0.0
    %2786 = vmatpush1.msra.mxu0 0.0
    %2787 = vmatprep.subr.mxu0 0.0
    %2788 = vmatpush1.msra.mxu0 0.0
    %2789 = vmatprep.subr.mxu0 0.0
    %2790 = vmatpush1.msra.mxu0 0.0
    %2791 = vmatprep.mubr.f32.mxu0 0.0
    %2792 = vmatmul.mubr.f32.gmra.mrb[0].mxu0 %v2704
    %v2793 = vpop.f32.mrb[0].mxu0
    %v2794 = vadd.f32 %v2665, %v2793
    %v2795 = vpop.f32.mrb[0].mxu0
    %2796 = vmatprep.mubr.f32.mxu0 0.0
    %2797 = vmatmul.mubr.f32.gmra.mrb[0].mxu0 %v2707
    %v2798 = vpop.f32.mrb[0].mxu0
    %v2799 = vadd.f32 %v2670, %v2798
    %v2800 = vpop.f32.mrb[0].mxu0
    %2801 = vmatprep.mubr.f32.mxu0 0.0
    %2802 = vmatmul.mubr.f32.gmra.mrb[0].mxu0 %v2710
    %v2803 = vpop.f32.mrb[0].mxu0
    %v2804 = vadd.f32 %v2675, %v2803
    %v2805 = vpop.f32.mrb[0].mxu0
    %2806 = vmatprep.mubr.f32.mxu0 0.0
    %2807 = vmatmul.mubr.f32.gmra.mrb[0].mxu0 %v2713
    %v2808 = vpop.f32.mrb[0].mxu0
    %v2809 = vadd.f32 %v2680, %v2808
    %v2810 = vpop.f32.mrb[0].mxu0
    %2811 = vmatprep.mubr.f32.mxu0 0.0
    %2812 = vmatmul.mubr.f32.gmra.mrb[0].mxu0 %v2716
    %v2813 = vpop.f32.mrb[0].mxu0
    %v2814 = vadd.f32 %v2685, %v2813
    %v2815 = vpop.f32.mrb[0].mxu0
    %2816 = vmatprep.mubr.f32.mxu0 0.0
    %2817 = vmatmul.mubr.f32.gmra.mrb[0].mxu0 %v2719
    %v2818 = vpop.f32.mrb[0].mxu0
    %v2819 = vadd.f32 %v2690, %v2818
    %v2820 = vpop.f32.mrb[0].mxu0
    %2821 = vmatprep.mubr.f32.mxu0 0.0
    %2822 = vmatmul.mubr.f32.gmra.mrb[0].mxu0 %v2722
    %v2823 = vpop.f32.mrb[0].mxu0
    %v2824 = vadd.f32 %v2695, %v2823
    %v2825 = vpop.f32.mrb[0].mxu0
    %2826 = vmatprep.mubr.f32.mxu0 0.0
    %2827 = vmatmul.mubr.f32.gmra.mrb[0].mxu0 %v2725
    %v2828 = vpop.f32.mrb[0].mxu0
    %v2829 = vadd.f32 %v2700, %v2828
    %v2830 = vpop.f32.mrb[0].mxu0
    %2831 = vdwg.mxu0
    %v2833 = vlaneseq
    %v2834 = vshrl.u32 %v2833, 7
    %v2835 = vsub.s32 0, %v2834
    %v2836 = vrot.slane %v1797, %v2835
    %v2838 = vadd.f32 %v2836, %v2794
    %v2839 = vadd.f32 %v2836, %v2799
    %v2840 = vadd.f32 %v2836, %v2804
    %v2841 = vadd.f32 %v2836, %v2809
    %v2842 = vadd.f32 %v2836, %v2814
    %v2843 = vadd.f32 %v2836, %v2819
    %v2844 = vadd.f32 %v2836, %v2824
    %v2845 = vadd.f32 %v2836, %v2829
    %vm2846 = vcmp.gt.f32.partialorder %v1378, 0.0
    %vm2847 = vcmp.gt.f32.partialorder %v1379, 0.0
    %vm2848 = vcmp.gt.f32.partialorder %v1380, 0.0
    %vm2849 = vcmp.gt.f32.partialorder %v1381, 0.0
    %vm2850 = vcmp.gt.f32.partialorder %v1382, 0.0
    %vm2851 = vcmp.gt.f32.partialorder %v1383, 0.0
    %vm2852 = vcmp.gt.f32.partialorder %v1384, 0.0
    %vm2853 = vcmp.gt.f32.partialorder %v1385, 0.0
    %v2854 = vmul.f32 %v1378, 1.442695
    %v2855 = vpow.pop %v2854
    %v2856 = vmul.f32 %v1379, 1.442695
    %v2857 = vpow.pop %v2856
    %v2858 = vmul.f32 %v1380, 1.442695
    %v2859 = vpow.pop %v2858
    %v2860 = vmul.f32 %v1381, 1.442695
    %v2861 = vpow.pop %v2860
    %v2862 = vmul.f32 %v1382, 1.442695
    %v2863 = vpow.pop %v2862
    %v2864 = vmul.f32 %v1383, 1.442695
    %v2865 = vpow.pop %v2864
    %v2866 = vmul.f32 %v1384, 1.442695
    %v2867 = vpow.pop %v2866
    %v2868 = vmul.f32 %v1385, 1.442695
    %v2869 = vpow.pop %v2868
    %v2870 = vsub.f32 %v2855, 1.0
    %v2871 = vsub.f32 %v2857, 1.0
    %v2872 = vsub.f32 %v2859, 1.0
    %v2873 = vsub.f32 %v2861, 1.0
    %v2874 = vsub.f32 %v2863, 1.0
    %v2875 = vsub.f32 %v2865, 1.0
    %v2876 = vsub.f32 %v2867, 1.0
    %v2877 = vsub.f32 %v2869, 1.0
    %v2878 = vsel %vm2846, %v1378, %v2870
    %v2879 = vsel %vm2847, %v1379, %v2871
    %v2880 = vsel %vm2848, %v1380, %v2872
    %v2881 = vsel %vm2849, %v1381, %v2873
    %v2882 = vsel %vm2850, %v1382, %v2874
    %v2883 = vsel %vm2851, %v1383, %v2875
    %v2884 = vsel %vm2852, %v1384, %v2876
    %v2885 = vsel %vm2853, %v1385, %v2877
    %v2886 = vld [vmem:[%s20] sm:$0xff]
    %v2887 = vld [vmem:[%s21] sm:$0x1]
    %v2889 = vlaneseq
    %v2890 = vshrl.u32 %v2889, 7
    %v2891 = vsub.s32 0, %v2890
    %v2892 = vrot.slane %v2887, %v2891
    %v2895 = vsel %vm1113, %v2878, 0
    %v2898 = vsel %vm1113, %v2879, 0
    %v2901 = vsel %vm1113, %v2880, 0
    %v2904 = vsel %vm1113, %v2881, 0
    %v2907 = vsel %vm1113, %v2882, 0
    %v2910 = vsel %vm1113, %v2883, 0
    %v2913 = vsel %vm1113, %v2884, 0
    %v2916 = vsel %vm1113, %v2885, 0
    %2918 = vmatprep.subr.mxu0 0.0
    %2919 = vmatpush1.msra.mxu0 %v2886
    %2920 = vmatprep.subr.mxu0 0.0
    %2921 = vmatpush1.msra.mxu0 0.0
    %2922 = vmatprep.subr.mxu0 0.0
    %2923 = vmatpush1.msra.mxu0 0.0
    %2924 = vmatprep.subr.mxu0 0.0
    %2925 = vmatpush1.msra.mxu0 0.0
    %2926 = vmatprep.subr.mxu0 0.0
    %2927 = vmatpush1.msra.mxu0 0.0
    %2928 = vmatprep.subr.mxu0 0.0
    %2929 = vmatpush1.msra.mxu0 0.0
    %2930 = vmatprep.subr.mxu0 0.0
    %2931 = vmatpush1.msra.mxu0 0.0
    %2932 = vmatprep.subr.mxu0 0.0
    %2933 = vmatpush1.msra.mxu0 0.0
    %2934 = vmatprep.subr.mxu0 0.0
    %2935 = vmatpush1.msra.mxu0 0.0
    %2936 = vmatprep.subr.mxu0 0.0
    %2937 = vmatpush1.msra.mxu0 0.0
    %2938 = vmatprep.subr.mxu0 0.0
    %2939 = vmatpush1.msra.mxu0 0.0
    %2940 = vmatprep.subr.mxu0 0.0
    %2941 = vmatpush1.msra.mxu0 0.0
    %2942 = vmatprep.subr.mxu0 0.0
    %2943 = vmatpush1.msra.mxu0 0.0
    %2944 = vmatprep.subr.mxu0 0.0
    %2945 = vmatpush1.msra.mxu0 0.0
    %2946 = vmatprep.subr.mxu0 0.0
    %2947 = vmatpush1.msra.mxu0 0.0
    %2948 = vmatprep.subr.mxu0 0.0
    %2949 = vmatpush1.msra.mxu0 0.0
    %2950 = vmatprep.subr.mxu0 0.0
    %2951 = vmatpush1.msra.mxu0 0.0
    %2952 = vmatprep.subr.mxu0 0.0
    %2953 = vmatpush1.msra.mxu0 0.0
    %2954 = vmatprep.subr.mxu0 0.0
    %2955 = vmatpush1.msra.mxu0 0.0
    %2956 = vmatprep.subr.mxu0 0.0
    %2957 = vmatpush1.msra.mxu0 0.0
    %2958 = vmatprep.subr.mxu0 0.0
    %2959 = vmatpush1.msra.mxu0 0.0
    %2960 = vmatprep.subr.mxu0 0.0
    %2961 = vmatpush1.msra.mxu0 0.0
    %2962 = vmatprep.subr.mxu0 0.0
    %2963 = vmatpush1.msra.mxu0 0.0
    %2964 = vmatprep.subr.mxu0 0.0
    %2965 = vmatpush1.msra.mxu0 0.0
    %2966 = vmatprep.subr.mxu0 0.0
    %2967 = vmatpush1.msra.mxu0 0.0
    %2968 = vmatprep.subr.mxu0 0.0
    %2969 = vmatpush1.msra.mxu0 0.0
    %2970 = vmatprep.subr.mxu0 0.0
    %2971 = vmatpush1.msra.mxu0 0.0
    %2972 = vmatprep.subr.mxu0 0.0
    %2973 = vmatpush1.msra.mxu0 0.0
    %2974 = vmatprep.subr.mxu0 0.0
    %2975 = vmatpush1.msra.mxu0 0.0
    %2976 = vmatprep.subr.mxu0 0.0
    %2977 = vmatpush1.msra.mxu0 0.0
    %2978 = vmatprep.subr.mxu0 0.0
    %2979 = vmatpush1.msra.mxu0 0.0
    %2980 = vmatprep.subr.mxu0 0.0
    %2981 = vmatpush1.msra.mxu0 0.0
    %2982 = vmatprep.mubr.f32.mxu0 0.0
    %2983 = vmatmul.mubr.f32.gmra.mrb[0].mxu0 %v2895
    %v2984 = vpop.f32.mrb[0].mxu0
    %v2985 = vadd.f32 %v2892, %v2984
    %v2986 = vpop.f32.mrb[0].mxu0
    %2987 = vmatprep.mubr.f32.mxu0 0.0
    %2988 = vmatmul.mubr.f32.gmra.mrb[0].mxu0 %v2898
    %v2989 = vpop.f32.mrb[0].mxu0
    %v2990 = vadd.f32 %v2892, %v2989
    %v2991 = vpop.f32.mrb[0].mxu0
    %2992 = vmatprep.mubr.f32.mxu0 0.0
    %2993 = vmatmul.mubr.f32.gmra.mrb[0].mxu0 %v2901
    %v2994 = vpop.f32.mrb[0].mxu0
    %v2995 = vadd.f32 %v2892, %v2994
    %v2996 = vpop.f32.mrb[0].mxu0
    %2997 = vmatprep.mubr.f32.mxu0 0.0
    %2998 = vmatmul.mubr.f32.gmra.mrb[0].mxu0 %v2904
    %v2999 = vpop.f32.mrb[0].mxu0
    %v3000 = vadd.f32 %v2892, %v2999
    %v3001 = vpop.f32.mrb[0].mxu0
    %3002 = vmatprep.mubr.f32.mxu0 0.0
    %3003 = vmatmul.mubr.f32.gmra.mrb[0].mxu0 %v2907
    %v3004 = vpop.f32.mrb[0].mxu0
    %v3005 = vadd.f32 %v2892, %v3004
    %v3006 = vpop.f32.mrb[0].mxu0
    %3007 = vmatprep.mubr.f32.mxu0 0.0
    %3008 = vmatmul.mubr.f32.gmra.mrb[0].mxu0 %v2910
    %v3009 = vpop.f32.mrb[0].mxu0
    %v3010 = vadd.f32 %v2892, %v3009
    %v3011 = vpop.f32.mrb[0].mxu0
    %3012 = vmatprep.mubr.f32.mxu0 0.0
    %3013 = vmatmul.mubr.f32.gmra.mrb[0].mxu0 %v2913
    %v3014 = vpop.f32.mrb[0].mxu0
    %v3015 = vadd.f32 %v2892, %v3014
    %v3016 = vpop.f32.mrb[0].mxu0
    %3017 = vmatprep.mubr.f32.mxu0 0.0
    %3018 = vmatmul.mubr.f32.gmra.mrb[0].mxu0 %v2916
    %v3019 = vpop.f32.mrb[0].mxu0
    %v3020 = vadd.f32 %v2892, %v3019
    %v3021 = vpop.f32.mrb[0].mxu0
    %3022 = vdwg.mxu0
    %vm3023 = vcmask 48128
    %v3024 = vsel %vm3023, %v2985, -inf
    %3025 = vmax.xlane.f32.xlu0 %v3024
    %v3026 = vpop.xlane.xlu0 %3025
    %v3027 = vsel %vm3023, %v2990, -inf
    %3028 = vmax.xlane.f32.xlu0 %v3027
    %v3029 = vpop.xlane.xlu0 %3028
    %v3030 = vsel %vm3023, %v2995, -inf
    %3031 = vmax.xlane.f32.xlu0 %v3030
    %v3032 = vpop.xlane.xlu0 %3031
    %v3033 = vsel %vm3023, %v3000, -inf
    %3034 = vmax.xlane.f32.xlu0 %v3033
    %v3035 = vpop.xlane.xlu0 %3034
    %v3036 = vsel %vm3023, %v3005, -inf
    %3037 = vmax.xlane.f32.xlu0 %v3036
    %v3038 = vpop.xlane.xlu0 %3037
    %v3039 = vsel %vm3023, %v3010, -inf
    %3040 = vmax.xlane.f32.xlu0 %v3039
    %v3041 = vpop.xlane.xlu0 %3040
    %v3042 = vsel %vm3023, %v3015, -inf
    %3043 = vmax.xlane.f32.xlu0 %v3042
    %v3044 = vpop.xlane.xlu0 %3043
    %v3045 = vsel %vm3023, %v3020, -inf
    %3046 = vmax.xlane.f32.xlu0 %v3045
    %v3047 = vpop.xlane.xlu0 %3046
    %v3048 = vsub.f32 %v2985, %v3026
    %v3049 = vsub.f32 %v2990, %v3029
    %v3050 = vsub.f32 %v2995, %v3032
    %v3051 = vsub.f32 %v3000, %v3035
    %v3052 = vsub.f32 %v3005, %v3038
    %v3053 = vsub.f32 %v3010, %v3041
    %v3054 = vsub.f32 %v3015, %v3044
    %v3055 = vsub.f32 %v3020, %v3047
    %v3056 = vmul.f32 %v3048, 1.442695
    %v3057 = vpow.pop %v3056
    %v3058 = vmul.f32 %v3049, 1.442695
    %v3059 = vpow.pop %v3058
    %v3060 = vmul.f32 %v3050, 1.442695
    %v3061 = vpow.pop %v3060
    %v3062 = vmul.f32 %v3051, 1.442695
    %v3063 = vpow.pop %v3062
    %v3064 = vmul.f32 %v3052, 1.442695
    %v3065 = vpow.pop %v3064
    %v3066 = vmul.f32 %v3053, 1.442695
    %v3067 = vpow.pop %v3066
    %v3068 = vmul.f32 %v3054, 1.442695
    %v3069 = vpow.pop %v3068
    %v3070 = vmul.f32 %v3055, 1.442695
    %v3071 = vpow.pop %v3070
    %v3072 = vsel %vm3023, %v3057, 0.0
    %3073 = vadd.xlane.f32.xlu0 %v3072
    %v3074 = vpop.xlane.xlu0 %3073
    %v3075 = vsel %vm3023, %v3059, 0.0
    %3076 = vadd.xlane.f32.xlu0 %v3075
    %v3077 = vpop.xlane.xlu0 %3076
    %v3078 = vsel %vm3023, %v3061, 0.0
    %3079 = vadd.xlane.f32.xlu0 %v3078
    %v3080 = vpop.xlane.xlu0 %3079
    %v3081 = vsel %vm3023, %v3063, 0.0
    %3082 = vadd.xlane.f32.xlu0 %v3081
    %v3083 = vpop.xlane.xlu0 %3082
    %v3084 = vsel %vm3023, %v3065, 0.0
    %3085 = vadd.xlane.f32.xlu0 %v3084
    %v3086 = vpop.xlane.xlu0 %3085
    %v3087 = vsel %vm3023, %v3067, 0.0
    %3088 = vadd.xlane.f32.xlu0 %v3087
    %v3089 = vpop.xlane.xlu0 %3088
    %v3090 = vsel %vm3023, %v3069, 0.0
    %3091 = vadd.xlane.f32.xlu0 %v3090
    %v3092 = vpop.xlane.xlu0 %3091
    %v3093 = vsel %vm3023, %v3071, 0.0
    %3094 = vadd.xlane.f32.xlu0 %v3093
    %v3095 = vpop.xlane.xlu0 %3094
    %v3096 = vrcp.pop %v3074
    %v3097 = vmul.f32 %v3057, %v3096
    %v3098 = vrcp.pop %v3077
    %v3099 = vmul.f32 %v3059, %v3098
    %v3100 = vrcp.pop %v3080
    %v3101 = vmul.f32 %v3061, %v3100
    %v3102 = vrcp.pop %v3083
    %v3103 = vmul.f32 %v3063, %v3102
    %v3104 = vrcp.pop %v3086
    %v3105 = vmul.f32 %v3065, %v3104
    %v3106 = vrcp.pop %v3089
    %v3107 = vmul.f32 %v3067, %v3106
    %v3108 = vrcp.pop %v3092
    %v3109 = vmul.f32 %v3069, %v3108
    %v3110 = vrcp.pop %v3095
    %v3111 = vmul.f32 %v3071, %v3110
    %v3112 = vld [vmem:[%s22] sm:$0xff]
    %vm3113 = vcmp.gt.f32.partialorder %v100, 0.0
    %vm3114 = vcmp.gt.f32.partialorder %v101, 0.0
    %vm3115 = vcmp.gt.f32.partialorder %v102, 0.0
    %vm3116 = vcmp.gt.f32.partialorder %v103, 0.0
    %vm3117 = vcmp.gt.f32.partialorder %v104, 0.0
    %vm3118 = vcmp.gt.f32.partialorder %v105, 0.0
    %vm3119 = vcmp.gt.f32.partialorder %v106, 0.0
    %vm3120 = vcmp.gt.f32.partialorder %v107, 0.0
    %v3121 = vmul.f32 %v100, 1.442695
    %v3122 = vpow.pop %v3121
    %v3123 = vmul.f32 %v101, 1.442695
    %v3124 = vpow.pop %v3123
    %v3125 = vmul.f32 %v102, 1.442695
    %v3126 = vpow.pop %v3125
    %v3127 = vmul.f32 %v103, 1.442695
    %v3128 = vpow.pop %v3127
    %v3129 = vmul.f32 %v104, 1.442695
    %v3130 = vpow.pop %v3129
    %v3131 = vmul.f32 %v105, 1.442695
    %v3132 = vpow.pop %v3131
    %v3133 = vmul.f32 %v106, 1.442695
    %v3134 = vpow.pop %v3133
    %v3135 = vmul.f32 %v107, 1.442695
    %v3136 = vpow.pop %v3135
    %v3137 = vsub.f32 %v3122, 1.0
    %v3138 = vsub.f32 %v3124, 1.0
    %v3139 = vsub.f32 %v3126, 1.0
    %v3140 = vsub.f32 %v3128, 1.0
    %v3141 = vsub.f32 %v3130, 1.0
    %v3142 = vsub.f32 %v3132, 1.0
    %v3143 = vsub.f32 %v3134, 1.0
    %v3144 = vsub.f32 %v3136, 1.0
    %v3145 = vsel %vm3113, %v100, %v3137
    %v3146 = vsel %vm3114, %v101, %v3138
    %v3147 = vsel %vm3115, %v102, %v3139
    %v3148 = vsel %vm3116, %v103, %v3140
    %v3149 = vsel %vm3117, %v104, %v3141
    %v3150 = vsel %vm3118, %v105, %v3142
    %v3151 = vsel %vm3119, %v106, %v3143
    %v3152 = vsel %vm3120, %v107, %v3144
    %v3153 = vld [vmem:[%s23] sm:$0xf]
    %v3155 = vsel %vm1388, %v3145, 0
    %v3158 = vsel %vm1388, %v3146, 0
    %v3161 = vsel %vm1388, %v3147, 0
    %v3164 = vsel %vm1388, %v3148, 0
    %v3167 = vsel %vm1388, %v3149, 0
    %v3170 = vsel %vm1388, %v3150, 0
    %v3173 = vsel %vm1388, %v3151, 0
    %v3176 = vsel %vm1388, %v3152, 0
    %v3179 = vsel %vm1413, %v3153, 0
    %3181 = vmatprep.subr.mxu0 0.0
    %3182 = vmatpush1.msra.mxu0 %v3179
    %3183 = vmatprep.subr.mxu0 0.0
    %3184 = vmatpush1.msra.mxu0 0.0
    %3185 = vmatprep.subr.mxu0 0.0
    %3186 = vmatpush1.msra.mxu0 0.0
    %3187 = vmatprep.subr.mxu0 0.0
    %3188 = vmatpush1.msra.mxu0 0.0
    %3189 = vmatprep.subr.mxu0 0.0
    %3190 = vmatpush1.msra.mxu0 0.0
    %3191 = vmatprep.subr.mxu0 0.0
    %3192 = vmatpush1.msra.mxu0 0.0
    %3193 = vmatprep.subr.mxu0 0.0
    %3194 = vmatpush1.msra.mxu0 0.0
    %3195 = vmatprep.subr.mxu0 0.0
    %3196 = vmatpush1.msra.mxu0 0.0
    %3197 = vmatprep.subr.mxu0 0.0
    %3198 = vmatpush1.msra.mxu0 0.0
    %3199 = vmatprep.subr.mxu0 0.0
    %3200 = vmatpush1.msra.mxu0 0.0
    %3201 = vmatprep.subr.mxu0 0.0
    %3202 = vmatpush1.msra.mxu0 0.0
    %3203 = vmatprep.subr.mxu0 0.0
    %3204 = vmatpush1.msra.mxu0 0.0
    %3205 = vmatprep.subr.mxu0 0.0
    %3206 = vmatpush1.msra.mxu0 0.0
    %3207 = vmatprep.subr.mxu0 0.0
    %3208 = vmatpush1.msra.mxu0 0.0
    %3209 = vmatprep.subr.mxu0 0.0
    %3210 = vmatpush1.msra.mxu0 0.0
    %3211 = vmatprep.subr.mxu0 0.0
    %3212 = vmatpush1.msra.mxu0 0.0
    %3213 = vmatprep.subr.mxu0 0.0
    %3214 = vmatpush1.msra.mxu0 0.0
    %3215 = vmatprep.subr.mxu0 0.0
    %3216 = vmatpush1.msra.mxu0 0.0
    %3217 = vmatprep.subr.mxu0 0.0
    %3218 = vmatpush1.msra.mxu0 0.0
    %3219 = vmatprep.subr.mxu0 0.0
    %3220 = vmatpush1.msra.mxu0 0.0
    %3221 = vmatprep.subr.mxu0 0.0
    %3222 = vmatpush1.msra.mxu0 0.0
    %3223 = vmatprep.subr.mxu0 0.0
    %3224 = vmatpush1.msra.mxu0 0.0
    %3225 = vmatprep.subr.mxu0 0.0
    %3226 = vmatpush1.msra.mxu0 0.0
    %3227 = vmatprep.subr.mxu0 0.0
    %3228 = vmatpush1.msra.mxu0 0.0
    %3229 = vmatprep.subr.mxu0 0.0
    %3230 = vmatpush1.msra.mxu0 0.0
    %3231 = vmatprep.subr.mxu0 0.0
    %3232 = vmatpush1.msra.mxu0 0.0
    %3233 = vmatprep.subr.mxu0 0.0
    %3234 = vmatpush1.msra.mxu0 0.0
    %3235 = vmatprep.subr.mxu0 0.0
    %3236 = vmatpush1.msra.mxu0 0.0
    %3237 = vmatprep.subr.mxu0 0.0
    %3238 = vmatpush1.msra.mxu0 0.0
    %3239 = vmatprep.subr.mxu0 0.0
    %3240 = vmatpush1.msra.mxu0 0.0
    %3241 = vmatprep.subr.mxu0 0.0
    %3242 = vmatpush1.msra.mxu0 0.0
    %3243 = vmatprep.subr.mxu0 0.0
    %3244 = vmatpush1.msra.mxu0 0.0
    %3245 = vmatprep.mubr.f32.mxu0 0.0
    %3246 = vmatmul.mubr.f32.gmra.mrb[0].mxu0 %v3155
    %v3247 = vpop.f32.mrb[0].mxu0
    %v3248 = vadd.f32 0.0, %v3247
    %v3249 = vpop.f32.mrb[0].mxu0
    %3250 = vmatprep.mubr.f32.mxu0 0.0
    %3251 = vmatmul.mubr.f32.gmra.mrb[0].mxu0 %v3158
    %v3252 = vpop.f32.mrb[0].mxu0
    %v3253 = vadd.f32 0.0, %v3252
    %v3254 = vpop.f32.mrb[0].mxu0
    %3255 = vmatprep.mubr.f32.mxu0 0.0
    %3256 = vmatmul.mubr.f32.gmra.mrb[0].mxu0 %v3161
    %v3257 = vpop.f32.mrb[0].mxu0
    %v3258 = vadd.f32 0.0, %v3257
    %v3259 = vpop.f32.mrb[0].mxu0
    %3260 = vmatprep.mubr.f32.mxu0 0.0
    %3261 = vmatmul.mubr.f32.gmra.mrb[0].mxu0 %v3164
    %v3262 = vpop.f32.mrb[0].mxu0
    %v3263 = vadd.f32 0.0, %v3262
    %v3264 = vpop.f32.mrb[0].mxu0
    %3265 = vmatprep.mubr.f32.mxu0 0.0
    %3266 = vmatmul.mubr.f32.gmra.mrb[0].mxu0 %v3167
    %v3267 = vpop.f32.mrb[0].mxu0
    %v3268 = vadd.f32 0.0, %v3267
    %v3269 = vpop.f32.mrb[0].mxu0
    %3270 = vmatprep.mubr.f32.mxu0 0.0
    %3271 = vmatmul.mubr.f32.gmra.mrb[0].mxu0 %v3170
    %v3272 = vpop.f32.mrb[0].mxu0
    %v3273 = vadd.f32 0.0, %v3272
    %v3274 = vpop.f32.mrb[0].mxu0
    %3275 = vmatprep.mubr.f32.mxu0 0.0
    %3276 = vmatmul.mubr.f32.gmra.mrb[0].mxu0 %v3173
    %v3277 = vpop.f32.mrb[0].mxu0
    %v3278 = vadd.f32 0.0, %v3277
    %v3279 = vpop.f32.mrb[0].mxu0
    %3280 = vmatprep.mubr.f32.mxu0 0.0
    %3281 = vmatmul.mubr.f32.gmra.mrb[0].mxu0 %v3176
    %v3282 = vpop.f32.mrb[0].mxu0
    %v3283 = vadd.f32 0.0, %v3282
    %v3284 = vpop.f32.mrb[0].mxu0
    %3285 = vdwg.mxu0
    %3286 = vmatprep.subr.mxu0 0.0
    %3287 = vmatpush1.msra.mxu0 %v3112
    %3288 = vmatprep.subr.mxu0 0.0
    %3289 = vmatpush1.msra.mxu0 0.0
    %3290 = vmatprep.subr.mxu0 0.0
    %3291 = vmatpush1.msra.mxu0 0.0
    %3292 = vmatprep.subr.mxu0 0.0
    %3293 = vmatpush1.msra.mxu0 0.0
    %3294 = vmatprep.subr.mxu0 0.0
    %3295 = vmatpush1.msra.mxu0 0.0
    %3296 = vmatprep.subr.mxu0 0.0
    %3297 = vmatpush1.msra.mxu0 0.0
    %3298 = vmatprep.subr.mxu0 0.0
    %3299 = vmatpush1.msra.mxu0 0.0
    %3300 = vmatprep.subr.mxu0 0.0
    %3301 = vmatpush1.msra.mxu0 0.0
    %3302 = vmatprep.subr.mxu0 0.0
    %3303 = vmatpush1.msra.mxu0 0.0
    %3304 = vmatprep.subr.mxu0 0.0
    %3305 = vmatpush1.msra.mxu0 0.0
    %3306 = vmatprep.subr.mxu0 0.0
    %3307 = vmatpush1.msra.mxu0 0.0
    %3308 = vmatprep.subr.mxu0 0.0
    %3309 = vmatpush1.msra.mxu0 0.0
    %3310 = vmatprep.subr.mxu0 0.0
    %3311 = vmatpush1.msra.mxu0 0.0
    %3312 = vmatprep.subr.mxu0 0.0
    %3313 = vmatpush1.msra.mxu0 0.0
    %3314 = vmatprep.subr.mxu0 0.0
    %3315 = vmatpush1.msra.mxu0 0.0
    %3316 = vmatprep.subr.mxu0 0.0
    %3317 = vmatpush1.msra.mxu0 0.0
    %3318 = vmatprep.subr.mxu0 0.0
    %3319 = vmatpush1.msra.mxu0 0.0
    %3320 = vmatprep.subr.mxu0 0.0
    %3321 = vmatpush1.msra.mxu0 0.0
    %3322 = vmatprep.subr.mxu0 0.0
    %3323 = vmatpush1.msra.mxu0 0.0
    %3324 = vmatprep.subr.mxu0 0.0
    %3325 = vmatpush1.msra.mxu0 0.0
    %3326 = vmatprep.subr.mxu0 0.0
    %3327 = vmatpush1.msra.mxu0 0.0
    %3328 = vmatprep.subr.mxu0 0.0
    %3329 = vmatpush1.msra.mxu0 0.0
    %3330 = vmatprep.subr.mxu0 0.0
    %3331 = vmatpush1.msra.mxu0 0.0
    %3332 = vmatprep.subr.mxu0 0.0
    %3333 = vmatpush1.msra.mxu0 0.0
    %3334 = vmatprep.subr.mxu0 0.0
    %3335 = vmatpush1.msra.mxu0 0.0
    %3336 = vmatprep.subr.mxu0 0.0
    %3337 = vmatpush1.msra.mxu0 0.0
    %3338 = vmatprep.subr.mxu0 0.0
    %3339 = vmatpush1.msra.mxu0 0.0
    %3340 = vmatprep.subr.mxu0 0.0
    %3341 = vmatpush1.msra.mxu0 0.0
    %3342 = vmatprep.subr.mxu0 0.0
    %3343 = vmatpush1.msra.mxu0 0.0
    %3344 = vmatprep.subr.mxu0 0.0
    %3345 = vmatpush1.msra.mxu0 0.0
    %3346 = vmatprep.subr.mxu0 0.0
    %3347 = vmatpush1.msra.mxu0 0.0
    %3348 = vmatprep.subr.mxu0 0.0
    %3349 = vmatpush1.msra.mxu0 0.0
    %3350 = vmatprep.mubr.f32.mxu0 0.0
    %3351 = vmatmul.mubr.f32.gmra.mrb[0].mxu0 %v2895
    %v3352 = vpop.f32.mrb[0].mxu0
    %v3353 = vadd.f32 %v3248, %v3352
    %v3354 = vpop.f32.mrb[0].mxu0
    %3355 = vmatprep.mubr.f32.mxu0 0.0
    %3356 = vmatmul.mubr.f32.gmra.mrb[0].mxu0 %v2898
    %v3357 = vpop.f32.mrb[0].mxu0
    %v3358 = vadd.f32 %v3253, %v3357
    %v3359 = vpop.f32.mrb[0].mxu0
    %3360 = vmatprep.mubr.f32.mxu0 0.0
    %3361 = vmatmul.mubr.f32.gmra.mrb[0].mxu0 %v2901
    %v3362 = vpop.f32.mrb[0].mxu0
    %v3363 = vadd.f32 %v3258, %v3362
    %v3364 = vpop.f32.mrb[0].mxu0
    %3365 = vmatprep.mubr.f32.mxu0 0.0
    %3366 = vmatmul.mubr.f32.gmra.mrb[0].mxu0 %v2904
    %v3367 = vpop.f32.mrb[0].mxu0
    %v3368 = vadd.f32 %v3263, %v3367
    %v3369 = vpop.f32.mrb[0].mxu0
    %3370 = vmatprep.mubr.f32.mxu0 0.0
    %3371 = vmatmul.mubr.f32.gmra.mrb[0].mxu0 %v2907
    %v3372 = vpop.f32.mrb[0].mxu0
    %v3373 = vadd.f32 %v3268, %v3372
    %v3374 = vpop.f32.mrb[0].mxu0
    %3375 = vmatprep.mubr.f32.mxu0 0.0
    %3376 = vmatmul.mubr.f32.gmra.mrb[0].mxu0 %v2910
    %v3377 = vpop.f32.mrb[0].mxu0
    %v3378 = vadd.f32 %v3273, %v3377
    %v3379 = vpop.f32.mrb[0].mxu0
    %3380 = vmatprep.mubr.f32.mxu0 0.0
    %3381 = vmatmul.mubr.f32.gmra.mrb[0].mxu0 %v2913
    %v3382 = vpop.f32.mrb[0].mxu0
    %v3383 = vadd.f32 %v3278, %v3382
    %v3384 = vpop.f32.mrb[0].mxu0
    %3385 = vmatprep.mubr.f32.mxu0 0.0
    %3386 = vmatmul.mubr.f32.gmra.mrb[0].mxu0 %v2916
    %v3387 = vpop.f32.mrb[0].mxu0
    %v3388 = vadd.f32 %v3283, %v3387
    %v3389 = vpop.f32.mrb[0].mxu0
    %3390 = vdwg.mxu0
    %v3391 = vld [vmem:[#allocation2] sm:$0x1]
    %v3393 = vlaneseq
    %v3394 = vshrl.u32 %v3393, 7
    %v3395 = vsub.s32 0, %v3394
    %v3396 = vrot.slane %v3391, %v3395
    %v3398 = vadd.f32 %v3353, %v3396
    %v3399 = vadd.f32 %v3358, %v3396
    %v3400 = vadd.f32 %v3363, %v3396
    %v3401 = vadd.f32 %v3368, %v3396
    %v3402 = vadd.f32 %v3373, %v3396
    %v3403 = vadd.f32 %v3378, %v3396
    %v3404 = vadd.f32 %v3383, %v3396
    %v3405 = vadd.f32 %v3388, %v3396
    %v3406 = vsub.f32 %v92, %v2838
    %v3407 = vsub.f32 %v93, %v2839
    %v3408 = vsub.f32 %v94, %v2840
    %v3409 = vsub.f32 %v95, %v2841
    %v3410 = vsub.f32 %v96, %v2842
    %v3411 = vsub.f32 %v97, %v2843
    %v3412 = vsub.f32 %v98, %v2844
    %v3413 = vsub.f32 %v99, %v2845
    %v3414 = vmul.f32 %v3406, %v3406
    %v3415 = vmul.f32 %v3407, %v3407
    %v3416 = vmul.f32 %v3408, %v3408
    %v3417 = vmul.f32 %v3409, %v3409
    %v3418 = vmul.f32 %v3410, %v3410
    %v3419 = vmul.f32 %v3411, %v3411
    %v3420 = vmul.f32 %v3412, %v3412
    %v3421 = vmul.f32 %v3413, %v3413
    %v3422 = vsel %vm125, %v3414, 0.0
    %3423 = vadd.xlane.f32.xlu0 %v3422
    %v3424 = vpop.xlane.xlu0 %3423
    %v3425 = vsel %vm125, %v3415, 0.0
    %3426 = vadd.xlane.f32.xlu0 %v3425
    %v3427 = vpop.xlane.xlu0 %3426
    %v3428 = vsel %vm125, %v3416, 0.0
    %3429 = vadd.xlane.f32.xlu0 %v3428
    %v3430 = vpop.xlane.xlu0 %3429
    %v3431 = vsel %vm125, %v3417, 0.0
    %3432 = vadd.xlane.f32.xlu0 %v3431
    %v3433 = vpop.xlane.xlu0 %3432
    %v3434 = vsel %vm125, %v3418, 0.0
    %3435 = vadd.xlane.f32.xlu0 %v3434
    %v3436 = vpop.xlane.xlu0 %3435
    %v3437 = vsel %vm125, %v3419, 0.0
    %3438 = vadd.xlane.f32.xlu0 %v3437
    %v3439 = vpop.xlane.xlu0 %3438
    %v3440 = vsel %vm125, %v3420, 0.0
    %3441 = vadd.xlane.f32.xlu0 %v3440
    %v3442 = vpop.xlane.xlu0 %3441
    %v3443 = vsel %vm125, %v3421, 0.0
    %3444 = vadd.xlane.f32.xlu0 %v3443
    %v3445 = vpop.xlane.xlu0 %3444
    %v3446 = vrsqrt.pop %v3424
    %v3447 = vmul.f32 %v3424, %v3446
    %vm3448 = vcmp.eq.f32.partialorder %v3424, inf
    %v3449 = vsel %vm3448, %v3424, %v3447
    %vm3450 = vcmp.eq.f32.partialorder %v3424, 0.0
    %v3451 = vand.u32 %v3424, 2147483648
    %v3452 = vsel %vm3450, %v3451, %v3449
    %v3453 = vrsqrt.pop %v3427
    %v3454 = vmul.f32 %v3427, %v3453
    %vm3455 = vcmp.eq.f32.partialorder %v3427, inf
    %v3456 = vsel %vm3455, %v3427, %v3454
    %vm3457 = vcmp.eq.f32.partialorder %v3427, 0.0
    %v3458 = vand.u32 %v3427, 2147483648
    %v3459 = vsel %vm3457, %v3458, %v3456
    %v3460 = vrsqrt.pop %v3430
    %v3461 = vmul.f32 %v3430, %v3460
    %vm3462 = vcmp.eq.f32.partialorder %v3430, inf
    %v3463 = vsel %vm3462, %v3430, %v3461
    %vm3464 = vcmp.eq.f32.partialorder %v3430, 0.0
    %v3465 = vand.u32 %v3430, 2147483648
    %v3466 = vsel %vm3464, %v3465, %v3463
    %v3467 = vrsqrt.pop %v3433
    %v3468 = vmul.f32 %v3433, %v3467
    %vm3469 = vcmp.eq.f32.partialorder %v3433, inf
    %v3470 = vsel %vm3469, %v3433, %v3468
    %vm3471 = vcmp.eq.f32.partialorder %v3433, 0.0
    %v3472 = vand.u32 %v3433, 2147483648
    %v3473 = vsel %vm3471, %v3472, %v3470
    %v3474 = vrsqrt.pop %v3436
    %v3475 = vmul.f32 %v3436, %v3474
    %vm3476 = vcmp.eq.f32.partialorder %v3436, inf
    %v3477 = vsel %vm3476, %v3436, %v3475
    %vm3478 = vcmp.eq.f32.partialorder %v3436, 0.0
    %v3479 = vand.u32 %v3436, 2147483648
    %v3480 = vsel %vm3478, %v3479, %v3477
    %v3481 = vrsqrt.pop %v3439
    %v3482 = vmul.f32 %v3439, %v3481
    %vm3483 = vcmp.eq.f32.partialorder %v3439, inf
    %v3484 = vsel %vm3483, %v3439, %v3482
    %vm3485 = vcmp.eq.f32.partialorder %v3439, 0.0
    %v3486 = vand.u32 %v3439, 2147483648
    %v3487 = vsel %vm3485, %v3486, %v3484
    %v3488 = vrsqrt.pop %v3442
    %v3489 = vmul.f32 %v3442, %v3488
    %vm3490 = vcmp.eq.f32.partialorder %v3442, inf
    %v3491 = vsel %vm3490, %v3442, %v3489
    %vm3492 = vcmp.eq.f32.partialorder %v3442, 0.0
    %v3493 = vand.u32 %v3442, 2147483648
    %v3494 = vsel %vm3492, %v3493, %v3491
    %v3495 = vrsqrt.pop %v3445
    %v3496 = vmul.f32 %v3445, %v3495
    %vm3497 = vcmp.eq.f32.partialorder %v3445, inf
    %v3498 = vsel %vm3497, %v3445, %v3496
    %vm3499 = vcmp.eq.f32.partialorder %v3445, 0.0
    %v3500 = vand.u32 %v3445, 2147483648
    %v3501 = vsel %vm3499, %v3500, %v3498
    %vm3502 = vcmask 7168
    %v3503 = vsel %vm3502, %v3452, 0.0
    %v3504 = vsel %vm3502, %v3459, 0.0
    %v3505 = vadd.f32 %v3503, %v3504
    %v3506 = vsel %vm3502, %v3466, 0.0
    %v3507 = vadd.f32 %v3505, %v3506
    %v3508 = vsel %vm3502, %v3473, 0.0
    %v3509 = vadd.f32 %v3507, %v3508
    %v3510 = vsel %vm3502, %v3480, 0.0
    %v3511 = vadd.f32 %v3509, %v3510
    %v3512 = vsel %vm3502, %v3487, 0.0
    %v3513 = vadd.f32 %v3511, %v3512
    %v3514 = vsel %vm3502, %v3494, 0.0
    %v3515 = vadd.f32 %v3513, %v3514
    %v3516 = vsel %vm3502, %v3501, 0.0
    %v3517 = vadd.f32 %v3515, %v3516
    %3518 = vadd.xlane.f32.xlu0 %v3517
    %v3519 = vpop.xlane.xlu0 %3518
    %v3520 = vrot.slane %v3519, 4
    %v3521 = vadd.f32 %v3519, %v3520
    %v3522 = vrot.slane %v3521, 2
    %v3523 = vadd.f32 %v3521, %v3522
    %v3524 = vrot.slane %v3523, 1
    %v3525 = vadd.f32 %v3523, %v3524
    %s3526 = vtos %v3525
    %v3527 = vrcp.pop 64.0
    %s3528 = vtos %v3527
    %s3529 = smul.f32 %s3526, %s3528
    %v3530 = vld [vmem:[%s5] sm:$0x3f]
    %v3532 = vsel %vm3023, %v3097, 0
    %v3535 = vsel %vm3023, %v3099, 0
    %v3538 = vsel %vm3023, %v3101, 0
    %v3541 = vsel %vm3023, %v3103, 0
    %v3544 = vsel %vm3023, %v3105, 0
    %v3547 = vsel %vm3023, %v3107, 0
    %v3550 = vsel %vm3023, %v3109, 0
    %v3553 = vsel %vm3023, %v3111, 0
    %vm3555 = vcmask 1045504
    %v3557 = vsel %vm3555, %v3530, 0
    %3559 = vmatprep.subr.mxu0 0.0
    %3560 = vmatpush1.msra.mxu0 %v3557
    %3561 = vmatprep.subr.mxu0 0.0
    %3562 = vmatpush1.msra.mxu0 0.0
    %3563 = vmatprep.subr.mxu0 0.0
    %3564 = vmatpush1.msra.mxu0 0.0
    %3565 = vmatprep.subr.mxu0 0.0
    %3566 = vmatpush1.msra.mxu0 0.0
    %3567 = vmatprep.subr.mxu0 0.0
    %3568 = vmatpush1.msra.mxu0 0.0
    %3569 = vmatprep.subr.mxu0 0.0
    %3570 = vmatpush1.msra.mxu0 0.0
    %3571 = vmatprep.subr.mxu0 0.0
    %3572 = vmatpush1.msra.mxu0 0.0
    %3573 = vmatprep.subr.mxu0 0.0
    %3574 = vmatpush1.msra.mxu0 0.0
    %3575 = vmatprep.subr.mxu0 0.0
    %3576 = vmatpush1.msra.mxu0 0.0
    %3577 = vmatprep.subr.mxu0 0.0
    %3578 = vmatpush1.msra.mxu0 0.0
    %3579 = vmatprep.subr.mxu0 0.0
    %3580 = vmatpush1.msra.mxu0 0.0
    %3581 = vmatprep.subr.mxu0 0.0
    %3582 = vmatpush1.msra.mxu0 0.0
    %3583 = vmatprep.subr.mxu0 0.0
    %3584 = vmatpush1.msra.mxu0 0.0
    %3585 = vmatprep.subr.mxu0 0.0
    %3586 = vmatpush1.msra.mxu0 0.0
    %3587 = vmatprep.subr.mxu0 0.0
    %3588 = vmatpush1.msra.mxu0 0.0
    %3589 = vmatprep.subr.mxu0 0.0
    %3590 = vmatpush1.msra.mxu0 0.0
    %3591 = vmatprep.subr.mxu0 0.0
    %3592 = vmatpush1.msra.mxu0 0.0
    %3593 = vmatprep.subr.mxu0 0.0
    %3594 = vmatpush1.msra.mxu0 0.0
    %3595 = vmatprep.subr.mxu0 0.0
    %3596 = vmatpush1.msra.mxu0 0.0
    %3597 = vmatprep.subr.mxu0 0.0
    %3598 = vmatpush1.msra.mxu0 0.0
    %3599 = vmatprep.subr.mxu0 0.0
    %3600 = vmatpush1.msra.mxu0 0.0
    %3601 = vmatprep.subr.mxu0 0.0
    %3602 = vmatpush1.msra.mxu0 0.0
    %3603 = vmatprep.subr.mxu0 0.0
    %3604 = vmatpush1.msra.mxu0 0.0
    %3605 = vmatprep.subr.mxu0 0.0
    %3606 = vmatpush1.msra.mxu0 0.0
    %3607 = vmatprep.subr.mxu0 0.0
    %3608 = vmatpush1.msra.mxu0 0.0
    %3609 = vmatprep.subr.mxu0 0.0
    %3610 = vmatpush1.msra.mxu0 0.0
    %3611 = vmatprep.subr.mxu0 0.0
    %3612 = vmatpush1.msra.mxu0 0.0
    %3613 = vmatprep.subr.mxu0 0.0
    %3614 = vmatpush1.msra.mxu0 0.0
    %3615 = vmatprep.subr.mxu0 0.0
    %3616 = vmatpush1.msra.mxu0 0.0
    %3617 = vmatprep.subr.mxu0 0.0
    %3618 = vmatpush1.msra.mxu0 0.0
    %3619 = vmatprep.subr.mxu0 0.0
    %3620 = vmatpush1.msra.mxu0 0.0
    %3621 = vmatprep.subr.mxu0 0.0
    %3622 = vmatpush1.msra.mxu0 0.0
    %3623 = vmatprep.mubr.f32.mxu0 0.0
    %3624 = vmatmul.mubr.f32.gmra.mrb[0].mxu0 %v3532
    %v3625 = vpop.f32.mrb[0].mxu0
    %v3626 = vadd.f32 1e-06, %v3625
    %v3627 = vpop.f32.mrb[0].mxu0
    %3628 = vmatprep.mubr.f32.mxu0 0.0
    %3629 = vmatmul.mubr.f32.gmra.mrb[0].mxu0 %v3535
    %v3630 = vpop.f32.mrb[0].mxu0
    %v3631 = vadd.f32 1e-06, %v3630
    %v3632 = vpop.f32.mrb[0].mxu0
    %3633 = vmatprep.mubr.f32.mxu0 0.0
    %3634 = vmatmul.mubr.f32.gmra.mrb[0].mxu0 %v3538
    %v3635 = vpop.f32.mrb[0].mxu0
    %v3636 = vadd.f32 1e-06, %v3635
    %v3637 = vpop.f32.mrb[0].mxu0
    %3638 = vmatprep.mubr.f32.mxu0 0.0
    %3639 = vmatmul.mubr.f32.gmra.mrb[0].mxu0 %v3541
    %v3640 = vpop.f32.mrb[0].mxu0
    %v3641 = vadd.f32 1e-06, %v3640
    %v3642 = vpop.f32.mrb[0].mxu0
    %3643 = vmatprep.mubr.f32.mxu0 0.0
    %3644 = vmatmul.mubr.f32.gmra.mrb[0].mxu0 %v3544
    %v3645 = vpop.f32.mrb[0].mxu0
    %v3646 = vadd.f32 1e-06, %v3645
    %v3647 = vpop.f32.mrb[0].mxu0
    %3648 = vmatprep.mubr.f32.mxu0 0.0
    %3649 = vmatmul.mubr.f32.gmra.mrb[0].mxu0 %v3547
    %v3650 = vpop.f32.mrb[0].mxu0
    %v3651 = vadd.f32 1e-06, %v3650
    %v3652 = vpop.f32.mrb[0].mxu0
    %3653 = vmatprep.mubr.f32.mxu0 0.0
    %3654 = vmatmul.mubr.f32.gmra.mrb[0].mxu0 %v3550
    %v3655 = vpop.f32.mrb[0].mxu0
    %v3656 = vadd.f32 1e-06, %v3655
    %v3657 = vpop.f32.mrb[0].mxu0
    %3658 = vmatprep.mubr.f32.mxu0 0.0
    %3659 = vmatmul.mubr.f32.gmra.mrb[0].mxu0 %v3553
    %v3660 = vpop.f32.mrb[0].mxu0
    %v3661 = vadd.f32 1e-06, %v3660
    %v3662 = vpop.f32.mrb[0].mxu0
    %3663 = vdwg.mxu0
    %v3664 = vlog2.pop %v3626
    %v3665 = vmul.f32 %v3664, 0.6931472
    %v3666 = vlog2.pop %v3631
    %v3667 = vmul.f32 %v3666, 0.6931472
    %v3668 = vlog2.pop %v3636
    %v3669 = vmul.f32 %v3668, 0.6931472
    %v3670 = vlog2.pop %v3641
    %v3671 = vmul.f32 %v3670, 0.6931472
    %v3672 = vlog2.pop %v3646
    %v3673 = vmul.f32 %v3672, 0.6931472
    %v3674 = vlog2.pop %v3651
    %v3675 = vmul.f32 %v3674, 0.6931472
    %v3676 = vlog2.pop %v3656
    %v3677 = vmul.f32 %v3676, 0.6931472
    %v3678 = vlog2.pop %v3661
    %v3679 = vmul.f32 %v3678, 0.6931472
    %3681 = vset.pattern.permute.xlu0 0
    %3682 = vperm.xlu0 %3681, %v3398
    %v3683 = vpop.permute.xlu0 %3682
    %3686 = vset.pattern.permute.xlu0 0
    %3687 = vperm.xlu0 %3686, %v3399
    %v3688 = vpop.permute.xlu0 %3687
    %3691 = vset.pattern.permute.xlu0 0
    %3692 = vperm.xlu0 %3691, %v3400
    %v3693 = vpop.permute.xlu0 %3692
    %3696 = vset.pattern.permute.xlu0 0
    %3697 = vperm.xlu0 %3696, %v3401
    %v3698 = vpop.permute.xlu0 %3697
    %3701 = vset.pattern.permute.xlu0 0
    %3702 = vperm.xlu0 %3701, %v3402
    %v3703 = vpop.permute.xlu0 %3702
    %3706 = vset.pattern.permute.xlu0 0
    %3707 = vperm.xlu0 %3706, %v3403
    %v3708 = vpop.permute.xlu0 %3707
    %3711 = vset.pattern.permute.xlu0 0
    %3712 = vperm.xlu0 %3711, %v3404
    %v3713 = vpop.permute.xlu0 %3712
    %3716 = vset.pattern.permute.xlu0 0
    %3717 = vperm.xlu0 %3716, %v3405
    %v3718 = vpop.permute.xlu0 %3717
    %v3720 = vadd.f32 %v3665, %v3683
    %v3721 = vadd.f32 %v3667, %v3688
    %v3722 = vadd.f32 %v3669, %v3693
    %v3723 = vadd.f32 %v3671, %v3698
    %v3724 = vadd.f32 %v3673, %v3703
    %v3725 = vadd.f32 %v3675, %v3708
    %v3726 = vadd.f32 %v3677, %v3713
    %v3727 = vadd.f32 %v3679, %v3718
    %v3728 = vld [vmem:[%s6] sm:$0xff]
    %v3729 = vld [vmem:[%s6 + $0x8] sm:$0xff]
    %v3730 = vld [vmem:[%s6 + $0x10] sm:$0xff]
    %v3731 = vld [vmem:[%s6 + $0x18] sm:$0xff]
    %v3732 = vld [vmem:[%s6 + $0x20] sm:$0xff]
    %v3733 = vld [vmem:[%s6 + $0x28] sm:$0xff]
    %v3734 = vld [vmem:[%s6 + $0x30] sm:$0xff]
    %v3735 = vld [vmem:[%s6 + $0x38] sm:$0xff]
    %v3736 = vadd.f32 %v3720, %v3728
    %v3737 = vadd.f32 %v3721, %v3729
    %v3738 = vadd.f32 %v3722, %v3730
    %v3739 = vadd.f32 %v3723, %v3731
    %v3740 = vadd.f32 %v3724, %v3732
    %v3741 = vadd.f32 %v3725, %v3733
    %v3742 = vadd.f32 %v3726, %v3734
    %v3743 = vadd.f32 %v3727, %v3735
    %v3744 = vld [vmem:[%s4] sm:$0xff]
    %v3745 = vld [vmem:[%s4 + $0x8] sm:$0xff]
    %v3746 = vld [vmem:[%s4 + $0x10] sm:$0xff]
    %v3747 = vld [vmem:[%s4 + $0x18] sm:$0xff]
    %v3748 = vld [vmem:[%s4 + $0x20] sm:$0xff]
    %v3749 = vld [vmem:[%s4 + $0x28] sm:$0xff]
    %v3750 = vld [vmem:[%s4 + $0x30] sm:$0xff]
    %v3751 = vld [vmem:[%s4 + $0x38] sm:$0xff]
    %v3752 = vmul.f32 %v3736, 1.442695
    %v3753 = vpow.pop %v3752
    %v3754 = vmul.f32 %v3737, 1.442695
    %v3755 = vpow.pop %v3754
    %v3756 = vmul.f32 %v3738, 1.442695
    %v3757 = vpow.pop %v3756
    %v3758 = vmul.f32 %v3739, 1.442695
    %v3759 = vpow.pop %v3758
    %v3760 = vmul.f32 %v3740, 1.442695
    %v3761 = vpow.pop %v3760
    %v3762 = vmul.f32 %v3741, 1.442695
    %v3763 = vpow.pop %v3762
    %v3764 = vmul.f32 %v3742, 1.442695
    %v3765 = vpow.pop %v3764
    %v3766 = vmul.f32 %v3743, 1.442695
    %v3767 = vpow.pop %v3766
    %3769 = vset.pattern.permute.xlu0 0
    %3770 = vperm.xlu0 %3769, %v3744
    %v3771 = vpop.permute.xlu0 %3770
    %3774 = vset.pattern.permute.xlu0 0
    %3775 = vperm.xlu0 %3774, %v3745
    %v3776 = vpop.permute.xlu0 %3775
    %3779 = vset.pattern.permute.xlu0 0
    %3780 = vperm.xlu0 %3779, %v3746
    %v3781 = vpop.permute.xlu0 %3780
    %3784 = vset.pattern.permute.xlu0 0
    %3785 = vperm.xlu0 %3784, %v3747
    %v3786 = vpop.permute.xlu0 %3785
    %3789 = vset.pattern.permute.xlu0 0
    %3790 = vperm.xlu0 %3789, %v3748
    %v3791 = vpop.permute.xlu0 %3790
    %3794 = vset.pattern.permute.xlu0 0
    %3795 = vperm.xlu0 %3794, %v3749
    %v3796 = vpop.permute.xlu0 %3795
    %3799 = vset.pattern.permute.xlu0 0
    %3800 = vperm.xlu0 %3799, %v3750
    %v3801 = vpop.permute.xlu0 %3800
    %3804 = vset.pattern.permute.xlu0 0
    %3805 = vperm.xlu0 %3804, %v3751
    %v3806 = vpop.permute.xlu0 %3805
    %v3808 = vmul.f32 %v3771, %v3753
    %v3809 = vmul.f32 %v3776, %v3755
    %v3810 = vmul.f32 %v3781, %v3757
    %v3811 = vmul.f32 %v3786, %v3759
    %v3812 = vmul.f32 %v3791, %v3761
    %v3813 = vmul.f32 %v3796, %v3763
    %v3814 = vmul.f32 %v3801, %v3765
    %v3815 = vmul.f32 %v3806, %v3767
    %v3816 = vld [vmem:[%s7] sm:$0xff]
    %v3817 = vld [vmem:[%s7 + $0x8] sm:$0xff]
    %v3818 = vld [vmem:[%s7 + $0x10] sm:$0xff]
    %v3819 = vld [vmem:[%s7 + $0x18] sm:$0xff]
    %v3820 = vld [vmem:[%s7 + $0x20] sm:$0xff]
    %v3821 = vld [vmem:[%s7 + $0x28] sm:$0xff]
    %v3822 = vld [vmem:[%s7 + $0x30] sm:$0xff]
    %v3823 = vld [vmem:[%s7 + $0x38] sm:$0xff]
    %v3824 = vld [vmem:[%s3] sm:$0xff]
    %v3825 = vld [vmem:[%s3 + $0x8] sm:$0xff]
    %v3826 = vld [vmem:[%s3 + $0x10] sm:$0xff]
    %v3827 = vld [vmem:[%s3 + $0x18] sm:$0xff]
    %v3828 = vld [vmem:[%s3 + $0x20] sm:$0xff]
    %v3829 = vld [vmem:[%s3 + $0x28] sm:$0xff]
    %v3830 = vld [vmem:[%s3 + $0x30] sm:$0xff]
    %v3831 = vld [vmem:[%s3 + $0x38] sm:$0xff]
    %v3832 = vadd.f32 %v3824, %v3816
    %v3833 = vadd.f32 %v3825, %v3817
    %v3834 = vadd.f32 %v3826, %v3818
    %v3835 = vadd.f32 %v3827, %v3819
    %v3836 = vadd.f32 %v3828, %v3820
    %v3837 = vadd.f32 %v3829, %v3821
    %v3838 = vadd.f32 %v3830, %v3822
    %v3839 = vadd.f32 %v3831, %v3823
    %v3840 = vadd.f32 %v3832, 1e-06
    %v3841 = vadd.f32 %v3833, 1e-06
    %v3842 = vadd.f32 %v3834, 1e-06
    %v3843 = vadd.f32 %v3835, 1e-06
    %v3844 = vadd.f32 %v3836, 1e-06
    %v3845 = vadd.f32 %v3837, 1e-06
    %v3846 = vadd.f32 %v3838, 1e-06
    %v3847 = vadd.f32 %v3839, 1e-06
    %v3848 = vadd.f32 %v3840, 8.0
    %v3849 = vadd.f32 %v3841, 8.0
    %v3850 = vadd.f32 %v3842, 8.0
    %v3851 = vadd.f32 %v3843, 8.0
    %v3852 = vadd.f32 %v3844, 8.0
    %v3853 = vadd.f32 %v3845, 8.0
    %v3854 = vadd.f32 %v3846, 8.0
    %v3855 = vadd.f32 %v3847, 8.0
    %v3856 = vadd.f32 %v3840, 1.0
    %v3857 = vadd.f32 %v3841, 1.0
    %v3858 = vadd.f32 %v3842, 1.0
    %v3859 = vadd.f32 %v3843, 1.0
    %v3860 = vadd.f32 %v3844, 1.0
    %v3861 = vadd.f32 %v3845, 1.0
    %v3862 = vadd.f32 %v3846, 1.0
    %v3863 = vadd.f32 %v3847, 1.0
    %v3864 = vmul.f32 %v3840, %v3856
    %v3865 = vmul.f32 %v3841, %v3857
    %v3866 = vmul.f32 %v3842, %v3858
    %v3867 = vmul.f32 %v3843, %v3859
    %v3868 = vmul.f32 %v3844, %v3860
    %v3869 = vmul.f32 %v3845, %v3861
    %v3870 = vmul.f32 %v3846, %v3862
    %v3871 = vmul.f32 %v3847, %v3863
    %v3872 = vadd.f32 %v3840, 2.0
    %v3873 = vadd.f32 %v3841, 2.0
    %v3874 = vadd.f32 %v3842, 2.0
    %v3875 = vadd.f32 %v3843, 2.0
    %v3876 = vadd.f32 %v3844, 2.0
    %v3877 = vadd.f32 %v3845, 2.0
    %v3878 = vadd.f32 %v3846, 2.0
    %v3879 = vadd.f32 %v3847, 2.0
    %v3880 = vmul.f32 %v3864, %v3872
    %v3881 = vmul.f32 %v3865, %v3873
    %v3882 = vmul.f32 %v3866, %v3874
    %v3883 = vmul.f32 %v3867, %v3875
    %v3884 = vmul.f32 %v3868, %v3876
    %v3885 = vmul.f32 %v3869, %v3877
    %v3886 = vmul.f32 %v3870, %v3878
    %v3887 = vmul.f32 %v3871, %v3879
    %v3888 = vadd.f32 %v3840, 3.0
    %v3889 = vadd.f32 %v3841, 3.0
    %v3890 = vadd.f32 %v3842, 3.0
    %v3891 = vadd.f32 %v3843, 3.0
    %v3892 = vadd.f32 %v3844, 3.0
    %v3893 = vadd.f32 %v3845, 3.0
    %v3894 = vadd.f32 %v3846, 3.0
    %v3895 = vadd.f32 %v3847, 3.0
    %v3896 = vmul.f32 %v3880, %v3888
    %v3897 = vmul.f32 %v3881, %v3889
    %v3898 = vmul.f32 %v3882, %v3890
    %v3899 = vmul.f32 %v3883, %v3891
    %v3900 = vmul.f32 %v3884, %v3892
    %v3901 = vmul.f32 %v3885, %v3893
    %v3902 = vmul.f32 %v3886, %v3894
    %v3903 = vmul.f32 %v3887, %v3895
    %v3904 = vadd.f32 %v3840, 4.0
    %v3905 = vadd.f32 %v3841, 4.0
    %v3906 = vadd.f32 %v3842, 4.0
    %v3907 = vadd.f32 %v3843, 4.0
    %v3908 = vadd.f32 %v3844, 4.0
    %v3909 = vadd.f32 %v3845, 4.0
    %v3910 = vadd.f32 %v3846, 4.0
    %v3911 = vadd.f32 %v3847, 4.0
    %v3912 = vadd.f32 %v3840, 5.0
    %v3913 = vadd.f32 %v3841, 5.0
    %v3914 = vadd.f32 %v3842, 5.0
    %v3915 = vadd.f32 %v3843, 5.0
    %v3916 = vadd.f32 %v3844, 5.0
    %v3917 = vadd.f32 %v3845, 5.0
    %v3918 = vadd.f32 %v3846, 5.0
    %v3919 = vadd.f32 %v3847, 5.0
    %v3920 = vmul.f32 %v3904, %v3912
    %v3921 = vmul.f32 %v3905, %v3913
    %v3922 = vmul.f32 %v3906, %v3914
    %v3923 = vmul.f32 %v3907, %v3915
    %v3924 = vmul.f32 %v3908, %v3916
    %v3925 = vmul.f32 %v3909, %v3917
    %v3926 = vmul.f32 %v3910, %v3918
    %v3927 = vmul.f32 %v3911, %v3919
    %v3928 = vadd.f32 %v3840, 6.0
    %v3929 = vadd.f32 %v3841, 6.0
    %v3930 = vadd.f32 %v3842, 6.0
    %v3931 = vadd.f32 %v3843, 6.0
    %v3932 = vadd.f32 %v3844, 6.0
    %v3933 = vadd.f32 %v3845, 6.0
    %v3934 = vadd.f32 %v3846, 6.0
    %v3935 = vadd.f32 %v3847, 6.0
    %v3936 = vmul.f32 %v3920, %v3928
    %v3937 = vmul.f32 %v3921, %v3929
    %v3938 = vmul.f32 %v3922, %v3930
    %v3939 = vmul.f32 %v3923, %v3931
    %v3940 = vmul.f32 %v3924, %v3932
    %v3941 = vmul.f32 %v3925, %v3933
    %v3942 = vmul.f32 %v3926, %v3934
    %v3943 = vmul.f32 %v3927, %v3935
    %v3944 = vadd.f32 %v3840, 7.0
    %v3945 = vadd.f32 %v3841, 7.0
    %v3946 = vadd.f32 %v3842, 7.0
    %v3947 = vadd.f32 %v3843, 7.0
    %v3948 = vadd.f32 %v3844, 7.0
    %v3949 = vadd.f32 %v3845, 7.0
    %v3950 = vadd.f32 %v3846, 7.0
    %v3951 = vadd.f32 %v3847, 7.0
    %v3952 = vmul.f32 %v3936, %v3944
    %v3953 = vmul.f32 %v3937, %v3945
    %v3954 = vmul.f32 %v3938, %v3946
    %v3955 = vmul.f32 %v3939, %v3947
    %v3956 = vmul.f32 %v3940, %v3948
    %v3957 = vmul.f32 %v3941, %v3949
    %v3958 = vmul.f32 %v3942, %v3950
    %v3959 = vmul.f32 %v3943, %v3951
    %v3960 = vlog2.pop %v3896
    %v3961 = vmul.f32 %v3960, 0.6931472
    %v3962 = vlog2.pop %v3897
    %v3963 = vmul.f32 %v3962, 0.6931472
    %v3964 = vlog2.pop %v3898
    %v3965 = vmul.f32 %v3964, 0.6931472
    %v3966 = vlog2.pop %v3899
    %v3967 = vmul.f32 %v3966, 0.6931472
    %v3968 = vlog2.pop %v3900
    %v3969 = vmul.f32 %v3968, 0.6931472
    %v3970 = vlog2.pop %v3901
    %v3971 = vmul.f32 %v3970, 0.6931472
    %v3972 = vlog2.pop %v3902
    %v3973 = vmul.f32 %v3972, 0.6931472
    %v3974 = vlog2.pop %v3903
    %v3975 = vmul.f32 %v3974, 0.6931472
    %v3976 = vlog2.pop %v3952
    %v3977 = vmul.f32 %v3976, 0.6931472
    %v3978 = vlog2.pop %v3953
    %v3979 = vmul.f32 %v3978, 0.6931472
    %v3980 = vlog2.pop %v3954
    %v3981 = vmul.f32 %v3980, 0.6931472
    %v3982 = vlog2.pop %v3955
    %v3983 = vmul.f32 %v3982, 0.6931472
    %v3984 = vlog2.pop %v3956
    %v3985 = vmul.f32 %v3984, 0.6931472
    %v3986 = vlog2.pop %v3957
    %v3987 = vmul.f32 %v3986, 0.6931472
    %v3988 = vlog2.pop %v3958
    %v3989 = vmul.f32 %v3988, 0.6931472
    %v3990 = vlog2.pop %v3959
    %v3991 = vmul.f32 %v3990, 0.6931472
    %v3992 = vadd.f32 %v3961, %v3977
    %v3993 = vadd.f32 %v3963, %v3979
    %v3994 = vadd.f32 %v3965, %v3981
    %v3995 = vadd.f32 %v3967, %v3983
    %v3996 = vadd.f32 %v3969, %v3985
    %v3997 = vadd.f32 %v3971, %v3987
    %v3998 = vadd.f32 %v3973, %v3989
    %v3999 = vadd.f32 %v3975, %v3991
    %v4000 = vrcp.pop %v3848
    %v4001 = vmul.f32 1.0, %v4000
    %v4002 = vrcp.pop %v3849
    %v4003 = vmul.f32 1.0, %v4002
    %v4004 = vrcp.pop %v3850
    %v4005 = vmul.f32 1.0, %v4004
    %v4006 = vrcp.pop %v3851
    %v4007 = vmul.f32 1.0, %v4006
    %v4008 = vrcp.pop %v3852
    %v4009 = vmul.f32 1.0, %v4008
    %v4010 = vrcp.pop %v3853
    %v4011 = vmul.f32 1.0, %v4010
    %v4012 = vrcp.pop %v3854
    %v4013 = vmul.f32 1.0, %v4012
    %v4014 = vrcp.pop %v3855
    %v4015 = vmul.f32 1.0, %v4014
    %v4016 = vmul.f32 %v4001, %v4001
    %v4017 = vmul.f32 %v4003, %v4003
    %v4018 = vmul.f32 %v4005, %v4005
    %v4019 = vmul.f32 %v4007, %v4007
    %v4020 = vmul.f32 %v4009, %v4009
    %v4021 = vmul.f32 %v4011, %v4011
    %v4022 = vmul.f32 %v4013, %v4013
    %v4023 = vmul.f32 %v4015, %v4015
    %v4024 = vmul.f32 %v4016, -0.0005952381
    %v4025 = vmul.f32 %v4017, -0.0005952381
    %v4026 = vmul.f32 %v4018, -0.0005952381
    %v4027 = vmul.f32 %v4019, -0.0005952381
    %v4028 = vmul.f32 %v4020, -0.0005952381
    %v4029 = vmul.f32 %v4021, -0.0005952381
    %v4030 = vmul.f32 %v4022, -0.0005952381
    %v4031 = vmul.f32 %v4023, -0.0005952381
    %v4032 = vadd.f32 %v4024, 0.0007936508
    %v4033 = vadd.f32 %v4025, 0.0007936508
    %v4034 = vadd.f32 %v4026, 0.0007936508
    %v4035 = vadd.f32 %v4027, 0.0007936508
    %v4036 = vadd.f32 %v4028, 0.0007936508
    %v4037 = vadd.f32 %v4029, 0.0007936508
    %v4038 = vadd.f32 %v4030, 0.0007936508
    %v4039 = vadd.f32 %v4031, 0.0007936508
    %v4040 = vmul.f32 %v4016, %v4032
    %v4041 = vmul.f32 %v4017, %v4033
    %v4042 = vmul.f32 %v4018, %v4034
    %v4043 = vmul.f32 %v4019, %v4035
    %v4044 = vmul.f32 %v4020, %v4036
    %v4045 = vmul.f32 %v4021, %v4037
    %v4046 = vmul.f32 %v4022, %v4038
    %v4047 = vmul.f32 %v4023, %v4039
    %v4048 = vadd.f32 %v4040, -0.0027777778
    %v4049 = vadd.f32 %v4041, -0.0027777778
    %v4050 = vadd.f32 %v4042, -0.0027777778
    %v4051 = vadd.f32 %v4043, -0.0027777778
    %v4052 = vadd.f32 %v4044, -0.0027777778
    %v4053 = vadd.f32 %v4045, -0.0027777778
    %v4054 = vadd.f32 %v4046, -0.0027777778
    %v4055 = vadd.f32 %v4047, -0.0027777778
    %v4056 = vmul.f32 %v4016, %v4048
    %v4057 = vmul.f32 %v4017, %v4049
    %v4058 = vmul.f32 %v4018, %v4050
    %v4059 = vmul.f32 %v4019, %v4051
    %v4060 = vmul.f32 %v4020, %v4052
    %v4061 = vmul.f32 %v4021, %v4053
    %v4062 = vmul.f32 %v4022, %v4054
    %v4063 = vmul.f32 %v4023, %v4055
    %v4064 = vadd.f32 %v4056, 0.083333336
    %v4065 = vadd.f32 %v4057, 0.083333336
    %v4066 = vadd.f32 %v4058, 0.083333336
    %v4067 = vadd.f32 %v4059, 0.083333336
    %v4068 = vadd.f32 %v4060, 0.083333336
    %v4069 = vadd.f32 %v4061, 0.083333336
    %v4070 = vadd.f32 %v4062, 0.083333336
    %v4071 = vadd.f32 %v4063, 0.083333336
    %v4072 = vmul.f32 %v4001, %v4064
    %v4073 = vmul.f32 %v4003, %v4065
    %v4074 = vmul.f32 %v4005, %v4066
    %v4075 = vmul.f32 %v4007, %v4067
    %v4076 = vmul.f32 %v4009, %v4068
    %v4077 = vmul.f32 %v4011, %v4069
    %v4078 = vmul.f32 %v4013, %v4070
    %v4079 = vmul.f32 %v4015, %v4071
    %v4080 = vsub.f32 %v3848, 0.5
    %v4081 = vsub.f32 %v3849, 0.5
    %v4082 = vsub.f32 %v3850, 0.5
    %v4083 = vsub.f32 %v3851, 0.5
    %v4084 = vsub.f32 %v3852, 0.5
    %v4085 = vsub.f32 %v3853, 0.5
    %v4086 = vsub.f32 %v3854, 0.5
    %v4087 = vsub.f32 %v3855, 0.5
    %v4088 = vlog2.pop %v3848
    %v4089 = vmul.f32 %v4088, 0.6931472
    %v4090 = vlog2.pop %v3849
    %v4091 = vmul.f32 %v4090, 0.6931472
    %v4092 = vlog2.pop %v3850
    %v4093 = vmul.f32 %v4092, 0.6931472
    %v4094 = vlog2.pop %v3851
    %v4095 = vmul.f32 %v4094, 0.6931472
    %v4096 = vlog2.pop %v3852
    %v4097 = vmul.f32 %v4096, 0.6931472
    %v4098 = vlog2.pop %v3853
    %v4099 = vmul.f32 %v4098, 0.6931472
    %v4100 = vlog2.pop %v3854
    %v4101 = vmul.f32 %v4100, 0.6931472
    %v4102 = vlog2.pop %v3855
    %v4103 = vmul.f32 %v4102, 0.6931472
    %v4104 = vmul.f32 %v4080, %v4089
    %v4105 = vmul.f32 %v4081, %v4091
    %v4106 = vmul.f32 %v4082, %v4093
    %v4107 = vmul.f32 %v4083, %v4095
    %v4108 = vmul.f32 %v4084, %v4097
    %v4109 = vmul.f32 %v4085, %v4099
    %v4110 = vmul.f32 %v4086, %v4101
    %v4111 = vmul.f32 %v4087, %v4103
    %v4112 = vsub.f32 %v4104, %v3848
    %v4113 = vsub.f32 %v4105, %v3849
    %v4114 = vsub.f32 %v4106, %v3850
    %v4115 = vsub.f32 %v4107, %v3851
    %v4116 = vsub.f32 %v4108, %v3852
    %v4117 = vsub.f32 %v4109, %v3853
    %v4118 = vsub.f32 %v4110, %v3854
    %v4119 = vsub.f32 %v4111, %v3855
    %v4120 = vadd.f32 %v4112, 0.9189385
    %v4121 = vadd.f32 %v4113, 0.9189385
    %v4122 = vadd.f32 %v4114, 0.9189385
    %v4123 = vadd.f32 %v4115, 0.9189385
    %v4124 = vadd.f32 %v4116, 0.9189385
    %v4125 = vadd.f32 %v4117, 0.9189385
    %v4126 = vadd.f32 %v4118, 0.9189385
    %v4127 = vadd.f32 %v4119, 0.9189385
    %v4128 = vadd.f32 %v4120, %v4072
    %v4129 = vadd.f32 %v4121, %v4073
    %v4130 = vadd.f32 %v4122, %v4074
    %v4131 = vadd.f32 %v4123, %v4075
    %v4132 = vadd.f32 %v4124, %v4076
    %v4133 = vadd.f32 %v4125, %v4077
    %v4134 = vadd.f32 %v4126, %v4078
    %v4135 = vadd.f32 %v4127, %v4079
    %v4136 = vsub.f32 %v4128, %v3992
    %v4137 = vsub.f32 %v4129, %v3993
    %v4138 = vsub.f32 %v4130, %v3994
    %v4139 = vsub.f32 %v4131, %v3995
    %v4140 = vsub.f32 %v4132, %v3996
    %v4141 = vsub.f32 %v4133, %v3997
    %v4142 = vsub.f32 %v4134, %v3998
    %v4143 = vsub.f32 %v4135, %v3999
    %v4144 = vld [vmem:[%s8] sm:$0xff]
    %v4145 = vld [vmem:[%s8 + $0x8] sm:$0xff]
    %v4146 = vld [vmem:[%s8 + $0x10] sm:$0xff]
    %v4147 = vld [vmem:[%s8 + $0x18] sm:$0xff]
    %v4148 = vld [vmem:[%s8 + $0x20] sm:$0xff]
    %v4149 = vld [vmem:[%s8 + $0x28] sm:$0xff]
    %v4150 = vld [vmem:[%s8 + $0x30] sm:$0xff]
    %v4151 = vld [vmem:[%s8 + $0x38] sm:$0xff]
    %v4152 = vadd.f32 %v4136, %v4144
    %v4153 = vadd.f32 %v4137, %v4145
    %v4154 = vadd.f32 %v4138, %v4146
    %v4155 = vadd.f32 %v4139, %v4147
    %v4156 = vadd.f32 %v4140, %v4148
    %v4157 = vadd.f32 %v4141, %v4149
    %v4158 = vadd.f32 %v4142, %v4150
    %v4159 = vadd.f32 %v4143, %v4151
    %v4160 = vadd.f32 %v3816, %v3808
    %v4161 = vadd.f32 %v3817, %v3809
    %v4162 = vadd.f32 %v3818, %v3810
    %v4163 = vadd.f32 %v3819, %v3811
    %v4164 = vadd.f32 %v3820, %v3812
    %v4165 = vadd.f32 %v3821, %v3813
    %v4166 = vadd.f32 %v3822, %v3814
    %v4167 = vadd.f32 %v3823, %v3815
    %v4168 = vadd.f32 %v4160, 1e-06
    %v4169 = vadd.f32 %v4161, 1e-06
    %v4170 = vadd.f32 %v4162, 1e-06
    %v4171 = vadd.f32 %v4163, 1e-06
    %v4172 = vadd.f32 %v4164, 1e-06
    %v4173 = vadd.f32 %v4165, 1e-06
    %v4174 = vadd.f32 %v4166, 1e-06
    %v4175 = vadd.f32 %v4167, 1e-06
    %v4176 = vlog2.pop %v4168
    %v4177 = vmul.f32 %v4176, 0.6931472
    %v4178 = vlog2.pop %v4169
    %v4179 = vmul.f32 %v4178, 0.6931472
    %v4180 = vlog2.pop %v4170
    %v4181 = vmul.f32 %v4180, 0.6931472
    %v4182 = vlog2.pop %v4171
    %v4183 = vmul.f32 %v4182, 0.6931472
    %v4184 = vlog2.pop %v4172
    %v4185 = vmul.f32 %v4184, 0.6931472
    %v4186 = vlog2.pop %v4173
    %v4187 = vmul.f32 %v4186, 0.6931472
    %v4188 = vlog2.pop %v4174
    %v4189 = vmul.f32 %v4188, 0.6931472
    %v4190 = vlog2.pop %v4175
    %v4191 = vmul.f32 %v4190, 0.6931472
    %v4192 = vmul.f32 %v3832, %v4177
    %v4193 = vmul.f32 %v3833, %v4179
    %v4194 = vmul.f32 %v3834, %v4181
    %v4195 = vmul.f32 %v3835, %v4183
    %v4196 = vmul.f32 %v3836, %v4185
    %v4197 = vmul.f32 %v3837, %v4187
    %v4198 = vmul.f32 %v3838, %v4189
    %v4199 = vmul.f32 %v3839, %v4191
    %v4200 = vsub.f32 %v4152, %v4192
    %v4201 = vsub.f32 %v4153, %v4193
    %v4202 = vsub.f32 %v4154, %v4194
    %v4203 = vsub.f32 %v4155, %v4195
    %v4204 = vsub.f32 %v4156, %v4196
    %v4205 = vsub.f32 %v4157, %v4197
    %v4206 = vsub.f32 %v4158, %v4198
    %v4207 = vsub.f32 %v4159, %v4199
    %v4208 = vadd.f32 %v3808, 1e-06
    %v4209 = vadd.f32 %v3809, 1e-06
    %v4210 = vadd.f32 %v3810, 1e-06
    %v4211 = vadd.f32 %v3811, 1e-06
    %v4212 = vadd.f32 %v3812, 1e-06
    %v4213 = vadd.f32 %v3813, 1e-06
    %v4214 = vadd.f32 %v3814, 1e-06
    %v4215 = vadd.f32 %v3815, 1e-06
    %v4216 = vlog2.pop %v4208
    %v4217 = vmul.f32 %v4216, 0.6931472
    %v4218 = vlog2.pop %v4209
    %v4219 = vmul.f32 %v4218, 0.6931472
    %v4220 = vlog2.pop %v4210
    %v4221 = vmul.f32 %v4220, 0.6931472
    %v4222 = vlog2.pop %v4211
    %v4223 = vmul.f32 %v4222, 0.6931472
    %v4224 = vlog2.pop %v4212
    %v4225 = vmul.f32 %v4224, 0.6931472
    %v4226 = vlog2.pop %v4213
    %v4227 = vmul.f32 %v4226, 0.6931472
    %v4228 = vlog2.pop %v4214
    %v4229 = vmul.f32 %v4228, 0.6931472
    %v4230 = vlog2.pop %v4215
    %v4231 = vmul.f32 %v4230, 0.6931472
    %v4232 = vmul.f32 %v3824, %v4217
    %v4233 = vmul.f32 %v3825, %v4219
    %v4234 = vmul.f32 %v3826, %v4221
    %v4235 = vmul.f32 %v3827, %v4223
    %v4236 = vmul.f32 %v3828, %v4225
    %v4237 = vmul.f32 %v3829, %v4227
    %v4238 = vmul.f32 %v3830, %v4229
    %v4239 = vmul.f32 %v3831, %v4231
    %v4240 = vadd.f32 %v4200, %v4232
    %v4241 = vadd.f32 %v4201, %v4233
    %v4242 = vadd.f32 %v4202, %v4234
    %v4243 = vadd.f32 %v4203, %v4235
    %v4244 = vadd.f32 %v4204, %v4236
    %v4245 = vadd.f32 %v4205, %v4237
    %v4246 = vadd.f32 %v4206, %v4238
    %v4247 = vadd.f32 %v4207, %v4239
    %v4248 = vsel %vm125, %v4240, 0.0
    %4249 = vadd.xlane.f32.xlu0 %v4248
    %v4250 = vpop.xlane.xlu0 %4249
    %v4251 = vsel %vm125, %v4241, 0.0
    %4252 = vadd.xlane.f32.xlu0 %v4251
    %v4253 = vpop.xlane.xlu0 %4252
    %v4254 = vsel %vm125, %v4242, 0.0
    %4255 = vadd.xlane.f32.xlu0 %v4254
    %v4256 = vpop.xlane.xlu0 %4255
    %v4257 = vsel %vm125, %v4243, 0.0
    %4258 = vadd.xlane.f32.xlu0 %v4257
    %v4259 = vpop.xlane.xlu0 %4258
    %v4260 = vsel %vm125, %v4244, 0.0
    %4261 = vadd.xlane.f32.xlu0 %v4260
    %v4262 = vpop.xlane.xlu0 %4261
    %v4263 = vsel %vm125, %v4245, 0.0
    %4264 = vadd.xlane.f32.xlu0 %v4263
    %v4265 = vpop.xlane.xlu0 %4264
    %v4266 = vsel %vm125, %v4246, 0.0
    %4267 = vadd.xlane.f32.xlu0 %v4266
    %v4268 = vpop.xlane.xlu0 %4267
    %v4269 = vsel %vm125, %v4247, 0.0
    %4270 = vadd.xlane.f32.xlu0 %v4269
    %v4271 = vpop.xlane.xlu0 %4270
    %v4272 = vsel %vm3502, %v4250, 0.0
    %v4273 = vsel %vm3502, %v4253, 0.0
    %v4274 = vadd.f32 %v4272, %v4273
    %v4275 = vsel %vm3502, %v4256, 0.0
    %v4276 = vadd.f32 %v4274, %v4275
    %v4277 = vsel %vm3502, %v4259, 0.0
    %v4278 = vadd.f32 %v4276, %v4277
    %v4279 = vsel %vm3502, %v4262, 0.0
    %v4280 = vadd.f32 %v4278, %v4279
    %v4281 = vsel %vm3502, %v4265, 0.0
    %v4282 = vadd.f32 %v4280, %v4281
    %v4283 = vsel %vm3502, %v4268, 0.0
    %v4284 = vadd.f32 %v4282, %v4283
    %v4285 = vsel %vm3502, %v4271, 0.0
    %v4286 = vadd.f32 %v4284, %v4285
    %4287 = vadd.xlane.f32.xlu0 %v4286
    %v4288 = vpop.xlane.xlu0 %4287
    %v4289 = vrot.slane %v4288, 4
    %v4290 = vadd.f32 %v4288, %v4289
    %v4291 = vrot.slane %v4290, 2
    %v4292 = vadd.f32 %v4290, %v4291
    %v4293 = vrot.slane %v4292, 1
    %v4294 = vadd.f32 %v4292, %v4293
    %s4295 = vtos %v4294
    %v4296 = vrcp.pop 64.0
    %s4297 = vtos %v4296
    %s4298 = smul.f32 %s4295, %s4297
    %s4299 = ssub.f32 0.0, %s4298
    %s4300 = smul.f32 %s3529, 0.1
    %s4301 = sadd.f32 %s4299, %s4300
    %v4302 = vstv %s4301
    %vm4303 = vcmask 0
    %4304 = vst.msk [vmem:[#allocation3] sm:$0x1] %vm4303, %v4302
    // Predicated region
    $region102: #{deconvnet_nb_forward.1} parent=1 // pred_check
      _
    $region103: #{deconvnet_nb_forward.1} parent=1 // pred_check_branch
      %4306 = sbr.rel (0) target = $region105
    $region104: #{deconvnet_nb_forward.1} parent=1 // pred_region
      %s4308 = ssub.s32 16, 16
      %4309 = vsyncadd [#allocation4], %s4308
      %s4311 = sshll.u32 [#allocation3], 4
      %s4312 = int_to_ptr.vmem [resolvable:$true] %s4311
      %4314 = dma.vmem_to_hbm [thread:$0]  %s4312, 16, %s25, [#allocation4]
    $region105: #{deconvnet_nb_forward.1} parent=1 // pred_fallthru
      _
    // Predicated region
    $region106: #{deconvnet_nb_forward.1} parent=1 // pred_check
      _
    $region107: #{deconvnet_nb_forward.1} parent=1 // pred_check_branch
      %4316 = sbr.rel (0) target = $region109
    $region108: #{deconvnet_nb_forward.1} parent=1 // pred_region
      %4317 = dma.done [#allocation4], 16
    $region109: #{deconvnet_nb_forward.1} parent=1 // pred_fallthru
      _
    %4318 = vsyncpa [#allocation4], 1

</llo_original>
